<compile_context>
chip_gen: v7x
topology: tpu7x:2x2x1
jax: 0.10.0
libtpu: 0.0.40
codegen_flags: <defaults>
</compile_context>

<pallas_src>
import jax
import jax.numpy as jnp
from jax import lax
from jax.experimental import pallas as pl
from jax.experimental.pallas import tpu as pltpu
import numpy as np


# ----------------------------------------------------------------------------- #
# Fused kernel builder.
# Input refs (order):
#   x (T, bt, I)
#   per GRU layer (4): wi_all_t (in_l, 3H), whh_all_t (H, 3H),
#                      b_i_all (1, 3H)  [= b_ih with b_hh folded for r,z],
#                      b_hn (1, H)
#   attention/head (9): wq_t (H,H), wk (H,H, untransposed), wv_t (H,H), wo_t (H,H),
#                       wl_t (H,O), b_q (1,H), b_v (1,H), b_o (1,H), b_l (1,O)
# Output: (bt, O)
# Scratch: gx (T, bt, 3H) f32, act (T, bt, H) f32
# ----------------------------------------------------------------------------- #
def make_fused_kernel(num_layers, T, H):
    n_in = 1 + 4 * num_layers + 9

    def kernel(*refs):
        x_ref = refs[0]
        out_ref = refs[n_in]
        gx_ref, act_ref = refs[n_in + 1:]
        bt = act_ref.shape[1]
        f32 = jnp.float32

        # --------------------------- GRU stack --------------------------- #
        h_last = None
        for layer in range(num_layers):
            wi_t, whh_t, b_i, b_hn = refs[1 + 4 * layer: 5 + 4 * layer]
            wdt = whh_t.dtype                     # MXU operand dtype (f32 or bf16)
            src_ref = x_ref if layer == 0 else act_ref
            in_l = src_ref.shape[-1]

            # Phase 1: hoisted input projections — ONE big matmul over all T*bt rows
            # (bias added once on the slab).  Off the recurrent critical path.
            src = src_ref[...].reshape(T * bt, in_l).astype(wdt)
            gx = jnp.dot(src, wi_t[...], preferred_element_type=f32) + b_i[...]
            gx_ref[...] = gx.reshape(T, bt, 3 * H)

            # Phase 2: recurrence.  h lives in vregs (fori_loop carry); one fused
            # (bt,3H) hidden matmul per step; gate math in f32.
            whh = whh_t[...]                                           # hoisted load
            bhn = jnp.broadcast_to(b_hn[...], (bt, H))                 # hoisted bcast

            def step(t, h):
                gx_t = gx_ref[t]                                       # (bt, 3H) f32
                gh = jnp.dot(h.astype(wdt), whh,
                             preferred_element_type=f32)               # (bt, 3H)
                r = jax.nn.sigmoid(gx_t[:, :H] + gh[:, :H])
                z = jax.nn.sigmoid(gx_t[:, H:2 * H] + gh[:, H:2 * H])
                n = jnp.tanh(gx_t[:, 2 * H:] + r * (gh[:, 2 * H:] + bhn))
                h_new = n + z * (h - n)                                # (1-z)*n + z*h
                act_ref[t] = h_new
                return h_new

            h_last = lax.fori_loop(0, T, step, jnp.zeros((bt, H), f32),
                                   unroll=(T <= 32))

        # -------------- last-query attention + out_proj + linear -------------- #
        (wq_t, wk, wv_t, wo_t, wl_t, b_q, b_v, b_o, b_l) = \
            refs[1 + 4 * num_layers:n_in]
        wdt = wq_t.dtype
        scale = 1.0 / float(np.sqrt(H))

        q = jnp.dot(h_last.astype(wdt), wq_t[...],
                    preferred_element_type=f32) + b_q[...]             # (bt, H)
        qk = jnp.dot(q.astype(wdt), wk[...],
                     preferred_element_type=f32) * scale               # (q @ Wk)*scale

        act = act_ref[...]                                             # (T, bt, H)
        s = jnp.sum(act * qk[None, :, :], axis=-1, keepdims=True)      # (T, bt, 1)
        m = jnp.max(s, axis=0, keepdims=True)
        e = jnp.exp(s - m)
        attn = e * pl.reciprocal(jnp.sum(e, axis=0, keepdims=True), approx=True)

        ctx_a = jnp.sum(attn * act, axis=0)                            # (bt, H)
        ctx = jnp.dot(ctx_a.astype(wdt), wv_t[...],
                      preferred_element_type=f32) + b_v[...]           # V-proj folded
        o = jnp.dot(ctx.astype(wdt), wo_t[...],
                    preferred_element_type=f32) + b_o[...]             # out_proj
        out_ref[...] = jnp.dot(o.astype(wdt), wl_t[...],
                               preferred_element_type=f32) + b_l[...]

    return kernel


# ----------------------------------------------------------------------------- #
# Wrapper: weight repacking + single pallas_call.
# ----------------------------------------------------------------------------- #
def attention_gru_forward(params, x_bti, *, block_b=None, mxu_dtype=jnp.float32):
    B, T, I = x_bti.shape
    H = params['gru'][0]['w_hh'].shape[1]
    O = params['wl'].shape[0]
    L = len(params['gru'])
    wdt = jnp.dtype(mxu_dtype)

    # Batch tile: multiple of 8 (f32 sublane rule); aim for >=2 blocks when B allows
    # (megacore / v7x two-TC sharding), cap at 256 rows per block.
    def _r8(n):
        return int(-(-int(n) // 8) * 8)
    if block_b is not None:
        bt = _r8(block_b)
    elif B <= 8:
        bt = _r8(B)
    else:
        bt = min(256, _r8(_r8(B) // 2))
    Bp = int(-(-B // bt) * bt)
    nb = Bp // bt

    # Time-major input; pad batch with zeros to the tile boundary (padded rows are
    # finite and independent; their outputs are discarded below).
    xt = jnp.transpose(x_bti.astype(jnp.float32), (1, 0, 2))           # (T, B, I)
    if Bp != B:
        xt = jnp.pad(xt, ((0, 0), (0, Bp - B), (0, 0)))

    args = [xt]
    for layer in params['gru']:
        w_ih, w_hh = layer['w_ih'], layer['w_hh']                      # (3H,in),(3H,H)
        b_ih, b_hh = layer['b_ih'], layer['b_hh']
        args += [
            jnp.transpose(w_ih).astype(wdt),                           # (in, 3H) r|z|n
            jnp.transpose(w_hh).astype(wdt),                           # (H, 3H)  r|z|n
            jnp.concatenate([b_ih[:2 * H] + b_hh[:2 * H],
                             b_ih[2 * H:]]).reshape(1, 3 * H).astype(jnp.float32),
            b_hh[2 * H:].reshape(1, H).astype(jnp.float32),
        ]
    args += [
        jnp.transpose(params['wq']).astype(wdt),                       # Wq^T
        params['wk'].astype(wdt),                                      # Wk (q @ Wk)
        jnp.transpose(params['wv']).astype(wdt),                       # Wv^T
        jnp.transpose(params['wo']).astype(wdt),                       # Wo^T
        jnp.transpose(params['wl']).astype(wdt),                       # Wl^T (H,O)
        params['bq'].reshape(1, H).astype(jnp.float32),
        params['bv'].reshape(1, H).astype(jnp.float32),
        params['bo'].reshape(1, H).astype(jnp.float32),
        params['bl'].reshape(1, O).astype(jnp.float32),
    ]

    kernel = make_fused_kernel(L, T, H)
    in_specs = [pl.BlockSpec((T, bt, I), lambda b: (0, b, 0))]
    in_specs += [pl.BlockSpec(a.shape, lambda b: (0, 0)) for a in args[1:]]
    out_specs = pl.BlockSpec((bt, O), lambda b: (b, 0))

    scratch_shapes = [pltpu.VMEM((T, bt, 3 * H), jnp.float32),
                      pltpu.VMEM((T, bt, H), jnp.float32)]

    # VMEM budget: footprint-derived, capped for v7x's 64 MiB physical VMEM.
    est = (2 * T * bt * I * 4 + 2 * bt * O * 4          # double-buffered x / out
           + T * bt * 4 * H * 4                         # gx + act scratch
           + 2 * sum(int(np.prod(a.shape)) * a.dtype.itemsize for a in args[1:]))
    vmem_limit = int(min(48 * 2 ** 20, max(32 * 2 ** 20, 2 * est)))

    out = pl.pallas_call(
        kernel,
        out_shape=jax.ShapeDtypeStruct((Bp, O), jnp.float32),
        grid=(nb,),
        in_specs=in_specs,
        out_specs=out_specs,
        scratch_shapes=scratch_shapes,
        compiler_params=pltpu.CompilerParams(
            dimension_semantics=("parallel",),
            vmem_limit_bytes=vmem_limit),
    )(*args)
    return out[:B]


# ----------------------------------------------------------------------------- #
# Pure-JAX reference (mirrors the PyTorch module in eval mode).
# ----------------------------------------------------------------------------- #
def attention_gru_reference(params, x_bti):
    def gru_layer_ref(x, w_ih, w_hh, b_ih, b_hh):
        B, T, _ = x.shape
        H = w_hh.shape[1]

        def step(h, x_t):
            gx = x_t @ w_ih.T + b_ih
            gh = h @ w_hh.T + b_hh
            r = jax.nn.sigmoid(gx[:, :H] + gh[:, :H])
            z = jax.nn.sigmoid(gx[:, H:2 * H] + gh[:, H:2 * H])
            n = jnp.tanh(gx[:, 2 * H:] + r * gh[:, 2 * H:])
            h_new = (1.0 - z) * n + z * h
            return h_new, h_new

        _, ys = lax.scan(step, jnp.zeros((B, H), jnp.float32),
                         jnp.transpose(x, (1, 0, 2)))
        return jnp.transpose(ys, (1, 0, 2))

    h = x_bti.astype(jnp.float32)
    for layer in params['gru']:
        h = gru_layer_ref(h, layer['w_ih'], layer['w_hh'], layer['b_ih'], layer['b_hh'])

    H = h.shape[-1]
    q = h @ params['wq'].T + params['bq']
    k = h @ params['wk'].T + params['bk']
    v = h @ params['wv'].T + params['bv']
    s = jnp.einsum('btd,bsd->bts', q, k) / jnp.sqrt(jnp.float32(H))
    attn = jax.nn.softmax(s, axis=-1)
    ctx = jnp.einsum('bts,bsd->btd', attn, v)
    o = ctx @ params['wo'].T + params['bo']
    return o[:, -1, :] @ params['wl'].T + params['bl']


def init_params(key, input_size, hidden_size, output_size, num_layers):
    def uniform(k, shape, bound):
        return jax.random.uniform(k, shape, jnp.float32, -bound, bound)

    H = hidden_size
    bound = 1.0 / np.sqrt(H)
    params = {'gru': []}
    keys = jax.random.split(key, 4 * num_layers + 8)
    idx = 0
    in_sz = input_size
    for _ in range(num_layers):
        params['gru'].append({
            'w_ih': uniform(keys[idx + 0], (3 * H, in_sz), bound),
            'w_hh': uniform(keys[idx + 1], (3 * H, H), bound),
            'b_ih': uniform(keys[idx + 2], (3 * H,), bound),
            'b_hh': uniform(keys[idx + 3], (3 * H,), bound),
        })
        idx += 4
        in_sz = H

    in_proj_w = uniform(keys[idx + 0], (3 * H, H), bound)
    in_proj_b = uniform(keys[idx + 1], (3 * H,), bound)
    params['wq'], params['wk'], params['wv'] = in_proj_w[:H], in_proj_w[H:2 * H], in_proj_w[2 * H:]
    params['bq'], params['bk'], params['bv'] = in_proj_b[:H], in_proj_b[H:2 * H], in_proj_b[2 * H:]
    params['wo'] = uniform(keys[idx + 2], (H, H), bound)
    params['bo'] = uniform(keys[idx + 3], (H,), bound)
    params['wl'] = uniform(keys[idx + 4], (output_size, H), bound)
    params['bl'] = uniform(keys[idx + 5], (output_size,), bound)
    return params


if __name__ == "__main__":
    config = dict(input_size=16, hidden_size=32, output_size=4,
                  num_layers=2, dropout=0.0)
    B, T = 2, 8

    key = jax.random.PRNGKey(0)
    k_params, k_x = jax.random.split(key)
    params = init_params(k_params, config['input_size'], config['hidden_size'],
                         config['output_size'], config['num_layers'])
    x = jax.random.normal(k_x, (B, T, config['input_size']), jnp.float32)

    y_ref = jax.block_until_ready(attention_gru_reference(params, x))

    # f32 MXU operands: exact-parity check.
    y_f32 = jax.block_until_ready(attention_gru_forward(params, x))
    assert y_f32.shape == (B, config['output_size'])
    np.testing.assert_allclose(np.asarray(y_f32), np.asarray(y_ref), rtol=2e-2, atol=2e-2)

    # bf16 MXU operands (f32 accumulation + f32 gate math): the v6e/v7x fast path.
    y_bf16 = jax.block_until_ready(
        attention_gru_forward(params, x, mxu_dtype=jnp.bfloat16))
    np.testing.assert_allclose(np.asarray(y_bf16), np.asarray(y_ref), rtol=5e-2, atol=5e-2)

    print("KERNEL_OK")
</pallas_src>

<mosaic_0001>
module attributes {stable_mosaic.version = 11 : i64} {
  func.func @kernel(%arg0: i32, %arg1: memref<8x8x16xf32, #tpu.memory_space<vmem>>, %arg2: memref<16x96xf32, #tpu.memory_space<vmem>>, %arg3: memref<32x96xf32, #tpu.memory_space<vmem>>, %arg4: memref<1x96xf32, #tpu.memory_space<vmem>>, %arg5: memref<1x32xf32, #tpu.memory_space<vmem>>, %arg6: memref<32x96xf32, #tpu.memory_space<vmem>>, %arg7: memref<32x96xf32, #tpu.memory_space<vmem>>, %arg8: memref<1x96xf32, #tpu.memory_space<vmem>>, %arg9: memref<1x32xf32, #tpu.memory_space<vmem>>, %arg10: memref<32x32xf32, #tpu.memory_space<vmem>>, %arg11: memref<32x32xf32, #tpu.memory_space<vmem>>, %arg12: memref<32x32xf32, #tpu.memory_space<vmem>>, %arg13: memref<32x32xf32, #tpu.memory_space<vmem>>, %arg14: memref<32x4xf32, #tpu.memory_space<vmem>>, %arg15: memref<1x32xf32, #tpu.memory_space<vmem>>, %arg16: memref<1x32xf32, #tpu.memory_space<vmem>>, %arg17: memref<1x32xf32, #tpu.memory_space<vmem>>, %arg18: memref<1x4xf32, #tpu.memory_space<vmem>>, %arg19: memref<8x4xf32, #tpu.memory_space<vmem>>, %arg20: memref<8x8x96xf32, #tpu.memory_space<vmem>>, %arg21: memref<8x8x32xf32, #tpu.memory_space<vmem>>) attributes {dimension_semantics = [#tpu.dimension_semantics<parallel>], iteration_bounds = array<i64: 1>, scalar_prefetch = 0 : i64, scratch_operands = 2 : i64, tpu.core_type = #tpu.core_type<tc>, window_params = [{transform_indices = @transform_0, window_bounds = array<i64: 8, 8, 16>}, {pipeline_mode = #tpu.pipeline_mode<synchronous>, transform_indices = @transform_1, window_bounds = array<i64: 16, 96>}, {pipeline_mode = #tpu.pipeline_mode<synchronous>, transform_indices = @transform_2, window_bounds = array<i64: 32, 96>}, {pipeline_mode = #tpu.pipeline_mode<synchronous>, transform_indices = @transform_3, window_bounds = array<i64: 1, 96>}, {pipeline_mode = #tpu.pipeline_mode<synchronous>, transform_indices = @transform_4, window_bounds = array<i64: 1, 32>}, {pipeline_mode = #tpu.pipeline_mode<synchronous>, transform_indices = @transform_5, window_bounds = array<i64: 32, 96>}, {pipeline_mode = #tpu.pipeline_mode<synchronous>, transform_indices = @transform_6, window_bounds = array<i64: 32, 96>}, {pipeline_mode = #tpu.pipeline_mode<synchronous>, transform_indices = @transform_7, window_bounds = array<i64: 1, 96>}, {pipeline_mode = #tpu.pipeline_mode<synchronous>, transform_indices = @transform_8, window_bounds = array<i64: 1, 32>}, {pipeline_mode = #tpu.pipeline_mode<synchronous>, transform_indices = @transform_9, window_bounds = array<i64: 32, 32>}, {pipeline_mode = #tpu.pipeline_mode<synchronous>, transform_indices = @transform_10, window_bounds = array<i64: 32, 32>}, {pipeline_mode = #tpu.pipeline_mode<synchronous>, transform_indices = @transform_11, window_bounds = array<i64: 32, 32>}, {pipeline_mode = #tpu.pipeline_mode<synchronous>, transform_indices = @transform_12, window_bounds = array<i64: 32, 32>}, {pipeline_mode = #tpu.pipeline_mode<synchronous>, transform_indices = @transform_13, window_bounds = array<i64: 32, 4>}, {pipeline_mode = #tpu.pipeline_mode<synchronous>, transform_indices = @transform_14, window_bounds = array<i64: 1, 32>}, {pipeline_mode = #tpu.pipeline_mode<synchronous>, transform_indices = @transform_15, window_bounds = array<i64: 1, 32>}, {pipeline_mode = #tpu.pipeline_mode<synchronous>, transform_indices = @transform_16, window_bounds = array<i64: 1, 32>}, {pipeline_mode = #tpu.pipeline_mode<synchronous>, transform_indices = @transform_17, window_bounds = array<i64: 1, 4>}, {transform_indices = @transform_18, window_bounds = array<i64: 8, 4>}]} {
    %c0 = arith.constant 0 : index
    %c0_0 = arith.constant 0 : index
    %c0_1 = arith.constant 0 : index
    %0 = vector.load %arg1[%c0, %c0_0, %c0_1] : memref<8x8x16xf32, #tpu.memory_space<vmem>>, vector<8x8x16xf32>
    %1 = vector.shape_cast %0 : vector<8x8x16xf32> to vector<64x16xf32>
    %c0_2 = arith.constant 0 : index
    %c0_3 = arith.constant 0 : index
    %2 = vector.load %arg2[%c0_2, %c0_3] : memref<16x96xf32, #tpu.memory_space<vmem>>, vector<16x96xf32>
    %cst = arith.constant dense<0.000000e+00> : vector<64x96xf32>
    %3 = tpu.matmul %1, %2, %cst {dimension_numbers = #tpu.dot_dimension_numbers<[1], [0], [0], [1], [0, 0, 1, 1], [], []>} : vector<64x16xf32>, vector<16x96xf32>, vector<64x96xf32> -> vector<64x96xf32>
    %c0_4 = arith.constant 0 : index
    %c0_5 = arith.constant 0 : index
    %4 = vector.load %arg4[%c0_4, %c0_5] : memref<1x96xf32, #tpu.memory_space<vmem>>, vector<1x96xf32>
    %5 = vector.broadcast %4 : vector<1x96xf32> to vector<64x96xf32>
    %6 = arith.addf %3, %5 : vector<64x96xf32>
    %7 = vector.shape_cast %6 : vector<64x96xf32> to vector<8x8x96xf32>
    %c0_6 = arith.constant 0 : index
    %c0_7 = arith.constant 0 : index
    %c0_8 = arith.constant 0 : index
    %8 = vector.load %arg20[%c0_6, %c0_7, %c0_8] : memref<8x8x96xf32, #tpu.memory_space<vmem>>, vector<8x8x96xf32>
    tpu.vector_store %arg20[%c0_6, %c0_7, %c0_8], %7 {strides = array<i32>} : memref<8x8x96xf32, #tpu.memory_space<vmem>>, vector<8x8x96xf32>,
    %c0_9 = arith.constant 0 : index
    %c0_10 = arith.constant 0 : index
    %9 = vector.load %arg3[%c0_9, %c0_10] : memref<32x96xf32, #tpu.memory_space<vmem>>, vector<32x96xf32>
    %c0_11 = arith.constant 0 : index
    %c0_12 = arith.constant 0 : index
    %10 = vector.load %arg5[%c0_11, %c0_12] : memref<1x32xf32, #tpu.memory_space<vmem>>, vector<1x32xf32>
    %11 = vector.shape_cast %10 : vector<1x32xf32> to vector<1x32xf32>
    %12 = vector.broadcast %11 : vector<1x32xf32> to vector<8x32xf32>
    %cst_13 = arith.constant 0.000000e+00 : f32
    %13 = vector.broadcast %cst_13 : f32 to vector<8x32xf32>
    %c0_i32 = arith.constant 0 : i32
    %14 = arith.index_cast %c0_i32 : i32 to index
    %c0_14 = arith.constant 0 : index
    %c0_15 = arith.constant 0 : index
    %15 = vector.load %arg20[%14, %c0_14, %c0_15] : memref<8x8x96xf32, #tpu.memory_space<vmem>>, vector<1x8x96xf32>
    %16 = vector.shape_cast %15 : vector<1x8x96xf32> to vector<8x96xf32>
    %cst_16 = arith.constant dense<0.000000e+00> : vector<8x96xf32>
    %17 = tpu.matmul %13, %9, %cst_16 {dimension_numbers = #tpu.dot_dimension_numbers<[1], [0], [0], [1], [0, 0, 1, 1], [], []>} : vector<8x32xf32>, vector<32x96xf32>, vector<8x96xf32> -> vector<8x96xf32>
    %18 = vector.extract_strided_slice %16 {offsets = [0, 0], sizes = [8, 32], strides = [1, 1]} : vector<8x96xf32> to vector<8x32xf32>
    %19 = vector.extract_strided_slice %17 {offsets = [0, 0], sizes = [8, 32], strides = [1, 1]} : vector<8x96xf32> to vector<8x32xf32>
    %20 = arith.addf %18, %19 : vector<8x32xf32>
    %21 = arith.negf %20 : vector<8x32xf32>
    %22 = math.exp %21 : vector<8x32xf32>
    %cst_17 = arith.constant 1.000000e+00 : f32
    %23 = vector.broadcast %cst_17 : f32 to vector<8x32xf32>
    %24 = arith.addf %23, %22 : vector<8x32xf32>
    %25 = arith.divf %23, %24 : vector<8x32xf32>
    %26 = vector.extract_strided_slice %16 {offsets = [0, 32], sizes = [8, 32], strides = [1, 1]} : vector<8x96xf32> to vector<8x32xf32>
    %27 = vector.extract_strided_slice %17 {offsets = [0, 32], sizes = [8, 32], strides = [1, 1]} : vector<8x96xf32> to vector<8x32xf32>
    %28 = arith.addf %26, %27 : vector<8x32xf32>
    %29 = arith.negf %28 : vector<8x32xf32>
    %30 = math.exp %29 : vector<8x32xf32>
    %cst_18 = arith.constant 1.000000e+00 : f32
    %31 = vector.broadcast %cst_18 : f32 to vector<8x32xf32>
    %32 = arith.addf %31, %30 : vector<8x32xf32>
    %33 = arith.divf %31, %32 : vector<8x32xf32>
    %34 = vector.extract_strided_slice %16 {offsets = [0, 64], sizes = [8, 32], strides = [1, 1]} : vector<8x96xf32> to vector<8x32xf32>
    %35 = vector.extract_strided_slice %17 {offsets = [0, 64], sizes = [8, 32], strides = [1, 1]} : vector<8x96xf32> to vector<8x32xf32>
    %36 = arith.addf %35, %12 : vector<8x32xf32>
    %37 = arith.mulf %25, %36 : vector<8x32xf32>
    %38 = arith.addf %34, %37 : vector<8x32xf32>
    %39 = math.tanh %38 : vector<8x32xf32>
    %40 = arith.subf %13, %39 : vector<8x32xf32>
    %41 = arith.mulf %33, %40 : vector<8x32xf32>
    %42 = arith.addf %39, %41 : vector<8x32xf32>
    %43 = arith.index_cast %c0_i32 : i32 to index
    %c0_19 = arith.constant 0 : index
    %c0_20 = arith.constant 0 : index
    %44 = vector.load %arg21[%43, %c0_19, %c0_20] : memref<8x8x32xf32, #tpu.memory_space<vmem>>, vector<1x8x32xf32>
    %45 = vector.shape_cast %44 : vector<1x8x32xf32> to vector<8x32xf32>
    %46 = vector.shape_cast %42 : vector<8x32xf32> to vector<1x8x32xf32>
    tpu.vector_store %arg21[%43, %c0_19, %c0_20], %46 {strides = array<i32>} : memref<8x8x32xf32, #tpu.memory_space<vmem>>, vector<1x8x32xf32>,
    %c1_i32 = arith.constant 1 : i32
    %47 = arith.index_cast %c1_i32 : i32 to index
    %c0_21 = arith.constant 0 : index
    %c0_22 = arith.constant 0 : index
    %48 = vector.load %arg20[%47, %c0_21, %c0_22] : memref<8x8x96xf32, #tpu.memory_space<vmem>>, vector<1x8x96xf32>
    %49 = vector.shape_cast %48 : vector<1x8x96xf32> to vector<8x96xf32>
    %cst_23 = arith.constant dense<0.000000e+00> : vector<8x96xf32>
    %50 = tpu.matmul %42, %9, %cst_23 {dimension_numbers = #tpu.dot_dimension_numbers<[1], [0], [0], [1], [0, 0, 1, 1], [], []>} : vector<8x32xf32>, vector<32x96xf32>, vector<8x96xf32> -> vector<8x96xf32>
    %51 = vector.extract_strided_slice %49 {offsets = [0, 0], sizes = [8, 32], strides = [1, 1]} : vector<8x96xf32> to vector<8x32xf32>
    %52 = vector.extract_strided_slice %50 {offsets = [0, 0], sizes = [8, 32], strides = [1, 1]} : vector<8x96xf32> to vector<8x32xf32>
    %53 = arith.addf %51, %52 : vector<8x32xf32>
    %54 = arith.negf %53 : vector<8x32xf32>
    %55 = math.exp %54 : vector<8x32xf32>
    %cst_24 = arith.constant 1.000000e+00 : f32
    %56 = vector.broadcast %cst_24 : f32 to vector<8x32xf32>
    %57 = arith.addf %56, %55 : vector<8x32xf32>
    %58 = arith.divf %56, %57 : vector<8x32xf32>
    %59 = vector.extract_strided_slice %49 {offsets = [0, 32], sizes = [8, 32], strides = [1, 1]} : vector<8x96xf32> to vector<8x32xf32>
    %60 = vector.extract_strided_slice %50 {offsets = [0, 32], sizes = [8, 32], strides = [1, 1]} : vector<8x96xf32> to vector<8x32xf32>
    %61 = arith.addf %59, %60 : vector<8x32xf32>
    %62 = arith.negf %61 : vector<8x32xf32>
    %63 = math.exp %62 : vector<8x32xf32>
    %cst_25 = arith.constant 1.000000e+00 : f32
    %64 = vector.broadcast %cst_25 : f32 to vector<8x32xf32>
    %65 = arith.addf %64, %63 : vector<8x32xf32>
    %66 = arith.divf %64, %65 : vector<8x32xf32>
    %67 = vector.extract_strided_slice %49 {offsets = [0, 64], sizes = [8, 32], strides = [1, 1]} : vector<8x96xf32> to vector<8x32xf32>
    %68 = vector.extract_strided_slice %50 {offsets = [0, 64], sizes = [8, 32], strides = [1, 1]} : vector<8x96xf32> to vector<8x32xf32>
    %69 = arith.addf %68, %12 : vector<8x32xf32>
    %70 = arith.mulf %58, %69 : vector<8x32xf32>
    %71 = arith.addf %67, %70 : vector<8x32xf32>
    %72 = math.tanh %71 : vector<8x32xf32>
    %73 = arith.subf %42, %72 : vector<8x32xf32>
    %74 = arith.mulf %66, %73 : vector<8x32xf32>
    %75 = arith.addf %72, %74 : vector<8x32xf32>
    %76 = arith.index_cast %c1_i32 : i32 to index
    %c0_26 = arith.constant 0 : index
    %c0_27 = arith.constant 0 : index
    %77 = vector.load %arg21[%76, %c0_26, %c0_27] : memref<8x8x32xf32, #tpu.memory_space<vmem>>, vector<1x8x32xf32>
    %78 = vector.shape_cast %77 : vector<1x8x32xf32> to vector<8x32xf32>
    %79 = vector.shape_cast %75 : vector<8x32xf32> to vector<1x8x32xf32>
    tpu.vector_store %arg21[%76, %c0_26, %c0_27], %79 {strides = array<i32>} : memref<8x8x32xf32, #tpu.memory_space<vmem>>, vector<1x8x32xf32>,
    %c2_i32 = arith.constant 2 : i32
    %80 = arith.index_cast %c2_i32 : i32 to index
    %c0_28 = arith.constant 0 : index
    %c0_29 = arith.constant 0 : index
    %81 = vector.load %arg20[%80, %c0_28, %c0_29] : memref<8x8x96xf32, #tpu.memory_space<vmem>>, vector<1x8x96xf32>
    %82 = vector.shape_cast %81 : vector<1x8x96xf32> to vector<8x96xf32>
    %cst_30 = arith.constant dense<0.000000e+00> : vector<8x96xf32>
    %83 = tpu.matmul %75, %9, %cst_30 {dimension_numbers = #tpu.dot_dimension_numbers<[1], [0], [0], [1], [0, 0, 1, 1], [], []>} : vector<8x32xf32>, vector<32x96xf32>, vector<8x96xf32> -> vector<8x96xf32>
    %84 = vector.extract_strided_slice %82 {offsets = [0, 0], sizes = [8, 32], strides = [1, 1]} : vector<8x96xf32> to vector<8x32xf32>
    %85 = vector.extract_strided_slice %83 {offsets = [0, 0], sizes = [8, 32], strides = [1, 1]} : vector<8x96xf32> to vector<8x32xf32>
    %86 = arith.addf %84, %85 : vector<8x32xf32>
    %87 = arith.negf %86 : vector<8x32xf32>
    %88 = math.exp %87 : vector<8x32xf32>
    %cst_31 = arith.constant 1.000000e+00 : f32
    %89 = vector.broadcast %cst_31 : f32 to vector<8x32xf32>
    %90 = arith.addf %89, %88 : vector<8x32xf32>
    %91 = arith.divf %89, %90 : vector<8x32xf32>
    %92 = vector.extract_strided_slice %82 {offsets = [0, 32], sizes = [8, 32], strides = [1, 1]} : vector<8x96xf32> to vector<8x32xf32>
    %93 = vector.extract_strided_slice %83 {offsets = [0, 32], sizes = [8, 32], strides = [1, 1]} : vector<8x96xf32> to vector<8x32xf32>
    %94 = arith.addf %92, %93 : vector<8x32xf32>
    %95 = arith.negf %94 : vector<8x32xf32>
    %96 = math.exp %95 : vector<8x32xf32>
    %cst_32 = arith.constant 1.000000e+00 : f32
    %97 = vector.broadcast %cst_32 : f32 to vector<8x32xf32>
    %98 = arith.addf %97, %96 : vector<8x32xf32>
    %99 = arith.divf %97, %98 : vector<8x32xf32>
    %100 = vector.extract_strided_slice %82 {offsets = [0, 64], sizes = [8, 32], strides = [1, 1]} : vector<8x96xf32> to vector<8x32xf32>
    %101 = vector.extract_strided_slice %83 {offsets = [0, 64], sizes = [8, 32], strides = [1, 1]} : vector<8x96xf32> to vector<8x32xf32>
    %102 = arith.addf %101, %12 : vector<8x32xf32>
    %103 = arith.mulf %91, %102 : vector<8x32xf32>
    %104 = arith.addf %100, %103 : vector<8x32xf32>
    %105 = math.tanh %104 : vector<8x32xf32>
    %106 = arith.subf %75, %105 : vector<8x32xf32>
    %107 = arith.mulf %99, %106 : vector<8x32xf32>
    %108 = arith.addf %105, %107 : vector<8x32xf32>
    %109 = arith.index_cast %c2_i32 : i32 to index
    %c0_33 = arith.constant 0 : index
    %c0_34 = arith.constant 0 : index
    %110 = vector.load %arg21[%109, %c0_33, %c0_34] : memref<8x8x32xf32, #tpu.memory_space<vmem>>, vector<1x8x32xf32>
    %111 = vector.shape_cast %110 : vector<1x8x32xf32> to vector<8x32xf32>
    %112 = vector.shape_cast %108 : vector<8x32xf32> to vector<1x8x32xf32>
    tpu.vector_store %arg21[%109, %c0_33, %c0_34], %112 {strides = array<i32>} : memref<8x8x32xf32, #tpu.memory_space<vmem>>, vector<1x8x32xf32>,
    %c3_i32 = arith.constant 3 : i32
    %113 = arith.index_cast %c3_i32 : i32 to index
    %c0_35 = arith.constant 0 : index
    %c0_36 = arith.constant 0 : index
    %114 = vector.load %arg20[%113, %c0_35, %c0_36] : memref<8x8x96xf32, #tpu.memory_space<vmem>>, vector<1x8x96xf32>
    %115 = vector.shape_cast %114 : vector<1x8x96xf32> to vector<8x96xf32>
    %cst_37 = arith.constant dense<0.000000e+00> : vector<8x96xf32>
    %116 = tpu.matmul %108, %9, %cst_37 {dimension_numbers = #tpu.dot_dimension_numbers<[1], [0], [0], [1], [0, 0, 1, 1], [], []>} : vector<8x32xf32>, vector<32x96xf32>, vector<8x96xf32> -> vector<8x96xf32>
    %117 = vector.extract_strided_slice %115 {offsets = [0, 0], sizes = [8, 32], strides = [1, 1]} : vector<8x96xf32> to vector<8x32xf32>
    %118 = vector.extract_strided_slice %116 {offsets = [0, 0], sizes = [8, 32], strides = [1, 1]} : vector<8x96xf32> to vector<8x32xf32>
    %119 = arith.addf %117, %118 : vector<8x32xf32>
    %120 = arith.negf %119 : vector<8x32xf32>
    %121 = math.exp %120 : vector<8x32xf32>
    %cst_38 = arith.constant 1.000000e+00 : f32
    %122 = vector.broadcast %cst_38 : f32 to vector<8x32xf32>
    %123 = arith.addf %122, %121 : vector<8x32xf32>
    %124 = arith.divf %122, %123 : vector<8x32xf32>
    %125 = vector.extract_strided_slice %115 {offsets = [0, 32], sizes = [8, 32], strides = [1, 1]} : vector<8x96xf32> to vector<8x32xf32>
    %126 = vector.extract_strided_slice %116 {offsets = [0, 32], sizes = [8, 32], strides = [1, 1]} : vector<8x96xf32> to vector<8x32xf32>
    %127 = arith.addf %125, %126 : vector<8x32xf32>
    %128 = arith.negf %127 : vector<8x32xf32>
    %129 = math.exp %128 : vector<8x32xf32>
    %cst_39 = arith.constant 1.000000e+00 : f32
    %130 = vector.broadcast %cst_39 : f32 to vector<8x32xf32>
    %131 = arith.addf %130, %129 : vector<8x32xf32>
    %132 = arith.divf %130, %131 : vector<8x32xf32>
    %133 = vector.extract_strided_slice %115 {offsets = [0, 64], sizes = [8, 32], strides = [1, 1]} : vector<8x96xf32> to vector<8x32xf32>
    %134 = vector.extract_strided_slice %116 {offsets = [0, 64], sizes = [8, 32], strides = [1, 1]} : vector<8x96xf32> to vector<8x32xf32>
    %135 = arith.addf %134, %12 : vector<8x32xf32>
    %136 = arith.mulf %124, %135 : vector<8x32xf32>
    %137 = arith.addf %133, %136 : vector<8x32xf32>
    %138 = math.tanh %137 : vector<8x32xf32>
    %139 = arith.subf %108, %138 : vector<8x32xf32>
    %140 = arith.mulf %132, %139 : vector<8x32xf32>
    %141 = arith.addf %138, %140 : vector<8x32xf32>
    %142 = arith.index_cast %c3_i32 : i32 to index
    %c0_40 = arith.constant 0 : index
    %c0_41 = arith.constant 0 : index
    %143 = vector.load %arg21[%142, %c0_40, %c0_41] : memref<8x8x32xf32, #tpu.memory_space<vmem>>, vector<1x8x32xf32>
    %144 = vector.shape_cast %143 : vector<1x8x32xf32> to vector<8x32xf32>
    %145 = vector.shape_cast %141 : vector<8x32xf32> to vector<1x8x32xf32>
    tpu.vector_store %arg21[%142, %c0_40, %c0_41], %145 {strides = array<i32>} : memref<8x8x32xf32, #tpu.memory_space<vmem>>, vector<1x8x32xf32>,
    %c4_i32 = arith.constant 4 : i32
    %146 = arith.index_cast %c4_i32 : i32 to index
    %c0_42 = arith.constant 0 : index
    %c0_43 = arith.constant 0 : index
    %147 = vector.load %arg20[%146, %c0_42, %c0_43] : memref<8x8x96xf32, #tpu.memory_space<vmem>>, vector<1x8x96xf32>
    %148 = vector.shape_cast %147 : vector<1x8x96xf32> to vector<8x96xf32>
    %cst_44 = arith.constant dense<0.000000e+00> : vector<8x96xf32>
    %149 = tpu.matmul %141, %9, %cst_44 {dimension_numbers = #tpu.dot_dimension_numbers<[1], [0], [0], [1], [0, 0, 1, 1], [], []>} : vector<8x32xf32>, vector<32x96xf32>, vector<8x96xf32> -> vector<8x96xf32>
    %150 = vector.extract_strided_slice %148 {offsets = [0, 0], sizes = [8, 32], strides = [1, 1]} : vector<8x96xf32> to vector<8x32xf32>
    %151 = vector.extract_strided_slice %149 {offsets = [0, 0], sizes = [8, 32], strides = [1, 1]} : vector<8x96xf32> to vector<8x32xf32>
    %152 = arith.addf %150, %151 : vector<8x32xf32>
    %153 = arith.negf %152 : vector<8x32xf32>
    %154 = math.exp %153 : vector<8x32xf32>
    %cst_45 = arith.constant 1.000000e+00 : f32
    %155 = vector.broadcast %cst_45 : f32 to vector<8x32xf32>
    %156 = arith.addf %155, %154 : vector<8x32xf32>
    %157 = arith.divf %155, %156 : vector<8x32xf32>
    %158 = vector.extract_strided_slice %148 {offsets = [0, 32], sizes = [8, 32], strides = [1, 1]} : vector<8x96xf32> to vector<8x32xf32>
    %159 = vector.extract_strided_slice %149 {offsets = [0, 32], sizes = [8, 32], strides = [1, 1]} : vector<8x96xf32> to vector<8x32xf32>
    %160 = arith.addf %158, %159 : vector<8x32xf32>
    %161 = arith.negf %160 : vector<8x32xf32>
    %162 = math.exp %161 : vector<8x32xf32>
    %cst_46 = arith.constant 1.000000e+00 : f32
    %163 = vector.broadcast %cst_46 : f32 to vector<8x32xf32>
    %164 = arith.addf %163, %162 : vector<8x32xf32>
    %165 = arith.divf %163, %164 : vector<8x32xf32>
    %166 = vector.extract_strided_slice %148 {offsets = [0, 64], sizes = [8, 32], strides = [1, 1]} : vector<8x96xf32> to vector<8x32xf32>
    %167 = vector.extract_strided_slice %149 {offsets = [0, 64], sizes = [8, 32], strides = [1, 1]} : vector<8x96xf32> to vector<8x32xf32>
    %168 = arith.addf %167, %12 : vector<8x32xf32>
    %169 = arith.mulf %157, %168 : vector<8x32xf32>
    %170 = arith.addf %166, %169 : vector<8x32xf32>
    %171 = math.tanh %170 : vector<8x32xf32>
    %172 = arith.subf %141, %171 : vector<8x32xf32>
    %173 = arith.mulf %165, %172 : vector<8x32xf32>
    %174 = arith.addf %171, %173 : vector<8x32xf32>
    %175 = arith.index_cast %c4_i32 : i32 to index
    %c0_47 = arith.constant 0 : index
    %c0_48 = arith.constant 0 : index
    %176 = vector.load %arg21[%175, %c0_47, %c0_48] : memref<8x8x32xf32, #tpu.memory_space<vmem>>, vector<1x8x32xf32>
    %177 = vector.shape_cast %176 : vector<1x8x32xf32> to vector<8x32xf32>
    %178 = vector.shape_cast %174 : vector<8x32xf32> to vector<1x8x32xf32>
    tpu.vector_store %arg21[%175, %c0_47, %c0_48], %178 {strides = array<i32>} : memref<8x8x32xf32, #tpu.memory_space<vmem>>, vector<1x8x32xf32>,
    %c5_i32 = arith.constant 5 : i32
    %179 = arith.index_cast %c5_i32 : i32 to index
    %c0_49 = arith.constant 0 : index
    %c0_50 = arith.constant 0 : index
    %180 = vector.load %arg20[%179, %c0_49, %c0_50] : memref<8x8x96xf32, #tpu.memory_space<vmem>>, vector<1x8x96xf32>
    %181 = vector.shape_cast %180 : vector<1x8x96xf32> to vector<8x96xf32>
    %cst_51 = arith.constant dense<0.000000e+00> : vector<8x96xf32>
    %182 = tpu.matmul %174, %9, %cst_51 {dimension_numbers = #tpu.dot_dimension_numbers<[1], [0], [0], [1], [0, 0, 1, 1], [], []>} : vector<8x32xf32>, vector<32x96xf32>, vector<8x96xf32> -> vector<8x96xf32>
    %183 = vector.extract_strided_slice %181 {offsets = [0, 0], sizes = [8, 32], strides = [1, 1]} : vector<8x96xf32> to vector<8x32xf32>
    %184 = vector.extract_strided_slice %182 {offsets = [0, 0], sizes = [8, 32], strides = [1, 1]} : vector<8x96xf32> to vector<8x32xf32>
    %185 = arith.addf %183, %184 : vector<8x32xf32>
    %186 = arith.negf %185 : vector<8x32xf32>
    %187 = math.exp %186 : vector<8x32xf32>
    %cst_52 = arith.constant 1.000000e+00 : f32
    %188 = vector.broadcast %cst_52 : f32 to vector<8x32xf32>
    %189 = arith.addf %188, %187 : vector<8x32xf32>
    %190 = arith.divf %188, %189 : vector<8x32xf32>
    %191 = vector.extract_strided_slice %181 {offsets = [0, 32], sizes = [8, 32], strides = [1, 1]} : vector<8x96xf32> to vector<8x32xf32>
    %192 = vector.extract_strided_slice %182 {offsets = [0, 32], sizes = [8, 32], strides = [1, 1]} : vector<8x96xf32> to vector<8x32xf32>
    %193 = arith.addf %191, %192 : vector<8x32xf32>
    %194 = arith.negf %193 : vector<8x32xf32>
    %195 = math.exp %194 : vector<8x32xf32>
    %cst_53 = arith.constant 1.000000e+00 : f32
    %196 = vector.broadcast %cst_53 : f32 to vector<8x32xf32>
    %197 = arith.addf %196, %195 : vector<8x32xf32>
    %198 = arith.divf %196, %197 : vector<8x32xf32>
    %199 = vector.extract_strided_slice %181 {offsets = [0, 64], sizes = [8, 32], strides = [1, 1]} : vector<8x96xf32> to vector<8x32xf32>
    %200 = vector.extract_strided_slice %182 {offsets = [0, 64], sizes = [8, 32], strides = [1, 1]} : vector<8x96xf32> to vector<8x32xf32>
    %201 = arith.addf %200, %12 : vector<8x32xf32>
    %202 = arith.mulf %190, %201 : vector<8x32xf32>
    %203 = arith.addf %199, %202 : vector<8x32xf32>
    %204 = math.tanh %203 : vector<8x32xf32>
    %205 = arith.subf %174, %204 : vector<8x32xf32>
    %206 = arith.mulf %198, %205 : vector<8x32xf32>
    %207 = arith.addf %204, %206 : vector<8x32xf32>
    %208 = arith.index_cast %c5_i32 : i32 to index
    %c0_54 = arith.constant 0 : index
    %c0_55 = arith.constant 0 : index
    %209 = vector.load %arg21[%208, %c0_54, %c0_55] : memref<8x8x32xf32, #tpu.memory_space<vmem>>, vector<1x8x32xf32>
    %210 = vector.shape_cast %209 : vector<1x8x32xf32> to vector<8x32xf32>
    %211 = vector.shape_cast %207 : vector<8x32xf32> to vector<1x8x32xf32>
    tpu.vector_store %arg21[%208, %c0_54, %c0_55], %211 {strides = array<i32>} : memref<8x8x32xf32, #tpu.memory_space<vmem>>, vector<1x8x32xf32>,
    %c6_i32 = arith.constant 6 : i32
    %212 = arith.index_cast %c6_i32 : i32 to index
    %c0_56 = arith.constant 0 : index
    %c0_57 = arith.constant 0 : index
    %213 = vector.load %arg20[%212, %c0_56, %c0_57] : memref<8x8x96xf32, #tpu.memory_space<vmem>>, vector<1x8x96xf32>
    %214 = vector.shape_cast %213 : vector<1x8x96xf32> to vector<8x96xf32>
    %cst_58 = arith.constant dense<0.000000e+00> : vector<8x96xf32>
    %215 = tpu.matmul %207, %9, %cst_58 {dimension_numbers = #tpu.dot_dimension_numbers<[1], [0], [0], [1], [0, 0, 1, 1], [], []>} : vector<8x32xf32>, vector<32x96xf32>, vector<8x96xf32> -> vector<8x96xf32>
    %216 = vector.extract_strided_slice %214 {offsets = [0, 0], sizes = [8, 32], strides = [1, 1]} : vector<8x96xf32> to vector<8x32xf32>
    %217 = vector.extract_strided_slice %215 {offsets = [0, 0], sizes = [8, 32], strides = [1, 1]} : vector<8x96xf32> to vector<8x32xf32>
    %218 = arith.addf %216, %217 : vector<8x32xf32>
    %219 = arith.negf %218 : vector<8x32xf32>
    %220 = math.exp %219 : vector<8x32xf32>
    %cst_59 = arith.constant 1.000000e+00 : f32
    %221 = vector.broadcast %cst_59 : f32 to vector<8x32xf32>
    %222 = arith.addf %221, %220 : vector<8x32xf32>
    %223 = arith.divf %221, %222 : vector<8x32xf32>
    %224 = vector.extract_strided_slice %214 {offsets = [0, 32], sizes = [8, 32], strides = [1, 1]} : vector<8x96xf32> to vector<8x32xf32>
    %225 = vector.extract_strided_slice %215 {offsets = [0, 32], sizes = [8, 32], strides = [1, 1]} : vector<8x96xf32> to vector<8x32xf32>
    %226 = arith.addf %224, %225 : vector<8x32xf32>
    %227 = arith.negf %226 : vector<8x32xf32>
    %228 = math.exp %227 : vector<8x32xf32>
    %cst_60 = arith.constant 1.000000e+00 : f32
    %229 = vector.broadcast %cst_60 : f32 to vector<8x32xf32>
    %230 = arith.addf %229, %228 : vector<8x32xf32>
    %231 = arith.divf %229, %230 : vector<8x32xf32>
    %232 = vector.extract_strided_slice %214 {offsets = [0, 64], sizes = [8, 32], strides = [1, 1]} : vector<8x96xf32> to vector<8x32xf32>
    %233 = vector.extract_strided_slice %215 {offsets = [0, 64], sizes = [8, 32], strides = [1, 1]} : vector<8x96xf32> to vector<8x32xf32>
    %234 = arith.addf %233, %12 : vector<8x32xf32>
    %235 = arith.mulf %223, %234 : vector<8x32xf32>
    %236 = arith.addf %232, %235 : vector<8x32xf32>
    %237 = math.tanh %236 : vector<8x32xf32>
    %238 = arith.subf %207, %237 : vector<8x32xf32>
    %239 = arith.mulf %231, %238 : vector<8x32xf32>
    %240 = arith.addf %237, %239 : vector<8x32xf32>
    %241 = arith.index_cast %c6_i32 : i32 to index
    %c0_61 = arith.constant 0 : index
    %c0_62 = arith.constant 0 : index
    %242 = vector.load %arg21[%241, %c0_61, %c0_62] : memref<8x8x32xf32, #tpu.memory_space<vmem>>, vector<1x8x32xf32>
    %243 = vector.shape_cast %242 : vector<1x8x32xf32> to vector<8x32xf32>
    %244 = vector.shape_cast %240 : vector<8x32xf32> to vector<1x8x32xf32>
    tpu.vector_store %arg21[%241, %c0_61, %c0_62], %244 {strides = array<i32>} : memref<8x8x32xf32, #tpu.memory_space<vmem>>, vector<1x8x32xf32>,
    %c7_i32 = arith.constant 7 : i32
    %245 = arith.index_cast %c7_i32 : i32 to index
    %c0_63 = arith.constant 0 : index
    %c0_64 = arith.constant 0 : index
    %246 = vector.load %arg20[%245, %c0_63, %c0_64] : memref<8x8x96xf32, #tpu.memory_space<vmem>>, vector<1x8x96xf32>
    %247 = vector.shape_cast %246 : vector<1x8x96xf32> to vector<8x96xf32>
    %cst_65 = arith.constant dense<0.000000e+00> : vector<8x96xf32>
    %248 = tpu.matmul %240, %9, %cst_65 {dimension_numbers = #tpu.dot_dimension_numbers<[1], [0], [0], [1], [0, 0, 1, 1], [], []>} : vector<8x32xf32>, vector<32x96xf32>, vector<8x96xf32> -> vector<8x96xf32>
    %249 = vector.extract_strided_slice %247 {offsets = [0, 0], sizes = [8, 32], strides = [1, 1]} : vector<8x96xf32> to vector<8x32xf32>
    %250 = vector.extract_strided_slice %248 {offsets = [0, 0], sizes = [8, 32], strides = [1, 1]} : vector<8x96xf32> to vector<8x32xf32>
    %251 = arith.addf %249, %250 : vector<8x32xf32>
    %252 = arith.negf %251 : vector<8x32xf32>
    %253 = math.exp %252 : vector<8x32xf32>
    %cst_66 = arith.constant 1.000000e+00 : f32
    %254 = vector.broadcast %cst_66 : f32 to vector<8x32xf32>
    %255 = arith.addf %254, %253 : vector<8x32xf32>
    %256 = arith.divf %254, %255 : vector<8x32xf32>
    %257 = vector.extract_strided_slice %247 {offsets = [0, 32], sizes = [8, 32], strides = [1, 1]} : vector<8x96xf32> to vector<8x32xf32>
    %258 = vector.extract_strided_slice %248 {offsets = [0, 32], sizes = [8, 32], strides = [1, 1]} : vector<8x96xf32> to vector<8x32xf32>
    %259 = arith.addf %257, %258 : vector<8x32xf32>
    %260 = arith.negf %259 : vector<8x32xf32>
    %261 = math.exp %260 : vector<8x32xf32>
    %cst_67 = arith.constant 1.000000e+00 : f32
    %262 = vector.broadcast %cst_67 : f32 to vector<8x32xf32>
    %263 = arith.addf %262, %261 : vector<8x32xf32>
    %264 = arith.divf %262, %263 : vector<8x32xf32>
    %265 = vector.extract_strided_slice %247 {offsets = [0, 64], sizes = [8, 32], strides = [1, 1]} : vector<8x96xf32> to vector<8x32xf32>
    %266 = vector.extract_strided_slice %248 {offsets = [0, 64], sizes = [8, 32], strides = [1, 1]} : vector<8x96xf32> to vector<8x32xf32>
    %267 = arith.addf %266, %12 : vector<8x32xf32>
    %268 = arith.mulf %256, %267 : vector<8x32xf32>
    %269 = arith.addf %265, %268 : vector<8x32xf32>
    %270 = math.tanh %269 : vector<8x32xf32>
    %271 = arith.subf %240, %270 : vector<8x32xf32>
    %272 = arith.mulf %264, %271 : vector<8x32xf32>
    %273 = arith.addf %270, %272 : vector<8x32xf32>
    %274 = arith.index_cast %c7_i32 : i32 to index
    %c0_68 = arith.constant 0 : index
    %c0_69 = arith.constant 0 : index
    %275 = vector.load %arg21[%274, %c0_68, %c0_69] : memref<8x8x32xf32, #tpu.memory_space<vmem>>, vector<1x8x32xf32>
    %276 = vector.shape_cast %275 : vector<1x8x32xf32> to vector<8x32xf32>
    %277 = vector.shape_cast %273 : vector<8x32xf32> to vector<1x8x32xf32>
    tpu.vector_store %arg21[%274, %c0_68, %c0_69], %277 {strides = array<i32>} : memref<8x8x32xf32, #tpu.memory_space<vmem>>, vector<1x8x32xf32>,
    %c8_i32 = arith.constant 8 : i32
    %c0_70 = arith.constant 0 : index
    %c0_71 = arith.constant 0 : index
    %c0_72 = arith.constant 0 : index
    %278 = vector.load %arg21[%c0_70, %c0_71, %c0_72] : memref<8x8x32xf32, #tpu.memory_space<vmem>>, vector<8x8x32xf32>
    %279 = vector.shape_cast %278 : vector<8x8x32xf32> to vector<64x32xf32>
    %c0_73 = arith.constant 0 : index
    %c0_74 = arith.constant 0 : index
    %280 = vector.load %arg6[%c0_73, %c0_74] : memref<32x96xf32, #tpu.memory_space<vmem>>, vector<32x96xf32>
    %cst_75 = arith.constant dense<0.000000e+00> : vector<64x96xf32>
    %281 = tpu.matmul %279, %280, %cst_75 {dimension_numbers = #tpu.dot_dimension_numbers<[1], [0], [0], [1], [0, 0, 1, 1], [], []>} : vector<64x32xf32>, vector<32x96xf32>, vector<64x96xf32> -> vector<64x96xf32>
    %c0_76 = arith.constant 0 : index
    %c0_77 = arith.constant 0 : index
    %282 = vector.load %arg8[%c0_76, %c0_77] : memref<1x96xf32, #tpu.memory_space<vmem>>, vector<1x96xf32>
    %283 = vector.broadcast %282 : vector<1x96xf32> to vector<64x96xf32>
    %284 = arith.addf %281, %283 : vector<64x96xf32>
    %285 = vector.shape_cast %284 : vector<64x96xf32> to vector<8x8x96xf32>
    %c0_78 = arith.constant 0 : index
    %c0_79 = arith.constant 0 : index
    %c0_80 = arith.constant 0 : index
    %286 = vector.load %arg20[%c0_78, %c0_79, %c0_80] : memref<8x8x96xf32, #tpu.memory_space<vmem>>, vector<8x8x96xf32>
    tpu.vector_store %arg20[%c0_78, %c0_79, %c0_80], %285 {strides = array<i32>} : memref<8x8x96xf32, #tpu.memory_space<vmem>>, vector<8x8x96xf32>,
    %c0_81 = arith.constant 0 : index
    %c0_82 = arith.constant 0 : index
    %287 = vector.load %arg7[%c0_81, %c0_82] : memref<32x96xf32, #tpu.memory_space<vmem>>, vector<32x96xf32>
    %c0_83 = arith.constant 0 : index
    %c0_84 = arith.constant 0 : index
    %288 = vector.load %arg9[%c0_83, %c0_84] : memref<1x32xf32, #tpu.memory_space<vmem>>, vector<1x32xf32>
    %289 = vector.shape_cast %288 : vector<1x32xf32> to vector<1x32xf32>
    %290 = vector.broadcast %289 : vector<1x32xf32> to vector<8x32xf32>
    %cst_85 = arith.constant 0.000000e+00 : f32
    %291 = vector.broadcast %cst_85 : f32 to vector<8x32xf32>
    %c0_i32_86 = arith.constant 0 : i32
    %292 = arith.index_cast %c0_i32_86 : i32 to index
    %c0_87 = arith.constant 0 : index
    %c0_88 = arith.constant 0 : index
    %293 = vector.load %arg20[%292, %c0_87, %c0_88] : memref<8x8x96xf32, #tpu.memory_space<vmem>>, vector<1x8x96xf32>
    %294 = vector.shape_cast %293 : vector<1x8x96xf32> to vector<8x96xf32>
    %cst_89 = arith.constant dense<0.000000e+00> : vector<8x96xf32>
    %295 = tpu.matmul %291, %287, %cst_89 {dimension_numbers = #tpu.dot_dimension_numbers<[1], [0], [0], [1], [0, 0, 1, 1], [], []>} : vector<8x32xf32>, vector<32x96xf32>, vector<8x96xf32> -> vector<8x96xf32>
    %296 = vector.extract_strided_slice %294 {offsets = [0, 0], sizes = [8, 32], strides = [1, 1]} : vector<8x96xf32> to vector<8x32xf32>
    %297 = vector.extract_strided_slice %295 {offsets = [0, 0], sizes = [8, 32], strides = [1, 1]} : vector<8x96xf32> to vector<8x32xf32>
    %298 = arith.addf %296, %297 : vector<8x32xf32>
    %299 = arith.negf %298 : vector<8x32xf32>
    %300 = math.exp %299 : vector<8x32xf32>
    %cst_90 = arith.constant 1.000000e+00 : f32
    %301 = vector.broadcast %cst_90 : f32 to vector<8x32xf32>
    %302 = arith.addf %301, %300 : vector<8x32xf32>
    %303 = arith.divf %301, %302 : vector<8x32xf32>
    %304 = vector.extract_strided_slice %294 {offsets = [0, 32], sizes = [8, 32], strides = [1, 1]} : vector<8x96xf32> to vector<8x32xf32>
    %305 = vector.extract_strided_slice %295 {offsets = [0, 32], sizes = [8, 32], strides = [1, 1]} : vector<8x96xf32> to vector<8x32xf32>
    %306 = arith.addf %304, %305 : vector<8x32xf32>
    %307 = arith.negf %306 : vector<8x32xf32>
    %308 = math.exp %307 : vector<8x32xf32>
    %cst_91 = arith.constant 1.000000e+00 : f32
    %309 = vector.broadcast %cst_91 : f32 to vector<8x32xf32>
    %310 = arith.addf %309, %308 : vector<8x32xf32>
    %311 = arith.divf %309, %310 : vector<8x32xf32>
    %312 = vector.extract_strided_slice %294 {offsets = [0, 64], sizes = [8, 32], strides = [1, 1]} : vector<8x96xf32> to vector<8x32xf32>
    %313 = vector.extract_strided_slice %295 {offsets = [0, 64], sizes = [8, 32], strides = [1, 1]} : vector<8x96xf32> to vector<8x32xf32>
    %314 = arith.addf %313, %290 : vector<8x32xf32>
    %315 = arith.mulf %303, %314 : vector<8x32xf32>
    %316 = arith.addf %312, %315 : vector<8x32xf32>
    %317 = math.tanh %316 : vector<8x32xf32>
    %318 = arith.subf %291, %317 : vector<8x32xf32>
    %319 = arith.mulf %311, %318 : vector<8x32xf32>
    %320 = arith.addf %317, %319 : vector<8x32xf32>
    %321 = arith.index_cast %c0_i32_86 : i32 to index
    %c0_92 = arith.constant 0 : index
    %c0_93 = arith.constant 0 : index
    %322 = vector.load %arg21[%321, %c0_92, %c0_93] : memref<8x8x32xf32, #tpu.memory_space<vmem>>, vector<1x8x32xf32>
    %323 = vector.shape_cast %322 : vector<1x8x32xf32> to vector<8x32xf32>
    %324 = vector.shape_cast %320 : vector<8x32xf32> to vector<1x8x32xf32>
    tpu.vector_store %arg21[%321, %c0_92, %c0_93], %324 {strides = array<i32>} : memref<8x8x32xf32, #tpu.memory_space<vmem>>, vector<1x8x32xf32>,
    %c1_i32_94 = arith.constant 1 : i32
    %325 = arith.index_cast %c1_i32_94 : i32 to index
    %c0_95 = arith.constant 0 : index
    %c0_96 = arith.constant 0 : index
    %326 = vector.load %arg20[%325, %c0_95, %c0_96] : memref<8x8x96xf32, #tpu.memory_space<vmem>>, vector<1x8x96xf32>
    %327 = vector.shape_cast %326 : vector<1x8x96xf32> to vector<8x96xf32>
    %cst_97 = arith.constant dense<0.000000e+00> : vector<8x96xf32>
    %328 = tpu.matmul %320, %287, %cst_97 {dimension_numbers = #tpu.dot_dimension_numbers<[1], [0], [0], [1], [0, 0, 1, 1], [], []>} : vector<8x32xf32>, vector<32x96xf32>, vector<8x96xf32> -> vector<8x96xf32>
    %329 = vector.extract_strided_slice %327 {offsets = [0, 0], sizes = [8, 32], strides = [1, 1]} : vector<8x96xf32> to vector<8x32xf32>
    %330 = vector.extract_strided_slice %328 {offsets = [0, 0], sizes = [8, 32], strides = [1, 1]} : vector<8x96xf32> to vector<8x32xf32>
    %331 = arith.addf %329, %330 : vector<8x32xf32>
    %332 = arith.negf %331 : vector<8x32xf32>
    %333 = math.exp %332 : vector<8x32xf32>
    %cst_98 = arith.constant 1.000000e+00 : f32
    %334 = vector.broadcast %cst_98 : f32 to vector<8x32xf32>
    %335 = arith.addf %334, %333 : vector<8x32xf32>
    %336 = arith.divf %334, %335 : vector<8x32xf32>
    %337 = vector.extract_strided_slice %327 {offsets = [0, 32], sizes = [8, 32], strides = [1, 1]} : vector<8x96xf32> to vector<8x32xf32>
    %338 = vector.extract_strided_slice %328 {offsets = [0, 32], sizes = [8, 32], strides = [1, 1]} : vector<8x96xf32> to vector<8x32xf32>
    %339 = arith.addf %337, %338 : vector<8x32xf32>
    %340 = arith.negf %339 : vector<8x32xf32>
    %341 = math.exp %340 : vector<8x32xf32>
    %cst_99 = arith.constant 1.000000e+00 : f32
    %342 = vector.broadcast %cst_99 : f32 to vector<8x32xf32>
    %343 = arith.addf %342, %341 : vector<8x32xf32>
    %344 = arith.divf %342, %343 : vector<8x32xf32>
    %345 = vector.extract_strided_slice %327 {offsets = [0, 64], sizes = [8, 32], strides = [1, 1]} : vector<8x96xf32> to vector<8x32xf32>
    %346 = vector.extract_strided_slice %328 {offsets = [0, 64], sizes = [8, 32], strides = [1, 1]} : vector<8x96xf32> to vector<8x32xf32>
    %347 = arith.addf %346, %290 : vector<8x32xf32>
    %348 = arith.mulf %336, %347 : vector<8x32xf32>
    %349 = arith.addf %345, %348 : vector<8x32xf32>
    %350 = math.tanh %349 : vector<8x32xf32>
    %351 = arith.subf %320, %350 : vector<8x32xf32>
    %352 = arith.mulf %344, %351 : vector<8x32xf32>
    %353 = arith.addf %350, %352 : vector<8x32xf32>
    %354 = arith.index_cast %c1_i32_94 : i32 to index
    %c0_100 = arith.constant 0 : index
    %c0_101 = arith.constant 0 : index
    %355 = vector.load %arg21[%354, %c0_100, %c0_101] : memref<8x8x32xf32, #tpu.memory_space<vmem>>, vector<1x8x32xf32>
    %356 = vector.shape_cast %355 : vector<1x8x32xf32> to vector<8x32xf32>
    %357 = vector.shape_cast %353 : vector<8x32xf32> to vector<1x8x32xf32>
    tpu.vector_store %arg21[%354, %c0_100, %c0_101], %357 {strides = array<i32>} : memref<8x8x32xf32, #tpu.memory_space<vmem>>, vector<1x8x32xf32>,
    %c2_i32_102 = arith.constant 2 : i32
    %358 = arith.index_cast %c2_i32_102 : i32 to index
    %c0_103 = arith.constant 0 : index
    %c0_104 = arith.constant 0 : index
    %359 = vector.load %arg20[%358, %c0_103, %c0_104] : memref<8x8x96xf32, #tpu.memory_space<vmem>>, vector<1x8x96xf32>
    %360 = vector.shape_cast %359 : vector<1x8x96xf32> to vector<8x96xf32>
    %cst_105 = arith.constant dense<0.000000e+00> : vector<8x96xf32>
    %361 = tpu.matmul %353, %287, %cst_105 {dimension_numbers = #tpu.dot_dimension_numbers<[1], [0], [0], [1], [0, 0, 1, 1], [], []>} : vector<8x32xf32>, vector<32x96xf32>, vector<8x96xf32> -> vector<8x96xf32>
    %362 = vector.extract_strided_slice %360 {offsets = [0, 0], sizes = [8, 32], strides = [1, 1]} : vector<8x96xf32> to vector<8x32xf32>
    %363 = vector.extract_strided_slice %361 {offsets = [0, 0], sizes = [8, 32], strides = [1, 1]} : vector<8x96xf32> to vector<8x32xf32>
    %364 = arith.addf %362, %363 : vector<8x32xf32>
    %365 = arith.negf %364 : vector<8x32xf32>
    %366 = math.exp %365 : vector<8x32xf32>
    %cst_106 = arith.constant 1.000000e+00 : f32
    %367 = vector.broadcast %cst_106 : f32 to vector<8x32xf32>
    %368 = arith.addf %367, %366 : vector<8x32xf32>
    %369 = arith.divf %367, %368 : vector<8x32xf32>
    %370 = vector.extract_strided_slice %360 {offsets = [0, 32], sizes = [8, 32], strides = [1, 1]} : vector<8x96xf32> to vector<8x32xf32>
    %371 = vector.extract_strided_slice %361 {offsets = [0, 32], sizes = [8, 32], strides = [1, 1]} : vector<8x96xf32> to vector<8x32xf32>
    %372 = arith.addf %370, %371 : vector<8x32xf32>
    %373 = arith.negf %372 : vector<8x32xf32>
    %374 = math.exp %373 : vector<8x32xf32>
    %cst_107 = arith.constant 1.000000e+00 : f32
    %375 = vector.broadcast %cst_107 : f32 to vector<8x32xf32>
    %376 = arith.addf %375, %374 : vector<8x32xf32>
    %377 = arith.divf %375, %376 : vector<8x32xf32>
    %378 = vector.extract_strided_slice %360 {offsets = [0, 64], sizes = [8, 32], strides = [1, 1]} : vector<8x96xf32> to vector<8x32xf32>
    %379 = vector.extract_strided_slice %361 {offsets = [0, 64], sizes = [8, 32], strides = [1, 1]} : vector<8x96xf32> to vector<8x32xf32>
    %380 = arith.addf %379, %290 : vector<8x32xf32>
    %381 = arith.mulf %369, %380 : vector<8x32xf32>
    %382 = arith.addf %378, %381 : vector<8x32xf32>
    %383 = math.tanh %382 : vector<8x32xf32>
    %384 = arith.subf %353, %383 : vector<8x32xf32>
    %385 = arith.mulf %377, %384 : vector<8x32xf32>
    %386 = arith.addf %383, %385 : vector<8x32xf32>
    %387 = arith.index_cast %c2_i32_102 : i32 to index
    %c0_108 = arith.constant 0 : index
    %c0_109 = arith.constant 0 : index
    %388 = vector.load %arg21[%387, %c0_108, %c0_109] : memref<8x8x32xf32, #tpu.memory_space<vmem>>, vector<1x8x32xf32>
    %389 = vector.shape_cast %388 : vector<1x8x32xf32> to vector<8x32xf32>
    %390 = vector.shape_cast %386 : vector<8x32xf32> to vector<1x8x32xf32>
    tpu.vector_store %arg21[%387, %c0_108, %c0_109], %390 {strides = array<i32>} : memref<8x8x32xf32, #tpu.memory_space<vmem>>, vector<1x8x32xf32>,
    %c3_i32_110 = arith.constant 3 : i32
    %391 = arith.index_cast %c3_i32_110 : i32 to index
    %c0_111 = arith.constant 0 : index
    %c0_112 = arith.constant 0 : index
    %392 = vector.load %arg20[%391, %c0_111, %c0_112] : memref<8x8x96xf32, #tpu.memory_space<vmem>>, vector<1x8x96xf32>
    %393 = vector.shape_cast %392 : vector<1x8x96xf32> to vector<8x96xf32>
    %cst_113 = arith.constant dense<0.000000e+00> : vector<8x96xf32>
    %394 = tpu.matmul %386, %287, %cst_113 {dimension_numbers = #tpu.dot_dimension_numbers<[1], [0], [0], [1], [0, 0, 1, 1], [], []>} : vector<8x32xf32>, vector<32x96xf32>, vector<8x96xf32> -> vector<8x96xf32>
    %395 = vector.extract_strided_slice %393 {offsets = [0, 0], sizes = [8, 32], strides = [1, 1]} : vector<8x96xf32> to vector<8x32xf32>
    %396 = vector.extract_strided_slice %394 {offsets = [0, 0], sizes = [8, 32], strides = [1, 1]} : vector<8x96xf32> to vector<8x32xf32>
    %397 = arith.addf %395, %396 : vector<8x32xf32>
    %398 = arith.negf %397 : vector<8x32xf32>
    %399 = math.exp %398 : vector<8x32xf32>
    %cst_114 = arith.constant 1.000000e+00 : f32
    %400 = vector.broadcast %cst_114 : f32 to vector<8x32xf32>
    %401 = arith.addf %400, %399 : vector<8x32xf32>
    %402 = arith.divf %400, %401 : vector<8x32xf32>
    %403 = vector.extract_strided_slice %393 {offsets = [0, 32], sizes = [8, 32], strides = [1, 1]} : vector<8x96xf32> to vector<8x32xf32>
    %404 = vector.extract_strided_slice %394 {offsets = [0, 32], sizes = [8, 32], strides = [1, 1]} : vector<8x96xf32> to vector<8x32xf32>
    %405 = arith.addf %403, %404 : vector<8x32xf32>
    %406 = arith.negf %405 : vector<8x32xf32>
    %407 = math.exp %406 : vector<8x32xf32>
    %cst_115 = arith.constant 1.000000e+00 : f32
    %408 = vector.broadcast %cst_115 : f32 to vector<8x32xf32>
    %409 = arith.addf %408, %407 : vector<8x32xf32>
    %410 = arith.divf %408, %409 : vector<8x32xf32>
    %411 = vector.extract_strided_slice %393 {offsets = [0, 64], sizes = [8, 32], strides = [1, 1]} : vector<8x96xf32> to vector<8x32xf32>
    %412 = vector.extract_strided_slice %394 {offsets = [0, 64], sizes = [8, 32], strides = [1, 1]} : vector<8x96xf32> to vector<8x32xf32>
    %413 = arith.addf %412, %290 : vector<8x32xf32>
    %414 = arith.mulf %402, %413 : vector<8x32xf32>
    %415 = arith.addf %411, %414 : vector<8x32xf32>
    %416 = math.tanh %415 : vector<8x32xf32>
    %417 = arith.subf %386, %416 : vector<8x32xf32>
    %418 = arith.mulf %410, %417 : vector<8x32xf32>
    %419 = arith.addf %416, %418 : vector<8x32xf32>
    %420 = arith.index_cast %c3_i32_110 : i32 to index
    %c0_116 = arith.constant 0 : index
    %c0_117 = arith.constant 0 : index
    %421 = vector.load %arg21[%420, %c0_116, %c0_117] : memref<8x8x32xf32, #tpu.memory_space<vmem>>, vector<1x8x32xf32>
    %422 = vector.shape_cast %421 : vector<1x8x32xf32> to vector<8x32xf32>
    %423 = vector.shape_cast %419 : vector<8x32xf32> to vector<1x8x32xf32>
    tpu.vector_store %arg21[%420, %c0_116, %c0_117], %423 {strides = array<i32>} : memref<8x8x32xf32, #tpu.memory_space<vmem>>, vector<1x8x32xf32>,
    %c4_i32_118 = arith.constant 4 : i32
    %424 = arith.index_cast %c4_i32_118 : i32 to index
    %c0_119 = arith.constant 0 : index
    %c0_120 = arith.constant 0 : index
    %425 = vector.load %arg20[%424, %c0_119, %c0_120] : memref<8x8x96xf32, #tpu.memory_space<vmem>>, vector<1x8x96xf32>
    %426 = vector.shape_cast %425 : vector<1x8x96xf32> to vector<8x96xf32>
    %cst_121 = arith.constant dense<0.000000e+00> : vector<8x96xf32>
    %427 = tpu.matmul %419, %287, %cst_121 {dimension_numbers = #tpu.dot_dimension_numbers<[1], [0], [0], [1], [0, 0, 1, 1], [], []>} : vector<8x32xf32>, vector<32x96xf32>, vector<8x96xf32> -> vector<8x96xf32>
    %428 = vector.extract_strided_slice %426 {offsets = [0, 0], sizes = [8, 32], strides = [1, 1]} : vector<8x96xf32> to vector<8x32xf32>
    %429 = vector.extract_strided_slice %427 {offsets = [0, 0], sizes = [8, 32], strides = [1, 1]} : vector<8x96xf32> to vector<8x32xf32>
    %430 = arith.addf %428, %429 : vector<8x32xf32>
    %431 = arith.negf %430 : vector<8x32xf32>
    %432 = math.exp %431 : vector<8x32xf32>
    %cst_122 = arith.constant 1.000000e+00 : f32
    %433 = vector.broadcast %cst_122 : f32 to vector<8x32xf32>
    %434 = arith.addf %433, %432 : vector<8x32xf32>
    %435 = arith.divf %433, %434 : vector<8x32xf32>
    %436 = vector.extract_strided_slice %426 {offsets = [0, 32], sizes = [8, 32], strides = [1, 1]} : vector<8x96xf32> to vector<8x32xf32>
    %437 = vector.extract_strided_slice %427 {offsets = [0, 32], sizes = [8, 32], strides = [1, 1]} : vector<8x96xf32> to vector<8x32xf32>
    %438 = arith.addf %436, %437 : vector<8x32xf32>
    %439 = arith.negf %438 : vector<8x32xf32>
    %440 = math.exp %439 : vector<8x32xf32>
    %cst_123 = arith.constant 1.000000e+00 : f32
    %441 = vector.broadcast %cst_123 : f32 to vector<8x32xf32>
    %442 = arith.addf %441, %440 : vector<8x32xf32>
    %443 = arith.divf %441, %442 : vector<8x32xf32>
    %444 = vector.extract_strided_slice %426 {offsets = [0, 64], sizes = [8, 32], strides = [1, 1]} : vector<8x96xf32> to vector<8x32xf32>
    %445 = vector.extract_strided_slice %427 {offsets = [0, 64], sizes = [8, 32], strides = [1, 1]} : vector<8x96xf32> to vector<8x32xf32>
    %446 = arith.addf %445, %290 : vector<8x32xf32>
    %447 = arith.mulf %435, %446 : vector<8x32xf32>
    %448 = arith.addf %444, %447 : vector<8x32xf32>
    %449 = math.tanh %448 : vector<8x32xf32>
    %450 = arith.subf %419, %449 : vector<8x32xf32>
    %451 = arith.mulf %443, %450 : vector<8x32xf32>
    %452 = arith.addf %449, %451 : vector<8x32xf32>
    %453 = arith.index_cast %c4_i32_118 : i32 to index
    %c0_124 = arith.constant 0 : index
    %c0_125 = arith.constant 0 : index
    %454 = vector.load %arg21[%453, %c0_124, %c0_125] : memref<8x8x32xf32, #tpu.memory_space<vmem>>, vector<1x8x32xf32>
    %455 = vector.shape_cast %454 : vector<1x8x32xf32> to vector<8x32xf32>
    %456 = vector.shape_cast %452 : vector<8x32xf32> to vector<1x8x32xf32>
    tpu.vector_store %arg21[%453, %c0_124, %c0_125], %456 {strides = array<i32>} : memref<8x8x32xf32, #tpu.memory_space<vmem>>, vector<1x8x32xf32>,
    %c5_i32_126 = arith.constant 5 : i32
    %457 = arith.index_cast %c5_i32_126 : i32 to index
    %c0_127 = arith.constant 0 : index
    %c0_128 = arith.constant 0 : index
    %458 = vector.load %arg20[%457, %c0_127, %c0_128] : memref<8x8x96xf32, #tpu.memory_space<vmem>>, vector<1x8x96xf32>
    %459 = vector.shape_cast %458 : vector<1x8x96xf32> to vector<8x96xf32>
    %cst_129 = arith.constant dense<0.000000e+00> : vector<8x96xf32>
    %460 = tpu.matmul %452, %287, %cst_129 {dimension_numbers = #tpu.dot_dimension_numbers<[1], [0], [0], [1], [0, 0, 1, 1], [], []>} : vector<8x32xf32>, vector<32x96xf32>, vector<8x96xf32> -> vector<8x96xf32>
    %461 = vector.extract_strided_slice %459 {offsets = [0, 0], sizes = [8, 32], strides = [1, 1]} : vector<8x96xf32> to vector<8x32xf32>
    %462 = vector.extract_strided_slice %460 {offsets = [0, 0], sizes = [8, 32], strides = [1, 1]} : vector<8x96xf32> to vector<8x32xf32>
    %463 = arith.addf %461, %462 : vector<8x32xf32>
    %464 = arith.negf %463 : vector<8x32xf32>
    %465 = math.exp %464 : vector<8x32xf32>
    %cst_130 = arith.constant 1.000000e+00 : f32
    %466 = vector.broadcast %cst_130 : f32 to vector<8x32xf32>
    %467 = arith.addf %466, %465 : vector<8x32xf32>
    %468 = arith.divf %466, %467 : vector<8x32xf32>
    %469 = vector.extract_strided_slice %459 {offsets = [0, 32], sizes = [8, 32], strides = [1, 1]} : vector<8x96xf32> to vector<8x32xf32>
    %470 = vector.extract_strided_slice %460 {offsets = [0, 32], sizes = [8, 32], strides = [1, 1]} : vector<8x96xf32> to vector<8x32xf32>
    %471 = arith.addf %469, %470 : vector<8x32xf32>
    %472 = arith.negf %471 : vector<8x32xf32>
    %473 = math.exp %472 : vector<8x32xf32>
    %cst_131 = arith.constant 1.000000e+00 : f32
    %474 = vector.broadcast %cst_131 : f32 to vector<8x32xf32>
    %475 = arith.addf %474, %473 : vector<8x32xf32>
    %476 = arith.divf %474, %475 : vector<8x32xf32>
    %477 = vector.extract_strided_slice %459 {offsets = [0, 64], sizes = [8, 32], strides = [1, 1]} : vector<8x96xf32> to vector<8x32xf32>
    %478 = vector.extract_strided_slice %460 {offsets = [0, 64], sizes = [8, 32], strides = [1, 1]} : vector<8x96xf32> to vector<8x32xf32>
    %479 = arith.addf %478, %290 : vector<8x32xf32>
    %480 = arith.mulf %468, %479 : vector<8x32xf32>
    %481 = arith.addf %477, %480 : vector<8x32xf32>
    %482 = math.tanh %481 : vector<8x32xf32>
    %483 = arith.subf %452, %482 : vector<8x32xf32>
    %484 = arith.mulf %476, %483 : vector<8x32xf32>
    %485 = arith.addf %482, %484 : vector<8x32xf32>
    %486 = arith.index_cast %c5_i32_126 : i32 to index
    %c0_132 = arith.constant 0 : index
    %c0_133 = arith.constant 0 : index
    %487 = vector.load %arg21[%486, %c0_132, %c0_133] : memref<8x8x32xf32, #tpu.memory_space<vmem>>, vector<1x8x32xf32>
    %488 = vector.shape_cast %487 : vector<1x8x32xf32> to vector<8x32xf32>
    %489 = vector.shape_cast %485 : vector<8x32xf32> to vector<1x8x32xf32>
    tpu.vector_store %arg21[%486, %c0_132, %c0_133], %489 {strides = array<i32>} : memref<8x8x32xf32, #tpu.memory_space<vmem>>, vector<1x8x32xf32>,
    %c6_i32_134 = arith.constant 6 : i32
    %490 = arith.index_cast %c6_i32_134 : i32 to index
    %c0_135 = arith.constant 0 : index
    %c0_136 = arith.constant 0 : index
    %491 = vector.load %arg20[%490, %c0_135, %c0_136] : memref<8x8x96xf32, #tpu.memory_space<vmem>>, vector<1x8x96xf32>
    %492 = vector.shape_cast %491 : vector<1x8x96xf32> to vector<8x96xf32>
    %cst_137 = arith.constant dense<0.000000e+00> : vector<8x96xf32>
    %493 = tpu.matmul %485, %287, %cst_137 {dimension_numbers = #tpu.dot_dimension_numbers<[1], [0], [0], [1], [0, 0, 1, 1], [], []>} : vector<8x32xf32>, vector<32x96xf32>, vector<8x96xf32> -> vector<8x96xf32>
    %494 = vector.extract_strided_slice %492 {offsets = [0, 0], sizes = [8, 32], strides = [1, 1]} : vector<8x96xf32> to vector<8x32xf32>
    %495 = vector.extract_strided_slice %493 {offsets = [0, 0], sizes = [8, 32], strides = [1, 1]} : vector<8x96xf32> to vector<8x32xf32>
    %496 = arith.addf %494, %495 : vector<8x32xf32>
    %497 = arith.negf %496 : vector<8x32xf32>
    %498 = math.exp %497 : vector<8x32xf32>
    %cst_138 = arith.constant 1.000000e+00 : f32
    %499 = vector.broadcast %cst_138 : f32 to vector<8x32xf32>
    %500 = arith.addf %499, %498 : vector<8x32xf32>
    %501 = arith.divf %499, %500 : vector<8x32xf32>
    %502 = vector.extract_strided_slice %492 {offsets = [0, 32], sizes = [8, 32], strides = [1, 1]} : vector<8x96xf32> to vector<8x32xf32>
    %503 = vector.extract_strided_slice %493 {offsets = [0, 32], sizes = [8, 32], strides = [1, 1]} : vector<8x96xf32> to vector<8x32xf32>
    %504 = arith.addf %502, %503 : vector<8x32xf32>
    %505 = arith.negf %504 : vector<8x32xf32>
    %506 = math.exp %505 : vector<8x32xf32>
    %cst_139 = arith.constant 1.000000e+00 : f32
    %507 = vector.broadcast %cst_139 : f32 to vector<8x32xf32>
    %508 = arith.addf %507, %506 : vector<8x32xf32>
    %509 = arith.divf %507, %508 : vector<8x32xf32>
    %510 = vector.extract_strided_slice %492 {offsets = [0, 64], sizes = [8, 32], strides = [1, 1]} : vector<8x96xf32> to vector<8x32xf32>
    %511 = vector.extract_strided_slice %493 {offsets = [0, 64], sizes = [8, 32], strides = [1, 1]} : vector<8x96xf32> to vector<8x32xf32>
    %512 = arith.addf %511, %290 : vector<8x32xf32>
    %513 = arith.mulf %501, %512 : vector<8x32xf32>
    %514 = arith.addf %510, %513 : vector<8x32xf32>
    %515 = math.tanh %514 : vector<8x32xf32>
    %516 = arith.subf %485, %515 : vector<8x32xf32>
    %517 = arith.mulf %509, %516 : vector<8x32xf32>
    %518 = arith.addf %515, %517 : vector<8x32xf32>
    %519 = arith.index_cast %c6_i32_134 : i32 to index
    %c0_140 = arith.constant 0 : index
    %c0_141 = arith.constant 0 : index
    %520 = vector.load %arg21[%519, %c0_140, %c0_141] : memref<8x8x32xf32, #tpu.memory_space<vmem>>, vector<1x8x32xf32>
    %521 = vector.shape_cast %520 : vector<1x8x32xf32> to vector<8x32xf32>
    %522 = vector.shape_cast %518 : vector<8x32xf32> to vector<1x8x32xf32>
    tpu.vector_store %arg21[%519, %c0_140, %c0_141], %522 {strides = array<i32>} : memref<8x8x32xf32, #tpu.memory_space<vmem>>, vector<1x8x32xf32>,
    %c7_i32_142 = arith.constant 7 : i32
    %523 = arith.index_cast %c7_i32_142 : i32 to index
    %c0_143 = arith.constant 0 : index
    %c0_144 = arith.constant 0 : index
    %524 = vector.load %arg20[%523, %c0_143, %c0_144] : memref<8x8x96xf32, #tpu.memory_space<vmem>>, vector<1x8x96xf32>
    %525 = vector.shape_cast %524 : vector<1x8x96xf32> to vector<8x96xf32>
    %cst_145 = arith.constant dense<0.000000e+00> : vector<8x96xf32>
    %526 = tpu.matmul %518, %287, %cst_145 {dimension_numbers = #tpu.dot_dimension_numbers<[1], [0], [0], [1], [0, 0, 1, 1], [], []>} : vector<8x32xf32>, vector<32x96xf32>, vector<8x96xf32> -> vector<8x96xf32>
    %527 = vector.extract_strided_slice %525 {offsets = [0, 0], sizes = [8, 32], strides = [1, 1]} : vector<8x96xf32> to vector<8x32xf32>
    %528 = vector.extract_strided_slice %526 {offsets = [0, 0], sizes = [8, 32], strides = [1, 1]} : vector<8x96xf32> to vector<8x32xf32>
    %529 = arith.addf %527, %528 : vector<8x32xf32>
    %530 = arith.negf %529 : vector<8x32xf32>
    %531 = math.exp %530 : vector<8x32xf32>
    %cst_146 = arith.constant 1.000000e+00 : f32
    %532 = vector.broadcast %cst_146 : f32 to vector<8x32xf32>
    %533 = arith.addf %532, %531 : vector<8x32xf32>
    %534 = arith.divf %532, %533 : vector<8x32xf32>
    %535 = vector.extract_strided_slice %525 {offsets = [0, 32], sizes = [8, 32], strides = [1, 1]} : vector<8x96xf32> to vector<8x32xf32>
    %536 = vector.extract_strided_slice %526 {offsets = [0, 32], sizes = [8, 32], strides = [1, 1]} : vector<8x96xf32> to vector<8x32xf32>
    %537 = arith.addf %535, %536 : vector<8x32xf32>
    %538 = arith.negf %537 : vector<8x32xf32>
    %539 = math.exp %538 : vector<8x32xf32>
    %cst_147 = arith.constant 1.000000e+00 : f32
    %540 = vector.broadcast %cst_147 : f32 to vector<8x32xf32>
    %541 = arith.addf %540, %539 : vector<8x32xf32>
    %542 = arith.divf %540, %541 : vector<8x32xf32>
    %543 = vector.extract_strided_slice %525 {offsets = [0, 64], sizes = [8, 32], strides = [1, 1]} : vector<8x96xf32> to vector<8x32xf32>
    %544 = vector.extract_strided_slice %526 {offsets = [0, 64], sizes = [8, 32], strides = [1, 1]} : vector<8x96xf32> to vector<8x32xf32>
    %545 = arith.addf %544, %290 : vector<8x32xf32>
    %546 = arith.mulf %534, %545 : vector<8x32xf32>
    %547 = arith.addf %543, %546 : vector<8x32xf32>
    %548 = math.tanh %547 : vector<8x32xf32>
    %549 = arith.subf %518, %548 : vector<8x32xf32>
    %550 = arith.mulf %542, %549 : vector<8x32xf32>
    %551 = arith.addf %548, %550 : vector<8x32xf32>
    %552 = arith.index_cast %c7_i32_142 : i32 to index
    %c0_148 = arith.constant 0 : index
    %c0_149 = arith.constant 0 : index
    %553 = vector.load %arg21[%552, %c0_148, %c0_149] : memref<8x8x32xf32, #tpu.memory_space<vmem>>, vector<1x8x32xf32>
    %554 = vector.shape_cast %553 : vector<1x8x32xf32> to vector<8x32xf32>
    %555 = vector.shape_cast %551 : vector<8x32xf32> to vector<1x8x32xf32>
    tpu.vector_store %arg21[%552, %c0_148, %c0_149], %555 {strides = array<i32>} : memref<8x8x32xf32, #tpu.memory_space<vmem>>, vector<1x8x32xf32>,
    %c8_i32_150 = arith.constant 8 : i32
    %c0_151 = arith.constant 0 : index
    %c0_152 = arith.constant 0 : index
    %556 = vector.load %arg10[%c0_151, %c0_152] : memref<32x32xf32, #tpu.memory_space<vmem>>, vector<32x32xf32>
    %cst_153 = arith.constant dense<0.000000e+00> : vector<8x32xf32>
    %557 = tpu.matmul %551, %556, %cst_153 {dimension_numbers = #tpu.dot_dimension_numbers<[1], [0], [0], [1], [0, 0, 1, 1], [], []>} : vector<8x32xf32>, vector<32x32xf32>, vector<8x32xf32> -> vector<8x32xf32>
    %c0_154 = arith.constant 0 : index
    %c0_155 = arith.constant 0 : index
    %558 = vector.load %arg15[%c0_154, %c0_155] : memref<1x32xf32, #tpu.memory_space<vmem>>, vector<1x32xf32>
    %559 = vector.broadcast %558 : vector<1x32xf32> to vector<8x32xf32>
    %560 = arith.addf %557, %559 : vector<8x32xf32>
    %c0_156 = arith.constant 0 : index
    %c0_157 = arith.constant 0 : index
    %561 = vector.load %arg11[%c0_156, %c0_157] : memref<32x32xf32, #tpu.memory_space<vmem>>, vector<32x32xf32>
    %cst_158 = arith.constant dense<0.000000e+00> : vector<8x32xf32>
    %562 = tpu.matmul %560, %561, %cst_158 {dimension_numbers = #tpu.dot_dimension_numbers<[1], [0], [0], [1], [0, 0, 1, 1], [], []>} : vector<8x32xf32>, vector<32x32xf32>, vector<8x32xf32> -> vector<8x32xf32>
    %cst_159 = arith.constant 0.176776692 : f32
    %563 = vector.broadcast %cst_159 : f32 to vector<8x32xf32>
    %564 = arith.mulf %562, %563 : vector<8x32xf32>
    %c0_160 = arith.constant 0 : index
    %c0_161 = arith.constant 0 : index
    %c0_162 = arith.constant 0 : index
    %565 = vector.load %arg21[%c0_160, %c0_161, %c0_162] : memref<8x8x32xf32, #tpu.memory_space<vmem>>, vector<8x8x32xf32>
    %566 = vector.shape_cast %564 : vector<8x32xf32> to vector<1x8x32xf32>
    %567 = vector.broadcast %566 : vector<1x8x32xf32> to vector<8x8x32xf32>
    %568 = arith.mulf %565, %567 : vector<8x8x32xf32>
    %cst_163 = arith.constant dense<0.000000e+00> : vector<8x8xf32>
    %569 = vector.multi_reduction <add>, %568, %cst_163 [2] : vector<8x8x32xf32> to vector<8x8xf32>
    %570 = vector.shape_cast %569 : vector<8x8xf32> to vector<8x8x1xf32>
    %cst_164 = arith.constant dense<0xFF800000> : vector<8x1xf32>
    %571 = vector.multi_reduction <maximumf>, %570, %cst_164 [0] : vector<8x8x1xf32> to vector<8x1xf32>
    %572 = vector.shape_cast %571 : vector<8x1xf32> to vector<1x8x1xf32>
    %573 = vector.broadcast %572 : vector<1x8x1xf32> to vector<8x8x1xf32>
    %574 = arith.subf %570, %573 : vector<8x8x1xf32>
    %575 = math.exp %574 : vector<8x8x1xf32>
    %cst_165 = arith.constant dense<0.000000e+00> : vector<8x1xf32>
    %576 = vector.multi_reduction <add>, %575, %cst_165 [0] : vector<8x8x1xf32> to vector<8x1xf32>
    %577 = vector.shape_cast %576 : vector<8x1xf32> to vector<1x8x1xf32>
    %578 = tpu.reciprocal %577 {approx = true} : vector<1x8x1xf32> -> vector<1x8x1xf32>
    %579 = vector.broadcast %578 : vector<1x8x1xf32> to vector<8x8x1xf32>
    %580 = arith.mulf %575, %579 : vector<8x8x1xf32>
    %581 = vector.broadcast %580 : vector<8x8x1xf32> to vector<8x8x32xf32>
    %582 = arith.mulf %581, %565 : vector<8x8x32xf32>
    %cst_166 = arith.constant dense<0.000000e+00> : vector<8x32xf32>
    %583 = vector.multi_reduction <add>, %582, %cst_166 [0] : vector<8x8x32xf32> to vector<8x32xf32>
    %c0_167 = arith.constant 0 : index
    %c0_168 = arith.constant 0 : index
    %584 = vector.load %arg12[%c0_167, %c0_168] : memref<32x32xf32, #tpu.memory_space<vmem>>, vector<32x32xf32>
    %cst_169 = arith.constant dense<0.000000e+00> : vector<8x32xf32>
    %585 = tpu.matmul %583, %584, %cst_169 {dimension_numbers = #tpu.dot_dimension_numbers<[1], [0], [0], [1], [0, 0, 1, 1], [], []>} : vector<8x32xf32>, vector<32x32xf32>, vector<8x32xf32> -> vector<8x32xf32>
    %c0_170 = arith.constant 0 : index
    %c0_171 = arith.constant 0 : index
    %586 = vector.load %arg16[%c0_170, %c0_171] : memref<1x32xf32, #tpu.memory_space<vmem>>, vector<1x32xf32>
    %587 = vector.broadcast %586 : vector<1x32xf32> to vector<8x32xf32>
    %588 = arith.addf %585, %587 : vector<8x32xf32>
    %c0_172 = arith.constant 0 : index
    %c0_173 = arith.constant 0 : index
    %589 = vector.load %arg13[%c0_172, %c0_173] : memref<32x32xf32, #tpu.memory_space<vmem>>, vector<32x32xf32>
    %cst_174 = arith.constant dense<0.000000e+00> : vector<8x32xf32>
    %590 = tpu.matmul %588, %589, %cst_174 {dimension_numbers = #tpu.dot_dimension_numbers<[1], [0], [0], [1], [0, 0, 1, 1], [], []>} : vector<8x32xf32>, vector<32x32xf32>, vector<8x32xf32> -> vector<8x32xf32>
    %c0_175 = arith.constant 0 : index
    %c0_176 = arith.constant 0 : index
    %591 = vector.load %arg17[%c0_175, %c0_176] : memref<1x32xf32, #tpu.memory_space<vmem>>, vector<1x32xf32>
    %592 = vector.broadcast %591 : vector<1x32xf32> to vector<8x32xf32>
    %593 = arith.addf %590, %592 : vector<8x32xf32>
    %c0_177 = arith.constant 0 : index
    %c0_178 = arith.constant 0 : index
    %594 = vector.load %arg14[%c0_177, %c0_178] : memref<32x4xf32, #tpu.memory_space<vmem>>, vector<32x4xf32>
    %cst_179 = arith.constant dense<0.000000e+00> : vector<8x4xf32>
    %595 = tpu.matmul %593, %594, %cst_179 {dimension_numbers = #tpu.dot_dimension_numbers<[1], [0], [0], [1], [0, 0, 1, 1], [], []>} : vector<8x32xf32>, vector<32x4xf32>, vector<8x4xf32> -> vector<8x4xf32>
    %c0_180 = arith.constant 0 : index
    %c0_181 = arith.constant 0 : index
    %596 = vector.load %arg18[%c0_180, %c0_181] : memref<1x4xf32, #tpu.memory_space<vmem>>, vector<1x4xf32>
    %597 = vector.broadcast %596 : vector<1x4xf32> to vector<8x4xf32>
    %598 = arith.addf %595, %597 : vector<8x4xf32>
    %c0_182 = arith.constant 0 : index
    %c0_183 = arith.constant 0 : index
    %599 = vector.load %arg19[%c0_182, %c0_183] : memref<8x4xf32, #tpu.memory_space<vmem>>, vector<8x4xf32>
    tpu.vector_store %arg19[%c0_182, %c0_183], %598 {strides = array<i32>} : memref<8x4xf32, #tpu.memory_space<vmem>>, vector<8x4xf32>,
    return
  }
  func.func @transform_0(%arg0: i32) -> (i32, i32, i32) {
    %c0_i32 = arith.constant 0 : i32
    %c0_i32_0 = arith.constant 0 : i32
    %c0_i32_1 = arith.constant 0 : i32
    return %c0_i32, %arg0, %c0_i32_0 : i32, i32, i32
  }
  func.func @transform_1(%arg0: i32) -> (i32, i32) {
    %c0_i32 = arith.constant 0 : i32
    %c0_i32_0 = arith.constant 0 : i32
    %c0_i32_1 = arith.constant 0 : i32
    return %c0_i32, %c0_i32_0 : i32, i32
  }
  func.func @transform_2(%arg0: i32) -> (i32, i32) {
    %c0_i32 = arith.constant 0 : i32
    %c0_i32_0 = arith.constant 0 : i32
    %c0_i32_1 = arith.constant 0 : i32
    return %c0_i32, %c0_i32_0 : i32, i32
  }
  func.func @transform_3(%arg0: i32) -> (i32, i32) {
    %c0_i32 = arith.constant 0 : i32
    %c0_i32_0 = arith.constant 0 : i32
    %c0_i32_1 = arith.constant 0 : i32
    return %c0_i32, %c0_i32_0 : i32, i32
  }
  func.func @transform_4(%arg0: i32) -> (i32, i32) {
    %c0_i32 = arith.constant 0 : i32
    %c0_i32_0 = arith.constant 0 : i32
    %c0_i32_1 = arith.constant 0 : i32
    return %c0_i32, %c0_i32_0 : i32, i32
  }
  func.func @transform_5(%arg0: i32) -> (i32, i32) {
    %c0_i32 = arith.constant 0 : i32
    %c0_i32_0 = arith.constant 0 : i32
    %c0_i32_1 = arith.constant 0 : i32
    return %c0_i32, %c0_i32_0 : i32, i32
  }
  func.func @transform_6(%arg0: i32) -> (i32, i32) {
    %c0_i32 = arith.constant 0 : i32
    %c0_i32_0 = arith.constant 0 : i32
    %c0_i32_1 = arith.constant 0 : i32
    return %c0_i32, %c0_i32_0 : i32, i32
  }
  func.func @transform_7(%arg0: i32) -> (i32, i32) {
    %c0_i32 = arith.constant 0 : i32
    %c0_i32_0 = arith.constant 0 : i32
    %c0_i32_1 = arith.constant 0 : i32
    return %c0_i32, %c0_i32_0 : i32, i32
  }
  func.func @transform_8(%arg0: i32) -> (i32, i32) {
    %c0_i32 = arith.constant 0 : i32
    %c0_i32_0 = arith.constant 0 : i32
    %c0_i32_1 = arith.constant 0 : i32
    return %c0_i32, %c0_i32_0 : i32, i32
  }
  func.func @transform_9(%arg0: i32) -> (i32, i32) {
    %c0_i32 = arith.constant 0 : i32
    %c0_i32_0 = arith.constant 0 : i32
    %c0_i32_1 = arith.constant 0 : i32
    return %c0_i32, %c0_i32_0 : i32, i32
  }
  func.func @transform_10(%arg0: i32) -> (i32, i32) {
    %c0_i32 = arith.constant 0 : i32
    %c0_i32_0 = arith.constant 0 : i32
    %c0_i32_1 = arith.constant 0 : i32
    return %c0_i32, %c0_i32_0 : i32, i32
  }
  func.func @transform_11(%arg0: i32) -> (i32, i32) {
    %c0_i32 = arith.constant 0 : i32
    %c0_i32_0 = arith.constant 0 : i32
    %c0_i32_1 = arith.constant 0 : i32
    return %c0_i32, %c0_i32_0 : i32, i32
  }
  func.func @transform_12(%arg0: i32) -> (i32, i32) {
    %c0_i32 = arith.constant 0 : i32
    %c0_i32_0 = arith.constant 0 : i32
    %c0_i32_1 = arith.constant 0 : i32
    return %c0_i32, %c0_i32_0 : i32, i32
  }
  func.func @transform_13(%arg0: i32) -> (i32, i32) {
    %c0_i32 = arith.constant 0 : i32
    %c0_i32_0 = arith.constant 0 : i32
    %c0_i32_1 = arith.constant 0 : i32
    return %c0_i32, %c0_i32_0 : i32, i32
  }
  func.func @transform_14(%arg0: i32) -> (i32, i32) {
    %c0_i32 = arith.constant 0 : i32
    %c0_i32_0 = arith.constant 0 : i32
    %c0_i32_1 = arith.constant 0 : i32
    return %c0_i32, %c0_i32_0 : i32, i32
  }
  func.func @transform_15(%arg0: i32) -> (i32, i32) {
    %c0_i32 = arith.constant 0 : i32
    %c0_i32_0 = arith.constant 0 : i32
    %c0_i32_1 = arith.constant 0 : i32
    return %c0_i32, %c0_i32_0 : i32, i32
  }
  func.func @transform_16(%arg0: i32) -> (i32, i32) {
    %c0_i32 = arith.constant 0 : i32
    %c0_i32_0 = arith.constant 0 : i32
    %c0_i32_1 = arith.constant 0 : i32
    return %c0_i32, %c0_i32_0 : i32, i32
  }
  func.func @transform_17(%arg0: i32) -> (i32, i32) {
    %c0_i32 = arith.constant 0 : i32
    %c0_i32_0 = arith.constant 0 : i32
    %c0_i32_1 = arith.constant 0 : i32
    return %c0_i32, %c0_i32_0 : i32, i32
  }
  func.func @transform_18(%arg0: i32) -> (i32, i32) {
    %c0_i32 = arith.constant 0 : i32
    %c0_i32_0 = arith.constant 0 : i32
    return %arg0, %c0_i32 : i32, i32
  }
}

</mosaic_0001>

<llo_original>
// kernel: tpu_custom_call.1
$region0: #{tpu_custom_call.1}
  #allocation0 [shape = 'u32[]', space=smem, size = 0x4, offset = 0x4, fixed_abs, tag = 'smem constant byte address 0x4 - core index']
  #allocation1 [shape = 'u32[144,128]{1,0:T(1,128)}', space=vmem, size = 0x12000, scoped, tag = 'internal scratch']
  #allocation2 [shape = 'f32[8,8,96]{2,1,0:T(8,128)}', space=vmem, size = 0x8000, scoped, tag = 'scratch operand']
  #allocation3 [shape = 'f32[8,8,32]{2,1,0:T(8,128)}', space=vmem, size = 0x8000, scoped, tag = 'scratch operand']
  %s0 = inlined_call_operand.hbm [shape: f32[8,8,16], index: 0, kind: input, shape index: {}]
  %s1 = inlined_call_operand.hbm [shape: f32[16,96], index: 1, kind: input, shape index: {}]
  %s2 = inlined_call_operand.vmem [shape: f32[32,96], index: 2, kind: input, shape index: {}]
  %s3 = inlined_call_operand.vmem [shape: f32[1,96], index: 3, kind: input, shape index: {}]
  %s4 = inlined_call_operand.vmem [shape: f32[1,32], index: 4, kind: input, shape index: {}]
  %s5 = inlined_call_operand.hbm [shape: f32[32,96], index: 5, kind: input, shape index: {}]
  %s6 = inlined_call_operand.hbm [shape: f32[32,96], index: 6, kind: input, shape index: {}]
  %s7 = inlined_call_operand.hbm [shape: f32[1,96], index: 7, kind: input, shape index: {}]
  %s8 = inlined_call_operand.hbm [shape: f32[1,32], index: 8, kind: input, shape index: {}]
  %s9 = inlined_call_operand.vmem [shape: f32[32,32], index: 9, kind: input, shape index: {}]
  %s10 = inlined_call_operand.hbm [shape: f32[32,32], index: 10, kind: input, shape index: {}]
  %s11 = inlined_call_operand.hbm [shape: f32[32,32], index: 11, kind: input, shape index: {}]
  %s12 = inlined_call_operand.hbm [shape: f32[32,32], index: 12, kind: input, shape index: {}]
  %s13 = inlined_call_operand.vmem [shape: f32[32,4], index: 13, kind: input, shape index: {}]
  %s14 = inlined_call_operand.vmem [shape: f32[1,32], index: 14, kind: input, shape index: {}]
  %s15 = inlined_call_operand.vmem [shape: f32[1,32], index: 15, kind: input, shape index: {}]
  %s16 = inlined_call_operand.vmem [shape: f32[1,32], index: 16, kind: input, shape index: {}]
  %s17 = inlined_call_operand.vmem [shape: f32[1,4], index: 17, kind: input, shape index: {}]
  %s18 = inlined_call_operand.vmem [shape: f32[8,4], index: 18, kind: output, shape index: {}]
  %s19 = sld [smem:[#allocation0]]
  $region118: #{tpu_custom_call.1} parent=0
    _
  %s21 = ssub.s32 1, %s19
  %s22 = scalar_select 0, %s21, %s19
  $region1: #{tpu_custom_call.1} parent=0
    #allocation4 [shape = 'u8[32768]{0}', space=vmem, size = 0x8000, scoped, tag = 'input window, operand 0, single buffered']
    #allocation5 [shape = 's32[1]{0}', space=sflag, size = 0x4, scoped, tag = 'scoped memory for tpu_custom_call.1']
    #allocation6 [shape = 'u8[8192]{0}', space=vmem, size = 0x2000, scoped, tag = 'input window, operand 1, single buffered']
    #allocation7 [shape = 's32[1]{0}', space=sflag, size = 0x4, scoped, tag = 'scoped memory for tpu_custom_call.1']
    #allocation8 [shape = 'u8[16384]{0}', space=vmem, size = 0x4000, scoped, tag = 'input window, operand 5, single buffered']
    #allocation9 [shape = 'u8[16384]{0}', space=vmem, size = 0x4000, scoped, tag = 'input window, operand 6, single buffered']
    #allocation10 [shape = 's32[1]{0}', space=sflag, size = 0x4, scoped, tag = 'scoped memory for tpu_custom_call.1']
    #allocation11 [shape = 'u8[512]{0}', space=vmem, size = 0x400, scoped, tag = 'input window, operand 7, single buffered']
    #allocation12 [shape = 'u8[512]{0}', space=vmem, size = 0x400, scoped, tag = 'input window, operand 8, single buffered']
    #allocation13 [shape = 's32[1]{0}', space=sflag, size = 0x4, scoped, tag = 'scoped memory for tpu_custom_call.1']
    #allocation14 [shape = 'u8[16384]{0}', space=vmem, size = 0x4000, scoped, tag = 'input window, operand 10, single buffered']
    #allocation15 [shape = 'u8[16384]{0}', space=vmem, size = 0x4000, scoped, tag = 'input window, operand 11, single buffered']
    #allocation16 [shape = 's32[1]{0}', space=sflag, size = 0x4, scoped, tag = 'scoped memory for tpu_custom_call.1']
    #allocation17 [shape = 'u8[16384]{0}', space=vmem, size = 0x4000, scoped, tag = 'input window, operand 12, single buffered']
    %23 = vsyncpa [#allocation5], 0
    %24 = vsyncpa [#allocation7], 0
    %25 = vsyncpa [#allocation10], 0
    %26 = vsyncpa [#allocation13], 0
    %27 = vsyncpa [#allocation16], 0
    // Predicated region
    $region2: #{tpu_custom_call.1} parent=1 // pred_check
      _
    $region3: #{tpu_custom_call.1} parent=1 // pred_check_branch
      %29 = sbr.rel (0) target = $region5
    $region4: #{tpu_custom_call.1} parent=1 // pred_region
      %s31 = ssub.s32 1024, 1024
      %32 = vsyncadd [#allocation5], %s31
      %s33 = sshll.u32 [#allocation4], 4
      %s34 = int_to_ptr.vmem [resolvable:$true] %s33
      %39 = dma.hbm_to_vmem [thread:$0]  %s0, 1024, %s34, [#allocation5], 128, 128, 8
    $region5: #{tpu_custom_call.1} parent=1 // pred_fallthru
      _
    // Predicated region
    $region6: #{tpu_custom_call.1} parent=1 // pred_check
      _
    $region7: #{tpu_custom_call.1} parent=1 // pred_check_branch
      %41 = sbr.rel (0) target = $region9
    $region8: #{tpu_custom_call.1} parent=1 // pred_region
      %s43 = ssub.s32 256, 256
      %44 = vsyncadd [#allocation7], %s43
      %s45 = sshll.u32 [#allocation6], 4
      %s46 = int_to_ptr.vmem [resolvable:$true] %s45
      %51 = dma.hbm_to_vmem [thread:$0]  %s1, 256, %s46, [#allocation7], 128, 128, 8
    $region9: #{tpu_custom_call.1} parent=1 // pred_fallthru
      _
    // Predicated region
    $region10: #{tpu_custom_call.1} parent=1 // pred_check
      _
    $region11: #{tpu_custom_call.1} parent=1 // pred_check_branch
      %53 = sbr.rel (0) target = $region13
    $region12: #{tpu_custom_call.1} parent=1 // pred_region
      _
    $region13: #{tpu_custom_call.1} parent=1 // pred_fallthru
      _
    // Predicated region
    $region14: #{tpu_custom_call.1} parent=1 // pred_check
      _
    $region15: #{tpu_custom_call.1} parent=1 // pred_check_branch
      %55 = sbr.rel (0) target = $region17
    $region16: #{tpu_custom_call.1} parent=1 // pred_region
      _
    $region17: #{tpu_custom_call.1} parent=1 // pred_fallthru
      _
    // Predicated region
    $region18: #{tpu_custom_call.1} parent=1 // pred_check
      _
    $region19: #{tpu_custom_call.1} parent=1 // pred_check_branch
      %57 = sbr.rel (0) target = $region21
    $region20: #{tpu_custom_call.1} parent=1 // pred_region
      _
    $region21: #{tpu_custom_call.1} parent=1 // pred_fallthru
      _
    // Predicated region
    $region22: #{tpu_custom_call.1} parent=1 // pred_check
      _
    $region23: #{tpu_custom_call.1} parent=1 // pred_check_branch
      %59 = sbr.rel (0) target = $region25
    $region24: #{tpu_custom_call.1} parent=1 // pred_region
      %s61 = ssub.s32 512, 512
      %62 = vsyncadd [#allocation7], %s61
      %s63 = sshll.u32 [#allocation8], 4
      %s64 = int_to_ptr.vmem [resolvable:$true] %s63
      %69 = dma.hbm_to_vmem [thread:$0]  %s5, 512, %s64, [#allocation7], 128, 128, 8
    $region25: #{tpu_custom_call.1} parent=1 // pred_fallthru
      _
    // Predicated region
    $region26: #{tpu_custom_call.1} parent=1 // pred_check
      _
    $region27: #{tpu_custom_call.1} parent=1 // pred_check_branch
      %71 = sbr.rel (0) target = $region29
    $region28: #{tpu_custom_call.1} parent=1 // pred_region
      %s73 = ssub.s32 512, 512
      %74 = vsyncadd [#allocation10], %s73
      %s75 = sshll.u32 [#allocation9], 4
      %s76 = int_to_ptr.vmem [resolvable:$true] %s75
      %81 = dma.hbm_to_vmem [thread:$0]  %s6, 512, %s76, [#allocation10], 128, 128, 8
    $region29: #{tpu_custom_call.1} parent=1 // pred_fallthru
      _
    // Predicated region
    $region30: #{tpu_custom_call.1} parent=1 // pred_check
      _
    $region31: #{tpu_custom_call.1} parent=1 // pred_check_branch
      %83 = sbr.rel (0) target = $region33
    $region32: #{tpu_custom_call.1} parent=1 // pred_region
      %s85 = ssub.s32 16, 16
      %86 = vsyncadd [#allocation10], %s85
      %s88 = sshll.u32 [#allocation11], 4
      %s89 = int_to_ptr.vmem [resolvable:$true] %s88
      %91 = dma.hbm_to_vmem [thread:$0]  %s7, 16, %s89, [#allocation10]
    $region33: #{tpu_custom_call.1} parent=1 // pred_fallthru
      _
    // Predicated region
    $region34: #{tpu_custom_call.1} parent=1 // pred_check
      _
    $region35: #{tpu_custom_call.1} parent=1 // pred_check_branch
      %93 = sbr.rel (0) target = $region37
    $region36: #{tpu_custom_call.1} parent=1 // pred_region
      %s95 = ssub.s32 16, 16
      %96 = vsyncadd [#allocation13], %s95
      %s98 = sshll.u32 [#allocation12], 4
      %s99 = int_to_ptr.vmem [resolvable:$true] %s98
      %101 = dma.hbm_to_vmem [thread:$0]  %s8, 16, %s99, [#allocation13]
    $region37: #{tpu_custom_call.1} parent=1 // pred_fallthru
      _
    // Predicated region
    $region38: #{tpu_custom_call.1} parent=1 // pred_check
      _
    $region39: #{tpu_custom_call.1} parent=1 // pred_check_branch
      %103 = sbr.rel (0) target = $region41
    $region40: #{tpu_custom_call.1} parent=1 // pred_region
      _
    $region41: #{tpu_custom_call.1} parent=1 // pred_fallthru
      _
    // Predicated region
    $region42: #{tpu_custom_call.1} parent=1 // pred_check
      _
    $region43: #{tpu_custom_call.1} parent=1 // pred_check_branch
      %105 = sbr.rel (0) target = $region45
    $region44: #{tpu_custom_call.1} parent=1 // pred_region
      %s107 = ssub.s32 512, 512
      %108 = vsyncadd [#allocation13], %s107
      %s109 = sshll.u32 [#allocation14], 4
      %s110 = int_to_ptr.vmem [resolvable:$true] %s109
      %115 = dma.hbm_to_vmem [thread:$0]  %s10, 512, %s110, [#allocation13], 128, 128, 8
    $region45: #{tpu_custom_call.1} parent=1 // pred_fallthru
      _
    // Predicated region
    $region46: #{tpu_custom_call.1} parent=1 // pred_check
      _
    $region47: #{tpu_custom_call.1} parent=1 // pred_check_branch
      %117 = sbr.rel (0) target = $region49
    $region48: #{tpu_custom_call.1} parent=1 // pred_region
      %s119 = ssub.s32 512, 512
      %120 = vsyncadd [#allocation16], %s119
      %s121 = sshll.u32 [#allocation15], 4
      %s122 = int_to_ptr.vmem [resolvable:$true] %s121
      %127 = dma.hbm_to_vmem [thread:$0]  %s11, 512, %s122, [#allocation16], 128, 128, 8
    $region49: #{tpu_custom_call.1} parent=1 // pred_fallthru
      _
    // Predicated region
    $region50: #{tpu_custom_call.1} parent=1 // pred_check
      _
    $region51: #{tpu_custom_call.1} parent=1 // pred_check_branch
      %129 = sbr.rel (0) target = $region53
    $region52: #{tpu_custom_call.1} parent=1 // pred_region
      %s131 = ssub.s32 512, 512
      %132 = vsyncadd [#allocation16], %s131
      %s133 = sshll.u32 [#allocation17], 4
      %s134 = int_to_ptr.vmem [resolvable:$true] %s133
      %139 = dma.hbm_to_vmem [thread:$0]  %s12, 512, %s134, [#allocation16], 128, 128, 8
    $region53: #{tpu_custom_call.1} parent=1 // pred_fallthru
      _
    // Predicated region
    $region54: #{tpu_custom_call.1} parent=1 // pred_check
      _
    $region55: #{tpu_custom_call.1} parent=1 // pred_check_branch
      %141 = sbr.rel (0) target = $region57
    $region56: #{tpu_custom_call.1} parent=1 // pred_region
      _
    $region57: #{tpu_custom_call.1} parent=1 // pred_fallthru
      _
    // Predicated region
    $region58: #{tpu_custom_call.1} parent=1 // pred_check
      _
    $region59: #{tpu_custom_call.1} parent=1 // pred_check_branch
      %143 = sbr.rel (0) target = $region61
    $region60: #{tpu_custom_call.1} parent=1 // pred_region
      _
    $region61: #{tpu_custom_call.1} parent=1 // pred_fallthru
      _
    // Predicated region
    $region62: #{tpu_custom_call.1} parent=1 // pred_check
      _
    $region63: #{tpu_custom_call.1} parent=1 // pred_check_branch
      %145 = sbr.rel (0) target = $region65
    $region64: #{tpu_custom_call.1} parent=1 // pred_region
      _
    $region65: #{tpu_custom_call.1} parent=1 // pred_fallthru
      _
    // Predicated region
    $region66: #{tpu_custom_call.1} parent=1 // pred_check
      _
    $region67: #{tpu_custom_call.1} parent=1 // pred_check_branch
      %147 = sbr.rel (0) target = $region69
    $region68: #{tpu_custom_call.1} parent=1 // pred_region
      _
    $region69: #{tpu_custom_call.1} parent=1 // pred_fallthru
      _
    // Predicated region
    $region70: #{tpu_custom_call.1} parent=1 // pred_check
      _
    $region71: #{tpu_custom_call.1} parent=1 // pred_check_branch
      %149 = sbr.rel (0) target = $region73
    $region72: #{tpu_custom_call.1} parent=1 // pred_region
      _
    $region73: #{tpu_custom_call.1} parent=1 // pred_fallthru
      _
    // Predicated region
    $region74: #{tpu_custom_call.1} parent=1 // pred_check
      _
    $region75: #{tpu_custom_call.1} parent=1 // pred_check_branch
      %151 = sbr.rel (0) target = $region77
    $region76: #{tpu_custom_call.1} parent=1 // pred_region
      %152 = dma.done [#allocation5], 1024
    $region77: #{tpu_custom_call.1} parent=1 // pred_fallthru
      _
    // Predicated region
    $region78: #{tpu_custom_call.1} parent=1 // pred_check
      _
    $region79: #{tpu_custom_call.1} parent=1 // pred_check_branch
      %154 = sbr.rel (0) target = $region81
    $region80: #{tpu_custom_call.1} parent=1 // pred_region
      %155 = dma.done [#allocation7], 256
    $region81: #{tpu_custom_call.1} parent=1 // pred_fallthru
      _
    // Predicated region
    $region82: #{tpu_custom_call.1} parent=1 // pred_check
      _
    $region83: #{tpu_custom_call.1} parent=1 // pred_check_branch
      %157 = sbr.rel (0) target = $region85
    $region84: #{tpu_custom_call.1} parent=1 // pred_region
      %158 = dma.done [#allocation7], 512
    $region85: #{tpu_custom_call.1} parent=1 // pred_fallthru
      _
    // Predicated region
    $region86: #{tpu_custom_call.1} parent=1 // pred_check
      _
    $region87: #{tpu_custom_call.1} parent=1 // pred_check_branch
      %160 = sbr.rel (0) target = $region89
    $region88: #{tpu_custom_call.1} parent=1 // pred_region
      %161 = dma.done [#allocation10], 512
    $region89: #{tpu_custom_call.1} parent=1 // pred_fallthru
      _
    // Predicated region
    $region90: #{tpu_custom_call.1} parent=1 // pred_check
      _
    $region91: #{tpu_custom_call.1} parent=1 // pred_check_branch
      %163 = sbr.rel (0) target = $region93
    $region92: #{tpu_custom_call.1} parent=1 // pred_region
      %164 = dma.done [#allocation10], 16
    $region93: #{tpu_custom_call.1} parent=1 // pred_fallthru
      _
    // Predicated region
    $region94: #{tpu_custom_call.1} parent=1 // pred_check
      _
    $region95: #{tpu_custom_call.1} parent=1 // pred_check_branch
      %166 = sbr.rel (0) target = $region97
    $region96: #{tpu_custom_call.1} parent=1 // pred_region
      %167 = dma.done [#allocation13], 16
    $region97: #{tpu_custom_call.1} parent=1 // pred_fallthru
      _
    // Predicated region
    $region98: #{tpu_custom_call.1} parent=1 // pred_check
      _
    $region99: #{tpu_custom_call.1} parent=1 // pred_check_branch
      %169 = sbr.rel (0) target = $region101
    $region100: #{tpu_custom_call.1} parent=1 // pred_region
      %170 = dma.done [#allocation13], 512
    $region101: #{tpu_custom_call.1} parent=1 // pred_fallthru
      _
    // Predicated region
    $region102: #{tpu_custom_call.1} parent=1 // pred_check
      _
    $region103: #{tpu_custom_call.1} parent=1 // pred_check_branch
      %172 = sbr.rel (0) target = $region105
    $region104: #{tpu_custom_call.1} parent=1 // pred_region
      %173 = dma.done [#allocation16], 512
    $region105: #{tpu_custom_call.1} parent=1 // pred_fallthru
      _
    // Predicated region
    $region106: #{tpu_custom_call.1} parent=1 // pred_check
      _
    $region107: #{tpu_custom_call.1} parent=1 // pred_check_branch
      %175 = sbr.rel (0) target = $region109
    $region108: #{tpu_custom_call.1} parent=1 // pred_region
      %176 = dma.done [#allocation16], 512
    $region109: #{tpu_custom_call.1} parent=1 // pred_fallthru
      _
    %v177 = vld [vmem:[#allocation4] sm:$0xff]
    %v178 = vld [vmem:[#allocation4 + $0x8] sm:$0xff]
    %v179 = vld [vmem:[#allocation4 + $0x10] sm:$0xff]
    %v180 = vld [vmem:[#allocation4 + $0x18] sm:$0xff]
    %v181 = vld [vmem:[#allocation4 + $0x20] sm:$0xff]
    %v182 = vld [vmem:[#allocation4 + $0x28] sm:$0xff]
    %v183 = vld [vmem:[#allocation4 + $0x30] sm:$0xff]
    %v184 = vld [vmem:[#allocation4 + $0x38] sm:$0xff]
    %v185 = vld [vmem:[#allocation6] sm:$0xff]
    %v186 = vld [vmem:[#allocation6 + $0x8] sm:$0xff]
    %v187 = vld [vmem:[%s3] sm:$0x1]
    %v189 = vlaneseq
    %v190 = vshrl.u32 %v189, 7
    %v191 = vsub.s32 0, %v190
    %v192 = vrot.slane %v187, %v191
    %vm194 = vcmask 130048
    %v196 = vsel %vm194, %v177, 0
    %v199 = vsel %vm194, %v178, 0
    %v202 = vsel %vm194, %v179, 0
    %v205 = vsel %vm194, %v180, 0
    %v208 = vsel %vm194, %v181, 0
    %v211 = vsel %vm194, %v182, 0
    %v214 = vsel %vm194, %v183, 0
    %v217 = vsel %vm194, %v184, 0
    %219 = vmatprep.subr.mxu0 0.0
    %220 = vmatpush1.msra.mxu0 %v185
    %221 = vmatprep.subr.mxu0 0.0
    %222 = vmatpush1.msra.mxu0 %v186
    %223 = vmatprep.subr.mxu0 0.0
    %224 = vmatpush1.msra.mxu0 0.0
    %225 = vmatprep.subr.mxu0 0.0
    %226 = vmatpush1.msra.mxu0 0.0
    %227 = vmatprep.subr.mxu0 0.0
    %228 = vmatpush1.msra.mxu0 0.0
    %229 = vmatprep.subr.mxu0 0.0
    %230 = vmatpush1.msra.mxu0 0.0
    %231 = vmatprep.subr.mxu0 0.0
    %232 = vmatpush1.msra.mxu0 0.0
    %233 = vmatprep.subr.mxu0 0.0
    %234 = vmatpush1.msra.mxu0 0.0
    %235 = vmatprep.subr.mxu0 0.0
    %236 = vmatpush1.msra.mxu0 0.0
    %237 = vmatprep.subr.mxu0 0.0
    %238 = vmatpush1.msra.mxu0 0.0
    %239 = vmatprep.subr.mxu0 0.0
    %240 = vmatpush1.msra.mxu0 0.0
    %241 = vmatprep.subr.mxu0 0.0
    %242 = vmatpush1.msra.mxu0 0.0
    %243 = vmatprep.subr.mxu0 0.0
    %244 = vmatpush1.msra.mxu0 0.0
    %245 = vmatprep.subr.mxu0 0.0
    %246 = vmatpush1.msra.mxu0 0.0
    %247 = vmatprep.subr.mxu0 0.0
    %248 = vmatpush1.msra.mxu0 0.0
    %249 = vmatprep.subr.mxu0 0.0
    %250 = vmatpush1.msra.mxu0 0.0
    %251 = vmatprep.subr.mxu0 0.0
    %252 = vmatpush1.msra.mxu0 0.0
    %253 = vmatprep.subr.mxu0 0.0
    %254 = vmatpush1.msra.mxu0 0.0
    %255 = vmatprep.subr.mxu0 0.0
    %256 = vmatpush1.msra.mxu0 0.0
    %257 = vmatprep.subr.mxu0 0.0
    %258 = vmatpush1.msra.mxu0 0.0
    %259 = vmatprep.subr.mxu0 0.0
    %260 = vmatpush1.msra.mxu0 0.0
    %261 = vmatprep.subr.mxu0 0.0
    %262 = vmatpush1.msra.mxu0 0.0
    %263 = vmatprep.subr.mxu0 0.0
    %264 = vmatpush1.msra.mxu0 0.0
    %265 = vmatprep.subr.mxu0 0.0
    %266 = vmatpush1.msra.mxu0 0.0
    %267 = vmatprep.subr.mxu0 0.0
    %268 = vmatpush1.msra.mxu0 0.0
    %269 = vmatprep.subr.mxu0 0.0
    %270 = vmatpush1.msra.mxu0 0.0
    %271 = vmatprep.subr.mxu0 0.0
    %272 = vmatpush1.msra.mxu0 0.0
    %273 = vmatprep.subr.mxu0 0.0
    %274 = vmatpush1.msra.mxu0 0.0
    %275 = vmatprep.subr.mxu0 0.0
    %276 = vmatpush1.msra.mxu0 0.0
    %277 = vmatprep.subr.mxu0 0.0
    %278 = vmatpush1.msra.mxu0 0.0
    %279 = vmatprep.subr.mxu0 0.0
    %280 = vmatpush1.msra.mxu0 0.0
    %281 = vmatprep.subr.mxu0 0.0
    %282 = vmatpush1.msra.mxu0 0.0
    %283 = vmatprep.mubr.f32.mxu0 0.0
    %284 = vmatmul.mubr.f32.gmra.mrb[0].mxu0 %v196
    %v285 = vpop.f32.mrb[0].mxu0
    %v286 = vadd.f32 %v192, %v285
    %v287 = vpop.f32.mrb[0].mxu0
    %288 = vmatprep.mubr.f32.mxu0 0.0
    %289 = vmatmul.mubr.f32.gmra.mrb[0].mxu0 %v199
    %v290 = vpop.f32.mrb[0].mxu0
    %v291 = vadd.f32 %v192, %v290
    %v292 = vpop.f32.mrb[0].mxu0
    %293 = vmatprep.mubr.f32.mxu0 0.0
    %294 = vmatmul.mubr.f32.gmra.mrb[0].mxu0 %v202
    %v295 = vpop.f32.mrb[0].mxu0
    %v296 = vadd.f32 %v192, %v295
    %v297 = vpop.f32.mrb[0].mxu0
    %298 = vmatprep.mubr.f32.mxu0 0.0
    %299 = vmatmul.mubr.f32.gmra.mrb[0].mxu0 %v205
    %v300 = vpop.f32.mrb[0].mxu0
    %v301 = vadd.f32 %v192, %v300
    %v302 = vpop.f32.mrb[0].mxu0
    %303 = vmatprep.mubr.f32.mxu0 0.0
    %304 = vmatmul.mubr.f32.gmra.mrb[0].mxu0 %v208
    %v305 = vpop.f32.mrb[0].mxu0
    %v306 = vadd.f32 %v192, %v305
    %v307 = vpop.f32.mrb[0].mxu0
    %308 = vmatprep.mubr.f32.mxu0 0.0
    %309 = vmatmul.mubr.f32.gmra.mrb[0].mxu0 %v211
    %v310 = vpop.f32.mrb[0].mxu0
    %v311 = vadd.f32 %v192, %v310
    %v312 = vpop.f32.mrb[0].mxu0
    %313 = vmatprep.mubr.f32.mxu0 0.0
    %314 = vmatmul.mubr.f32.gmra.mrb[0].mxu0 %v214
    %v315 = vpop.f32.mrb[0].mxu0
    %v316 = vadd.f32 %v192, %v315
    %v317 = vpop.f32.mrb[0].mxu0
    %318 = vmatprep.mubr.f32.mxu0 0.0
    %319 = vmatmul.mubr.f32.gmra.mrb[0].mxu0 %v217
    %v320 = vpop.f32.mrb[0].mxu0
    %v321 = vadd.f32 %v192, %v320
    %v322 = vpop.f32.mrb[0].mxu0
    %323 = vdwg.mxu0
    %vm324 = vcmask 785408
    %325 = vst.msk [vmem:[#allocation2] sm:$0xff] %vm324, %v286
    %326 = vst.msk [vmem:[#allocation2 + $0x8] sm:$0xff] %vm324, %v291
    %327 = vst.msk [vmem:[#allocation2 + $0x10] sm:$0xff] %vm324, %v296
    %328 = vst.msk [vmem:[#allocation2 + $0x18] sm:$0xff] %vm324, %v301
    %329 = vst.msk [vmem:[#allocation2 + $0x20] sm:$0xff] %vm324, %v306
    %330 = vst.msk [vmem:[#allocation2 + $0x28] sm:$0xff] %vm324, %v311
    %331 = vst.msk [vmem:[#allocation2 + $0x30] sm:$0xff] %vm324, %v316
    %332 = vst.msk [vmem:[#allocation2 + $0x38] sm:$0xff] %vm324, %v321
    %v333 = vld [vmem:[%s2] sm:$0xff]
    %v334 = vld [vmem:[%s2 + $0x8] sm:$0xff]
    %v335 = vld [vmem:[%s2 + $0x10] sm:$0xff]
    %v336 = vld [vmem:[%s2 + $0x18] sm:$0xff]
    %v337 = vld [vmem:[%s4] sm:$0x1]
    %v339 = vlaneseq
    %v340 = vshrl.u32 %v339, 7
    %v341 = vsub.s32 0, %v340
    %v342 = vrot.slane %v337, %v341
    %v343 = vld [vmem:[#allocation2] sm:$0xff]
    %vm344 = vcmask 261120
    %v346 = vsel %vm344, 0.0, 0
    %348 = vmatprep.subr.mxu0 0.0
    %349 = vmatpush1.msra.mxu0 %v333
    %350 = vmatprep.subr.mxu0 0.0
    %351 = vmatpush1.msra.mxu0 %v334
    %352 = vmatprep.subr.mxu0 0.0
    %353 = vmatpush1.msra.mxu0 %v335
    %354 = vmatprep.subr.mxu0 0.0
    %355 = vmatpush1.msra.mxu0 %v336
    %356 = vmatprep.subr.mxu0 0.0
    %357 = vmatpush1.msra.mxu0 0.0
    %358 = vmatprep.subr.mxu0 0.0
    %359 = vmatpush1.msra.mxu0 0.0
    %360 = vmatprep.subr.mxu0 0.0
    %361 = vmatpush1.msra.mxu0 0.0
    %362 = vmatprep.subr.mxu0 0.0
    %363 = vmatpush1.msra.mxu0 0.0
    %364 = vmatprep.subr.mxu0 0.0
    %365 = vmatpush1.msra.mxu0 0.0
    %366 = vmatprep.subr.mxu0 0.0
    %367 = vmatpush1.msra.mxu0 0.0
    %368 = vmatprep.subr.mxu0 0.0
    %369 = vmatpush1.msra.mxu0 0.0
    %370 = vmatprep.subr.mxu0 0.0
    %371 = vmatpush1.msra.mxu0 0.0
    %372 = vmatprep.subr.mxu0 0.0
    %373 = vmatpush1.msra.mxu0 0.0
    %374 = vmatprep.subr.mxu0 0.0
    %375 = vmatpush1.msra.mxu0 0.0
    %376 = vmatprep.subr.mxu0 0.0
    %377 = vmatpush1.msra.mxu0 0.0
    %378 = vmatprep.subr.mxu0 0.0
    %379 = vmatpush1.msra.mxu0 0.0
    %380 = vmatprep.subr.mxu0 0.0
    %381 = vmatpush1.msra.mxu0 0.0
    %382 = vmatprep.subr.mxu0 0.0
    %383 = vmatpush1.msra.mxu0 0.0
    %384 = vmatprep.subr.mxu0 0.0
    %385 = vmatpush1.msra.mxu0 0.0
    %386 = vmatprep.subr.mxu0 0.0
    %387 = vmatpush1.msra.mxu0 0.0
    %388 = vmatprep.subr.mxu0 0.0
    %389 = vmatpush1.msra.mxu0 0.0
    %390 = vmatprep.subr.mxu0 0.0
    %391 = vmatpush1.msra.mxu0 0.0
    %392 = vmatprep.subr.mxu0 0.0
    %393 = vmatpush1.msra.mxu0 0.0
    %394 = vmatprep.subr.mxu0 0.0
    %395 = vmatpush1.msra.mxu0 0.0
    %396 = vmatprep.subr.mxu0 0.0
    %397 = vmatpush1.msra.mxu0 0.0
    %398 = vmatprep.subr.mxu0 0.0
    %399 = vmatpush1.msra.mxu0 0.0
    %400 = vmatprep.subr.mxu0 0.0
    %401 = vmatpush1.msra.mxu0 0.0
    %402 = vmatprep.subr.mxu0 0.0
    %403 = vmatpush1.msra.mxu0 0.0
    %404 = vmatprep.subr.mxu0 0.0
    %405 = vmatpush1.msra.mxu0 0.0
    %406 = vmatprep.subr.mxu0 0.0
    %407 = vmatpush1.msra.mxu0 0.0
    %408 = vmatprep.subr.mxu0 0.0
    %409 = vmatpush1.msra.mxu0 0.0
    %410 = vmatprep.subr.mxu0 0.0
    %411 = vmatpush1.msra.mxu0 0.0
    %412 = vmatprep.mubr.f32.mxu0 0.0
    %413 = vmatmul.mubr.f32.gmra.mrb[0].mxu0 %v346
    %v414 = vpop.f32.mrb[0].mxu0
    %v415 = vadd.f32 0.0, %v414
    %v416 = vpop.f32.mrb[0].mxu0
    %417 = vdwg.mxu0
    %v418 = vadd.f32 %v343, %v415
    %v419 = vxor.u32 %v418, 2147483648
    %v420 = vmul.f32 %v419, 1.442695
    %v421 = vpow.pop %v420
    %v422 = vadd.f32 %v421, 1.0
    %v423 = vrcp.pop %v422
    %v424 = vmul.f32 1.0, %v423
    %425 = vrot.lane.b32.xlu0 %v342, 64
    %v426 = vpop.permute.xlu0 %425
    %v428 = vadd.f32 %v415, %v426
    %430 = vrot.lane.b32.xlu0 %v428, 64
    %v431 = vpop.permute.xlu0 %430
    %v433 = vmul.f32 %v424, %v431
    %435 = vrot.lane.b32.xlu0 %v433, 64
    %v436 = vpop.permute.xlu0 %435
    %v438 = vadd.f32 %v343, %v436
    %v439 = vtanh.pop %v438
    %v440 = vsub.f32 0.0, %v439
    %442 = vrot.lane.b32.xlu0 %v440, 96
    %v443 = vpop.permute.xlu0 %442
    %v445 = vmul.f32 %v424, %v443
    %447 = vrot.lane.b32.xlu0 %v445, 32
    %v448 = vpop.permute.xlu0 %447
    %v450 = vadd.f32 %v439, %v448
    %452 = vrot.lane.b32.xlu0 %v450, 64
    %v453 = vpop.permute.xlu0 %452
    %455 = vst.msk [vmem:[#allocation3] sm:$0xff] %vm344, %v453
    %s456 = scalar_lea.vmem [#allocation2], 8
    %v457 = vld [vmem:[%s456] sm:$0xff]
    %v458 = vsel %vm344, %v453, 0
    %460 = vmatprep.subr.mxu0 0.0
    %461 = vmatpush1.msra.mxu0 %v333
    %462 = vmatprep.subr.mxu0 0.0
    %463 = vmatpush1.msra.mxu0 %v334
    %464 = vmatprep.subr.mxu0 0.0
    %465 = vmatpush1.msra.mxu0 %v335
    %466 = vmatprep.subr.mxu0 0.0
    %467 = vmatpush1.msra.mxu0 %v336
    %468 = vmatprep.subr.mxu0 0.0
    %469 = vmatpush1.msra.mxu0 0.0
    %470 = vmatprep.subr.mxu0 0.0
    %471 = vmatpush1.msra.mxu0 0.0
    %472 = vmatprep.subr.mxu0 0.0
    %473 = vmatpush1.msra.mxu0 0.0
    %474 = vmatprep.subr.mxu0 0.0
    %475 = vmatpush1.msra.mxu0 0.0
    %476 = vmatprep.subr.mxu0 0.0
    %477 = vmatpush1.msra.mxu0 0.0
    %478 = vmatprep.subr.mxu0 0.0
    %479 = vmatpush1.msra.mxu0 0.0
    %480 = vmatprep.subr.mxu0 0.0
    %481 = vmatpush1.msra.mxu0 0.0
    %482 = vmatprep.subr.mxu0 0.0
    %483 = vmatpush1.msra.mxu0 0.0
    %484 = vmatprep.subr.mxu0 0.0
    %485 = vmatpush1.msra.mxu0 0.0
    %486 = vmatprep.subr.mxu0 0.0
    %487 = vmatpush1.msra.mxu0 0.0
    %488 = vmatprep.subr.mxu0 0.0
    %489 = vmatpush1.msra.mxu0 0.0
    %490 = vmatprep.subr.mxu0 0.0
    %491 = vmatpush1.msra.mxu0 0.0
    %492 = vmatprep.subr.mxu0 0.0
    %493 = vmatpush1.msra.mxu0 0.0
    %494 = vmatprep.subr.mxu0 0.0
    %495 = vmatpush1.msra.mxu0 0.0
    %496 = vmatprep.subr.mxu0 0.0
    %497 = vmatpush1.msra.mxu0 0.0
    %498 = vmatprep.subr.mxu0 0.0
    %499 = vmatpush1.msra.mxu0 0.0
    %500 = vmatprep.subr.mxu0 0.0
    %501 = vmatpush1.msra.mxu0 0.0
    %502 = vmatprep.subr.mxu0 0.0
    %503 = vmatpush1.msra.mxu0 0.0
    %504 = vmatprep.subr.mxu0 0.0
    %505 = vmatpush1.msra.mxu0 0.0
    %506 = vmatprep.subr.mxu0 0.0
    %507 = vmatpush1.msra.mxu0 0.0
    %508 = vmatprep.subr.mxu0 0.0
    %509 = vmatpush1.msra.mxu0 0.0
    %510 = vmatprep.subr.mxu0 0.0
    %511 = vmatpush1.msra.mxu0 0.0
    %512 = vmatprep.subr.mxu0 0.0
    %513 = vmatpush1.msra.mxu0 0.0
    %514 = vmatprep.subr.mxu0 0.0
    %515 = vmatpush1.msra.mxu0 0.0
    %516 = vmatprep.subr.mxu0 0.0
    %517 = vmatpush1.msra.mxu0 0.0
    %518 = vmatprep.subr.mxu0 0.0
    %519 = vmatpush1.msra.mxu0 0.0
    %520 = vmatprep.subr.mxu0 0.0
    %521 = vmatpush1.msra.mxu0 0.0
    %522 = vmatprep.subr.mxu0 0.0
    %523 = vmatpush1.msra.mxu0 0.0
    %524 = vmatprep.mubr.f32.mxu0 0.0
    %525 = vmatmul.mubr.f32.gmra.mrb[0].mxu0 %v458
    %v526 = vpop.f32.mrb[0].mxu0
    %v527 = vadd.f32 0.0, %v526
    %v528 = vpop.f32.mrb[0].mxu0
    %529 = vdwg.mxu0
    %v530 = vadd.f32 %v457, %v527
    %v531 = vxor.u32 %v530, 2147483648
    %v532 = vmul.f32 %v531, 1.442695
    %v533 = vpow.pop %v532
    %v534 = vadd.f32 %v533, 1.0
    %v535 = vrcp.pop %v534
    %v536 = vmul.f32 1.0, %v535
    %v537 = vadd.f32 %v527, %v426
    %539 = vrot.lane.b32.xlu0 %v537, 64
    %v540 = vpop.permute.xlu0 %539
    %v542 = vmul.f32 %v536, %v540
    %544 = vrot.lane.b32.xlu0 %v542, 64
    %v545 = vpop.permute.xlu0 %544
    %v547 = vadd.f32 %v457, %v545
    %v548 = vtanh.pop %v547
    %v549 = vsub.f32 %v450, %v548
    %551 = vrot.lane.b32.xlu0 %v549, 96
    %v552 = vpop.permute.xlu0 %551
    %v554 = vmul.f32 %v536, %v552
    %556 = vrot.lane.b32.xlu0 %v554, 32
    %v557 = vpop.permute.xlu0 %556
    %v559 = vadd.f32 %v548, %v557
    %561 = vrot.lane.b32.xlu0 %v559, 64
    %v562 = vpop.permute.xlu0 %561
    %s564 = scalar_lea.vmem [#allocation3], 8
    %565 = vst.msk [vmem:[%s564] sm:$0xff] %vm344, %v562
    %s566 = scalar_lea.vmem [#allocation2], 16
    %v567 = vld [vmem:[%s566] sm:$0xff]
    %v568 = vsel %vm344, %v562, 0
    %570 = vmatprep.subr.mxu0 0.0
    %571 = vmatpush1.msra.mxu0 %v333
    %572 = vmatprep.subr.mxu0 0.0
    %573 = vmatpush1.msra.mxu0 %v334
    %574 = vmatprep.subr.mxu0 0.0
    %575 = vmatpush1.msra.mxu0 %v335
    %576 = vmatprep.subr.mxu0 0.0
    %577 = vmatpush1.msra.mxu0 %v336
    %578 = vmatprep.subr.mxu0 0.0
    %579 = vmatpush1.msra.mxu0 0.0
    %580 = vmatprep.subr.mxu0 0.0
    %581 = vmatpush1.msra.mxu0 0.0
    %582 = vmatprep.subr.mxu0 0.0
    %583 = vmatpush1.msra.mxu0 0.0
    %584 = vmatprep.subr.mxu0 0.0
    %585 = vmatpush1.msra.mxu0 0.0
    %586 = vmatprep.subr.mxu0 0.0
    %587 = vmatpush1.msra.mxu0 0.0
    %588 = vmatprep.subr.mxu0 0.0
    %589 = vmatpush1.msra.mxu0 0.0
    %590 = vmatprep.subr.mxu0 0.0
    %591 = vmatpush1.msra.mxu0 0.0
    %592 = vmatprep.subr.mxu0 0.0
    %593 = vmatpush1.msra.mxu0 0.0
    %594 = vmatprep.subr.mxu0 0.0
    %595 = vmatpush1.msra.mxu0 0.0
    %596 = vmatprep.subr.mxu0 0.0
    %597 = vmatpush1.msra.mxu0 0.0
    %598 = vmatprep.subr.mxu0 0.0
    %599 = vmatpush1.msra.mxu0 0.0
    %600 = vmatprep.subr.mxu0 0.0
    %601 = vmatpush1.msra.mxu0 0.0
    %602 = vmatprep.subr.mxu0 0.0
    %603 = vmatpush1.msra.mxu0 0.0
    %604 = vmatprep.subr.mxu0 0.0
    %605 = vmatpush1.msra.mxu0 0.0
    %606 = vmatprep.subr.mxu0 0.0
    %607 = vmatpush1.msra.mxu0 0.0
    %608 = vmatprep.subr.mxu0 0.0
    %609 = vmatpush1.msra.mxu0 0.0
    %610 = vmatprep.subr.mxu0 0.0
    %611 = vmatpush1.msra.mxu0 0.0
    %612 = vmatprep.subr.mxu0 0.0
    %613 = vmatpush1.msra.mxu0 0.0
    %614 = vmatprep.subr.mxu0 0.0
    %615 = vmatpush1.msra.mxu0 0.0
    %616 = vmatprep.subr.mxu0 0.0
    %617 = vmatpush1.msra.mxu0 0.0
    %618 = vmatprep.subr.mxu0 0.0
    %619 = vmatpush1.msra.mxu0 0.0
    %620 = vmatprep.subr.mxu0 0.0
    %621 = vmatpush1.msra.mxu0 0.0
    %622 = vmatprep.subr.mxu0 0.0
    %623 = vmatpush1.msra.mxu0 0.0
    %624 = vmatprep.subr.mxu0 0.0
    %625 = vmatpush1.msra.mxu0 0.0
    %626 = vmatprep.subr.mxu0 0.0
    %627 = vmatpush1.msra.mxu0 0.0
    %628 = vmatprep.subr.mxu0 0.0
    %629 = vmatpush1.msra.mxu0 0.0
    %630 = vmatprep.subr.mxu0 0.0
    %631 = vmatpush1.msra.mxu0 0.0
    %632 = vmatprep.subr.mxu0 0.0
    %633 = vmatpush1.msra.mxu0 0.0
    %634 = vmatprep.mubr.f32.mxu0 0.0
    %635 = vmatmul.mubr.f32.gmra.mrb[0].mxu0 %v568
    %v636 = vpop.f32.mrb[0].mxu0
    %v637 = vadd.f32 0.0, %v636
    %v638 = vpop.f32.mrb[0].mxu0
    %639 = vdwg.mxu0
    %v640 = vadd.f32 %v567, %v637
    %v641 = vxor.u32 %v640, 2147483648
    %v642 = vmul.f32 %v641, 1.442695
    %v643 = vpow.pop %v642
    %v644 = vadd.f32 %v643, 1.0
    %v645 = vrcp.pop %v644
    %v646 = vmul.f32 1.0, %v645
    %v647 = vadd.f32 %v637, %v426
    %649 = vrot.lane.b32.xlu0 %v647, 64
    %v650 = vpop.permute.xlu0 %649
    %v652 = vmul.f32 %v646, %v650
    %654 = vrot.lane.b32.xlu0 %v652, 64
    %v655 = vpop.permute.xlu0 %654
    %v657 = vadd.f32 %v567, %v655
    %v658 = vtanh.pop %v657
    %v659 = vsub.f32 %v559, %v658
    %661 = vrot.lane.b32.xlu0 %v659, 96
    %v662 = vpop.permute.xlu0 %661
    %v664 = vmul.f32 %v646, %v662
    %666 = vrot.lane.b32.xlu0 %v664, 32
    %v667 = vpop.permute.xlu0 %666
    %v669 = vadd.f32 %v658, %v667
    %671 = vrot.lane.b32.xlu0 %v669, 64
    %v672 = vpop.permute.xlu0 %671
    %s674 = scalar_lea.vmem [#allocation3], 16
    %675 = vst.msk [vmem:[%s674] sm:$0xff] %vm344, %v672
    %s676 = scalar_lea.vmem [#allocation2], 24
    %v677 = vld [vmem:[%s676] sm:$0xff]
    %v678 = vsel %vm344, %v672, 0
    %680 = vmatprep.subr.mxu0 0.0
    %681 = vmatpush1.msra.mxu0 %v333
    %682 = vmatprep.subr.mxu0 0.0
    %683 = vmatpush1.msra.mxu0 %v334
    %684 = vmatprep.subr.mxu0 0.0
    %685 = vmatpush1.msra.mxu0 %v335
    %686 = vmatprep.subr.mxu0 0.0
    %687 = vmatpush1.msra.mxu0 %v336
    %688 = vmatprep.subr.mxu0 0.0
    %689 = vmatpush1.msra.mxu0 0.0
    %690 = vmatprep.subr.mxu0 0.0
    %691 = vmatpush1.msra.mxu0 0.0
    %692 = vmatprep.subr.mxu0 0.0
    %693 = vmatpush1.msra.mxu0 0.0
    %694 = vmatprep.subr.mxu0 0.0
    %695 = vmatpush1.msra.mxu0 0.0
    %696 = vmatprep.subr.mxu0 0.0
    %697 = vmatpush1.msra.mxu0 0.0
    %698 = vmatprep.subr.mxu0 0.0
    %699 = vmatpush1.msra.mxu0 0.0
    %700 = vmatprep.subr.mxu0 0.0
    %701 = vmatpush1.msra.mxu0 0.0
    %702 = vmatprep.subr.mxu0 0.0
    %703 = vmatpush1.msra.mxu0 0.0
    %704 = vmatprep.subr.mxu0 0.0
    %705 = vmatpush1.msra.mxu0 0.0
    %706 = vmatprep.subr.mxu0 0.0
    %707 = vmatpush1.msra.mxu0 0.0
    %708 = vmatprep.subr.mxu0 0.0
    %709 = vmatpush1.msra.mxu0 0.0
    %710 = vmatprep.subr.mxu0 0.0
    %711 = vmatpush1.msra.mxu0 0.0
    %712 = vmatprep.subr.mxu0 0.0
    %713 = vmatpush1.msra.mxu0 0.0
    %714 = vmatprep.subr.mxu0 0.0
    %715 = vmatpush1.msra.mxu0 0.0
    %716 = vmatprep.subr.mxu0 0.0
    %717 = vmatpush1.msra.mxu0 0.0
    %718 = vmatprep.subr.mxu0 0.0
    %719 = vmatpush1.msra.mxu0 0.0
    %720 = vmatprep.subr.mxu0 0.0
    %721 = vmatpush1.msra.mxu0 0.0
    %722 = vmatprep.subr.mxu0 0.0
    %723 = vmatpush1.msra.mxu0 0.0
    %724 = vmatprep.subr.mxu0 0.0
    %725 = vmatpush1.msra.mxu0 0.0
    %726 = vmatprep.subr.mxu0 0.0
    %727 = vmatpush1.msra.mxu0 0.0
    %728 = vmatprep.subr.mxu0 0.0
    %729 = vmatpush1.msra.mxu0 0.0
    %730 = vmatprep.subr.mxu0 0.0
    %731 = vmatpush1.msra.mxu0 0.0
    %732 = vmatprep.subr.mxu0 0.0
    %733 = vmatpush1.msra.mxu0 0.0
    %734 = vmatprep.subr.mxu0 0.0
    %735 = vmatpush1.msra.mxu0 0.0
    %736 = vmatprep.subr.mxu0 0.0
    %737 = vmatpush1.msra.mxu0 0.0
    %738 = vmatprep.subr.mxu0 0.0
    %739 = vmatpush1.msra.mxu0 0.0
    %740 = vmatprep.subr.mxu0 0.0
    %741 = vmatpush1.msra.mxu0 0.0
    %742 = vmatprep.subr.mxu0 0.0
    %743 = vmatpush1.msra.mxu0 0.0
    %744 = vmatprep.mubr.f32.mxu0 0.0
    %745 = vmatmul.mubr.f32.gmra.mrb[0].mxu0 %v678
    %v746 = vpop.f32.mrb[0].mxu0
    %v747 = vadd.f32 0.0, %v746
    %v748 = vpop.f32.mrb[0].mxu0
    %749 = vdwg.mxu0
    %v750 = vadd.f32 %v677, %v747
    %v751 = vxor.u32 %v750, 2147483648
    %v752 = vmul.f32 %v751, 1.442695
    %v753 = vpow.pop %v752
    %v754 = vadd.f32 %v753, 1.0
    %v755 = vrcp.pop %v754
    %v756 = vmul.f32 1.0, %v755
    %v757 = vadd.f32 %v747, %v426
    %759 = vrot.lane.b32.xlu0 %v757, 64
    %v760 = vpop.permute.xlu0 %759
    %v762 = vmul.f32 %v756, %v760
    %764 = vrot.lane.b32.xlu0 %v762, 64
    %v765 = vpop.permute.xlu0 %764
    %v767 = vadd.f32 %v677, %v765
    %v768 = vtanh.pop %v767
    %v769 = vsub.f32 %v669, %v768
    %771 = vrot.lane.b32.xlu0 %v769, 96
    %v772 = vpop.permute.xlu0 %771
    %v774 = vmul.f32 %v756, %v772
    %776 = vrot.lane.b32.xlu0 %v774, 32
    %v777 = vpop.permute.xlu0 %776
    %v779 = vadd.f32 %v768, %v777
    %781 = vrot.lane.b32.xlu0 %v779, 64
    %v782 = vpop.permute.xlu0 %781
    %s784 = scalar_lea.vmem [#allocation3], 24
    %785 = vst.msk [vmem:[%s784] sm:$0xff] %vm344, %v782
    %s786 = scalar_lea.vmem [#allocation2], 32
    %v787 = vld [vmem:[%s786] sm:$0xff]
    %v788 = vsel %vm344, %v782, 0
    %790 = vmatprep.subr.mxu0 0.0
    %791 = vmatpush1.msra.mxu0 %v333
    %792 = vmatprep.subr.mxu0 0.0
    %793 = vmatpush1.msra.mxu0 %v334
    %794 = vmatprep.subr.mxu0 0.0
    %795 = vmatpush1.msra.mxu0 %v335
    %796 = vmatprep.subr.mxu0 0.0
    %797 = vmatpush1.msra.mxu0 %v336
    %798 = vmatprep.subr.mxu0 0.0
    %799 = vmatpush1.msra.mxu0 0.0
    %800 = vmatprep.subr.mxu0 0.0
    %801 = vmatpush1.msra.mxu0 0.0
    %802 = vmatprep.subr.mxu0 0.0
    %803 = vmatpush1.msra.mxu0 0.0
    %804 = vmatprep.subr.mxu0 0.0
    %805 = vmatpush1.msra.mxu0 0.0
    %806 = vmatprep.subr.mxu0 0.0
    %807 = vmatpush1.msra.mxu0 0.0
    %808 = vmatprep.subr.mxu0 0.0
    %809 = vmatpush1.msra.mxu0 0.0
    %810 = vmatprep.subr.mxu0 0.0
    %811 = vmatpush1.msra.mxu0 0.0
    %812 = vmatprep.subr.mxu0 0.0
    %813 = vmatpush1.msra.mxu0 0.0
    %814 = vmatprep.subr.mxu0 0.0
    %815 = vmatpush1.msra.mxu0 0.0
    %816 = vmatprep.subr.mxu0 0.0
    %817 = vmatpush1.msra.mxu0 0.0
    %818 = vmatprep.subr.mxu0 0.0
    %819 = vmatpush1.msra.mxu0 0.0
    %820 = vmatprep.subr.mxu0 0.0
    %821 = vmatpush1.msra.mxu0 0.0
    %822 = vmatprep.subr.mxu0 0.0
    %823 = vmatpush1.msra.mxu0 0.0
    %824 = vmatprep.subr.mxu0 0.0
    %825 = vmatpush1.msra.mxu0 0.0
    %826 = vmatprep.subr.mxu0 0.0
    %827 = vmatpush1.msra.mxu0 0.0
    %828 = vmatprep.subr.mxu0 0.0
    %829 = vmatpush1.msra.mxu0 0.0
    %830 = vmatprep.subr.mxu0 0.0
    %831 = vmatpush1.msra.mxu0 0.0
    %832 = vmatprep.subr.mxu0 0.0
    %833 = vmatpush1.msra.mxu0 0.0
    %834 = vmatprep.subr.mxu0 0.0
    %835 = vmatpush1.msra.mxu0 0.0
    %836 = vmatprep.subr.mxu0 0.0
    %837 = vmatpush1.msra.mxu0 0.0
    %838 = vmatprep.subr.mxu0 0.0
    %839 = vmatpush1.msra.mxu0 0.0
    %840 = vmatprep.subr.mxu0 0.0
    %841 = vmatpush1.msra.mxu0 0.0
    %842 = vmatprep.subr.mxu0 0.0
    %843 = vmatpush1.msra.mxu0 0.0
    %844 = vmatprep.subr.mxu0 0.0
    %845 = vmatpush1.msra.mxu0 0.0
    %846 = vmatprep.subr.mxu0 0.0
    %847 = vmatpush1.msra.mxu0 0.0
    %848 = vmatprep.subr.mxu0 0.0
    %849 = vmatpush1.msra.mxu0 0.0
    %850 = vmatprep.subr.mxu0 0.0
    %851 = vmatpush1.msra.mxu0 0.0
    %852 = vmatprep.subr.mxu0 0.0
    %853 = vmatpush1.msra.mxu0 0.0
    %854 = vmatprep.mubr.f32.mxu0 0.0
    %855 = vmatmul.mubr.f32.gmra.mrb[0].mxu0 %v788
    %v856 = vpop.f32.mrb[0].mxu0
    %v857 = vadd.f32 0.0, %v856
    %v858 = vpop.f32.mrb[0].mxu0
    %859 = vdwg.mxu0
    %v860 = vadd.f32 %v787, %v857
    %v861 = vxor.u32 %v860, 2147483648
    %v862 = vmul.f32 %v861, 1.442695
    %v863 = vpow.pop %v862
    %v864 = vadd.f32 %v863, 1.0
    %v865 = vrcp.pop %v864
    %v866 = vmul.f32 1.0, %v865
    %v867 = vadd.f32 %v857, %v426
    %869 = vrot.lane.b32.xlu0 %v867, 64
    %v870 = vpop.permute.xlu0 %869
    %v872 = vmul.f32 %v866, %v870
    %874 = vrot.lane.b32.xlu0 %v872, 64
    %v875 = vpop.permute.xlu0 %874
    %v877 = vadd.f32 %v787, %v875
    %v878 = vtanh.pop %v877
    %v879 = vsub.f32 %v779, %v878
    %881 = vrot.lane.b32.xlu0 %v879, 96
    %v882 = vpop.permute.xlu0 %881
    %v884 = vmul.f32 %v866, %v882
    %886 = vrot.lane.b32.xlu0 %v884, 32
    %v887 = vpop.permute.xlu0 %886
    %v889 = vadd.f32 %v878, %v887
    %891 = vrot.lane.b32.xlu0 %v889, 64
    %v892 = vpop.permute.xlu0 %891
    %s894 = scalar_lea.vmem [#allocation3], 32
    %895 = vst.msk [vmem:[%s894] sm:$0xff] %vm344, %v892
    %s896 = scalar_lea.vmem [#allocation2], 40
    %v897 = vld [vmem:[%s896] sm:$0xff]
    %v898 = vsel %vm344, %v892, 0
    %900 = vmatprep.subr.mxu0 0.0
    %901 = vmatpush1.msra.mxu0 %v333
    %902 = vmatprep.subr.mxu0 0.0
    %903 = vmatpush1.msra.mxu0 %v334
    %904 = vmatprep.subr.mxu0 0.0
    %905 = vmatpush1.msra.mxu0 %v335
    %906 = vmatprep.subr.mxu0 0.0
    %907 = vmatpush1.msra.mxu0 %v336
    %908 = vmatprep.subr.mxu0 0.0
    %909 = vmatpush1.msra.mxu0 0.0
    %910 = vmatprep.subr.mxu0 0.0
    %911 = vmatpush1.msra.mxu0 0.0
    %912 = vmatprep.subr.mxu0 0.0
    %913 = vmatpush1.msra.mxu0 0.0
    %914 = vmatprep.subr.mxu0 0.0
    %915 = vmatpush1.msra.mxu0 0.0
    %916 = vmatprep.subr.mxu0 0.0
    %917 = vmatpush1.msra.mxu0 0.0
    %918 = vmatprep.subr.mxu0 0.0
    %919 = vmatpush1.msra.mxu0 0.0
    %920 = vmatprep.subr.mxu0 0.0
    %921 = vmatpush1.msra.mxu0 0.0
    %922 = vmatprep.subr.mxu0 0.0
    %923 = vmatpush1.msra.mxu0 0.0
    %924 = vmatprep.subr.mxu0 0.0
    %925 = vmatpush1.msra.mxu0 0.0
    %926 = vmatprep.subr.mxu0 0.0
    %927 = vmatpush1.msra.mxu0 0.0
    %928 = vmatprep.subr.mxu0 0.0
    %929 = vmatpush1.msra.mxu0 0.0
    %930 = vmatprep.subr.mxu0 0.0
    %931 = vmatpush1.msra.mxu0 0.0
    %932 = vmatprep.subr.mxu0 0.0
    %933 = vmatpush1.msra.mxu0 0.0
    %934 = vmatprep.subr.mxu0 0.0
    %935 = vmatpush1.msra.mxu0 0.0
    %936 = vmatprep.subr.mxu0 0.0
    %937 = vmatpush1.msra.mxu0 0.0
    %938 = vmatprep.subr.mxu0 0.0
    %939 = vmatpush1.msra.mxu0 0.0
    %940 = vmatprep.subr.mxu0 0.0
    %941 = vmatpush1.msra.mxu0 0.0
    %942 = vmatprep.subr.mxu0 0.0
    %943 = vmatpush1.msra.mxu0 0.0
    %944 = vmatprep.subr.mxu0 0.0
    %945 = vmatpush1.msra.mxu0 0.0
    %946 = vmatprep.subr.mxu0 0.0
    %947 = vmatpush1.msra.mxu0 0.0
    %948 = vmatprep.subr.mxu0 0.0
    %949 = vmatpush1.msra.mxu0 0.0
    %950 = vmatprep.subr.mxu0 0.0
    %951 = vmatpush1.msra.mxu0 0.0
    %952 = vmatprep.subr.mxu0 0.0
    %953 = vmatpush1.msra.mxu0 0.0
    %954 = vmatprep.subr.mxu0 0.0
    %955 = vmatpush1.msra.mxu0 0.0
    %956 = vmatprep.subr.mxu0 0.0
    %957 = vmatpush1.msra.mxu0 0.0
    %958 = vmatprep.subr.mxu0 0.0
    %959 = vmatpush1.msra.mxu0 0.0
    %960 = vmatprep.subr.mxu0 0.0
    %961 = vmatpush1.msra.mxu0 0.0
    %962 = vmatprep.subr.mxu0 0.0
    %963 = vmatpush1.msra.mxu0 0.0
    %964 = vmatprep.mubr.f32.mxu0 0.0
    %965 = vmatmul.mubr.f32.gmra.mrb[0].mxu0 %v898
    %v966 = vpop.f32.mrb[0].mxu0
    %v967 = vadd.f32 0.0, %v966
    %v968 = vpop.f32.mrb[0].mxu0
    %969 = vdwg.mxu0
    %v970 = vadd.f32 %v897, %v967
    %v971 = vxor.u32 %v970, 2147483648
    %v972 = vmul.f32 %v971, 1.442695
    %v973 = vpow.pop %v972
    %v974 = vadd.f32 %v973, 1.0
    %v975 = vrcp.pop %v974
    %v976 = vmul.f32 1.0, %v975
    %v977 = vadd.f32 %v967, %v426
    %979 = vrot.lane.b32.xlu0 %v977, 64
    %v980 = vpop.permute.xlu0 %979
    %v982 = vmul.f32 %v976, %v980
    %984 = vrot.lane.b32.xlu0 %v982, 64
    %v985 = vpop.permute.xlu0 %984
    %v987 = vadd.f32 %v897, %v985
    %v988 = vtanh.pop %v987
    %v989 = vsub.f32 %v889, %v988
    %991 = vrot.lane.b32.xlu0 %v989, 96
    %v992 = vpop.permute.xlu0 %991
    %v994 = vmul.f32 %v976, %v992
    %996 = vrot.lane.b32.xlu0 %v994, 32
    %v997 = vpop.permute.xlu0 %996
    %v999 = vadd.f32 %v988, %v997
    %1001 = vrot.lane.b32.xlu0 %v999, 64
    %v1002 = vpop.permute.xlu0 %1001
    %s1004 = scalar_lea.vmem [#allocation3], 40
    %1005 = vst.msk [vmem:[%s1004] sm:$0xff] %vm344, %v1002
    %s1006 = scalar_lea.vmem [#allocation2], 48
    %v1007 = vld [vmem:[%s1006] sm:$0xff]
    %v1008 = vsel %vm344, %v1002, 0
    %1010 = vmatprep.subr.mxu0 0.0
    %1011 = vmatpush1.msra.mxu0 %v333
    %1012 = vmatprep.subr.mxu0 0.0
    %1013 = vmatpush1.msra.mxu0 %v334
    %1014 = vmatprep.subr.mxu0 0.0
    %1015 = vmatpush1.msra.mxu0 %v335
    %1016 = vmatprep.subr.mxu0 0.0
    %1017 = vmatpush1.msra.mxu0 %v336
    %1018 = vmatprep.subr.mxu0 0.0
    %1019 = vmatpush1.msra.mxu0 0.0
    %1020 = vmatprep.subr.mxu0 0.0
    %1021 = vmatpush1.msra.mxu0 0.0
    %1022 = vmatprep.subr.mxu0 0.0
    %1023 = vmatpush1.msra.mxu0 0.0
    %1024 = vmatprep.subr.mxu0 0.0
    %1025 = vmatpush1.msra.mxu0 0.0
    %1026 = vmatprep.subr.mxu0 0.0
    %1027 = vmatpush1.msra.mxu0 0.0
    %1028 = vmatprep.subr.mxu0 0.0
    %1029 = vmatpush1.msra.mxu0 0.0
    %1030 = vmatprep.subr.mxu0 0.0
    %1031 = vmatpush1.msra.mxu0 0.0
    %1032 = vmatprep.subr.mxu0 0.0
    %1033 = vmatpush1.msra.mxu0 0.0
    %1034 = vmatprep.subr.mxu0 0.0
    %1035 = vmatpush1.msra.mxu0 0.0
    %1036 = vmatprep.subr.mxu0 0.0
    %1037 = vmatpush1.msra.mxu0 0.0
    %1038 = vmatprep.subr.mxu0 0.0
    %1039 = vmatpush1.msra.mxu0 0.0
    %1040 = vmatprep.subr.mxu0 0.0
    %1041 = vmatpush1.msra.mxu0 0.0
    %1042 = vmatprep.subr.mxu0 0.0
    %1043 = vmatpush1.msra.mxu0 0.0
    %1044 = vmatprep.subr.mxu0 0.0
    %1045 = vmatpush1.msra.mxu0 0.0
    %1046 = vmatprep.subr.mxu0 0.0
    %1047 = vmatpush1.msra.mxu0 0.0
    %1048 = vmatprep.subr.mxu0 0.0
    %1049 = vmatpush1.msra.mxu0 0.0
    %1050 = vmatprep.subr.mxu0 0.0
    %1051 = vmatpush1.msra.mxu0 0.0
    %1052 = vmatprep.subr.mxu0 0.0
    %1053 = vmatpush1.msra.mxu0 0.0
    %1054 = vmatprep.subr.mxu0 0.0
    %1055 = vmatpush1.msra.mxu0 0.0
    %1056 = vmatprep.subr.mxu0 0.0
    %1057 = vmatpush1.msra.mxu0 0.0
    %1058 = vmatprep.subr.mxu0 0.0
    %1059 = vmatpush1.msra.mxu0 0.0
    %1060 = vmatprep.subr.mxu0 0.0
    %1061 = vmatpush1.msra.mxu0 0.0
    %1062 = vmatprep.subr.mxu0 0.0
    %1063 = vmatpush1.msra.mxu0 0.0
    %1064 = vmatprep.subr.mxu0 0.0
    %1065 = vmatpush1.msra.mxu0 0.0
    %1066 = vmatprep.subr.mxu0 0.0
    %1067 = vmatpush1.msra.mxu0 0.0
    %1068 = vmatprep.subr.mxu0 0.0
    %1069 = vmatpush1.msra.mxu0 0.0
    %1070 = vmatprep.subr.mxu0 0.0
    %1071 = vmatpush1.msra.mxu0 0.0
    %1072 = vmatprep.subr.mxu0 0.0
    %1073 = vmatpush1.msra.mxu0 0.0
    %1074 = vmatprep.mubr.f32.mxu0 0.0
    %1075 = vmatmul.mubr.f32.gmra.mrb[0].mxu0 %v1008
    %v1076 = vpop.f32.mrb[0].mxu0
    %v1077 = vadd.f32 0.0, %v1076
    %v1078 = vpop.f32.mrb[0].mxu0
    %1079 = vdwg.mxu0
    %v1080 = vadd.f32 %v1007, %v1077
    %v1081 = vxor.u32 %v1080, 2147483648
    %v1082 = vmul.f32 %v1081, 1.442695
    %v1083 = vpow.pop %v1082
    %v1084 = vadd.f32 %v1083, 1.0
    %v1085 = vrcp.pop %v1084
    %v1086 = vmul.f32 1.0, %v1085
    %v1087 = vadd.f32 %v1077, %v426
    %1089 = vrot.lane.b32.xlu0 %v1087, 64
    %v1090 = vpop.permute.xlu0 %1089
    %v1092 = vmul.f32 %v1086, %v1090
    %1094 = vrot.lane.b32.xlu0 %v1092, 64
    %v1095 = vpop.permute.xlu0 %1094
    %v1097 = vadd.f32 %v1007, %v1095
    %v1098 = vtanh.pop %v1097
    %v1099 = vsub.f32 %v999, %v1098
    %1101 = vrot.lane.b32.xlu0 %v1099, 96
    %v1102 = vpop.permute.xlu0 %1101
    %v1104 = vmul.f32 %v1086, %v1102
    %1106 = vrot.lane.b32.xlu0 %v1104, 32
    %v1107 = vpop.permute.xlu0 %1106
    %v1109 = vadd.f32 %v1098, %v1107
    %1111 = vrot.lane.b32.xlu0 %v1109, 64
    %v1112 = vpop.permute.xlu0 %1111
    %s1114 = scalar_lea.vmem [#allocation3], 48
    %1115 = vst.msk [vmem:[%s1114] sm:$0xff] %vm344, %v1112
    %s1116 = scalar_lea.vmem [#allocation2], 56
    %v1117 = vld [vmem:[%s1116] sm:$0xff]
    %v1118 = vsel %vm344, %v1112, 0
    %1120 = vmatprep.subr.mxu0 0.0
    %1121 = vmatpush1.msra.mxu0 %v333
    %1122 = vmatprep.subr.mxu0 0.0
    %1123 = vmatpush1.msra.mxu0 %v334
    %1124 = vmatprep.subr.mxu0 0.0
    %1125 = vmatpush1.msra.mxu0 %v335
    %1126 = vmatprep.subr.mxu0 0.0
    %1127 = vmatpush1.msra.mxu0 %v336
    %1128 = vmatprep.subr.mxu0 0.0
    %1129 = vmatpush1.msra.mxu0 0.0
    %1130 = vmatprep.subr.mxu0 0.0
    %1131 = vmatpush1.msra.mxu0 0.0
    %1132 = vmatprep.subr.mxu0 0.0
    %1133 = vmatpush1.msra.mxu0 0.0
    %1134 = vmatprep.subr.mxu0 0.0
    %1135 = vmatpush1.msra.mxu0 0.0
    %1136 = vmatprep.subr.mxu0 0.0
    %1137 = vmatpush1.msra.mxu0 0.0
    %1138 = vmatprep.subr.mxu0 0.0
    %1139 = vmatpush1.msra.mxu0 0.0
    %1140 = vmatprep.subr.mxu0 0.0
    %1141 = vmatpush1.msra.mxu0 0.0
    %1142 = vmatprep.subr.mxu0 0.0
    %1143 = vmatpush1.msra.mxu0 0.0
    %1144 = vmatprep.subr.mxu0 0.0
    %1145 = vmatpush1.msra.mxu0 0.0
    %1146 = vmatprep.subr.mxu0 0.0
    %1147 = vmatpush1.msra.mxu0 0.0
    %1148 = vmatprep.subr.mxu0 0.0
    %1149 = vmatpush1.msra.mxu0 0.0
    %1150 = vmatprep.subr.mxu0 0.0
    %1151 = vmatpush1.msra.mxu0 0.0
    %1152 = vmatprep.subr.mxu0 0.0
    %1153 = vmatpush1.msra.mxu0 0.0
    %1154 = vmatprep.subr.mxu0 0.0
    %1155 = vmatpush1.msra.mxu0 0.0
    %1156 = vmatprep.subr.mxu0 0.0
    %1157 = vmatpush1.msra.mxu0 0.0
    %1158 = vmatprep.subr.mxu0 0.0
    %1159 = vmatpush1.msra.mxu0 0.0
    %1160 = vmatprep.subr.mxu0 0.0
    %1161 = vmatpush1.msra.mxu0 0.0
    %1162 = vmatprep.subr.mxu0 0.0
    %1163 = vmatpush1.msra.mxu0 0.0
    %1164 = vmatprep.subr.mxu0 0.0
    %1165 = vmatpush1.msra.mxu0 0.0
    %1166 = vmatprep.subr.mxu0 0.0
    %1167 = vmatpush1.msra.mxu0 0.0
    %1168 = vmatprep.subr.mxu0 0.0
    %1169 = vmatpush1.msra.mxu0 0.0
    %1170 = vmatprep.subr.mxu0 0.0
    %1171 = vmatpush1.msra.mxu0 0.0
    %1172 = vmatprep.subr.mxu0 0.0
    %1173 = vmatpush1.msra.mxu0 0.0
    %1174 = vmatprep.subr.mxu0 0.0
    %1175 = vmatpush1.msra.mxu0 0.0
    %1176 = vmatprep.subr.mxu0 0.0
    %1177 = vmatpush1.msra.mxu0 0.0
    %1178 = vmatprep.subr.mxu0 0.0
    %1179 = vmatpush1.msra.mxu0 0.0
    %1180 = vmatprep.subr.mxu0 0.0
    %1181 = vmatpush1.msra.mxu0 0.0
    %1182 = vmatprep.subr.mxu0 0.0
    %1183 = vmatpush1.msra.mxu0 0.0
    %1184 = vmatprep.mubr.f32.mxu0 0.0
    %1185 = vmatmul.mubr.f32.gmra.mrb[0].mxu0 %v1118
    %v1186 = vpop.f32.mrb[0].mxu0
    %v1187 = vadd.f32 0.0, %v1186
    %v1188 = vpop.f32.mrb[0].mxu0
    %1189 = vdwg.mxu0
    %v1190 = vadd.f32 %v1117, %v1187
    %v1191 = vxor.u32 %v1190, 2147483648
    %v1192 = vmul.f32 %v1191, 1.442695
    %v1193 = vpow.pop %v1192
    %v1194 = vadd.f32 %v1193, 1.0
    %v1195 = vrcp.pop %v1194
    %v1196 = vmul.f32 1.0, %v1195
    %v1197 = vadd.f32 %v1187, %v426
    %1199 = vrot.lane.b32.xlu0 %v1197, 64
    %v1200 = vpop.permute.xlu0 %1199
    %v1202 = vmul.f32 %v1196, %v1200
    %1204 = vrot.lane.b32.xlu0 %v1202, 64
    %v1205 = vpop.permute.xlu0 %1204
    %v1207 = vadd.f32 %v1117, %v1205
    %v1208 = vtanh.pop %v1207
    %v1209 = vsub.f32 %v1109, %v1208
    %1211 = vrot.lane.b32.xlu0 %v1209, 96
    %v1212 = vpop.permute.xlu0 %1211
    %v1214 = vmul.f32 %v1196, %v1212
    %1216 = vrot.lane.b32.xlu0 %v1214, 32
    %v1217 = vpop.permute.xlu0 %1216
    %v1219 = vadd.f32 %v1208, %v1217
    %1221 = vrot.lane.b32.xlu0 %v1219, 64
    %v1222 = vpop.permute.xlu0 %1221
    %s1224 = scalar_lea.vmem [#allocation3], 56
    %1225 = vst.msk [vmem:[%s1224] sm:$0xff] %vm344, %v1222
    %v1226 = vld [vmem:[#allocation3] sm:$0xff]
    %v1227 = vld [vmem:[#allocation3 + $0x8] sm:$0xff]
    %v1228 = vld [vmem:[#allocation3 + $0x10] sm:$0xff]
    %v1229 = vld [vmem:[#allocation3 + $0x18] sm:$0xff]
    %v1230 = vld [vmem:[#allocation3 + $0x20] sm:$0xff]
    %v1231 = vld [vmem:[#allocation3 + $0x28] sm:$0xff]
    %v1232 = vld [vmem:[#allocation3 + $0x30] sm:$0xff]
    %v1233 = vld [vmem:[#allocation3 + $0x38] sm:$0xff]
    %v1234 = vld [vmem:[#allocation8] sm:$0xff]
    %v1235 = vld [vmem:[#allocation8 + $0x8] sm:$0xff]
    %v1236 = vld [vmem:[#allocation8 + $0x10] sm:$0xff]
    %v1237 = vld [vmem:[#allocation8 + $0x18] sm:$0xff]
    %v1238 = vld [vmem:[#allocation11] sm:$0x1]
    %v1240 = vlaneseq
    %v1241 = vshrl.u32 %v1240, 7
    %v1242 = vsub.s32 0, %v1241
    %v1243 = vrot.slane %v1238, %v1242
    %v1246 = vsel %vm344, %v1226, 0
    %v1249 = vsel %vm344, %v1227, 0
    %v1252 = vsel %vm344, %v1228, 0
    %v1255 = vsel %vm344, %v1229, 0
    %v1258 = vsel %vm344, %v1230, 0
    %v1261 = vsel %vm344, %v1231, 0
    %v1264 = vsel %vm344, %v1232, 0
    %v1267 = vsel %vm344, %v1233, 0
    %1269 = vmatprep.subr.mxu0 0.0
    %1270 = vmatpush1.msra.mxu0 %v1234
    %1271 = vmatprep.subr.mxu0 0.0
    %1272 = vmatpush1.msra.mxu0 %v1235
    %1273 = vmatprep.subr.mxu0 0.0
    %1274 = vmatpush1.msra.mxu0 %v1236
    %1275 = vmatprep.subr.mxu0 0.0
    %1276 = vmatpush1.msra.mxu0 %v1237
    %1277 = vmatprep.subr.mxu0 0.0
    %1278 = vmatpush1.msra.mxu0 0.0
    %1279 = vmatprep.subr.mxu0 0.0
    %1280 = vmatpush1.msra.mxu0 0.0
    %1281 = vmatprep.subr.mxu0 0.0
    %1282 = vmatpush1.msra.mxu0 0.0
    %1283 = vmatprep.subr.mxu0 0.0
    %1284 = vmatpush1.msra.mxu0 0.0
    %1285 = vmatprep.subr.mxu0 0.0
    %1286 = vmatpush1.msra.mxu0 0.0
    %1287 = vmatprep.subr.mxu0 0.0
    %1288 = vmatpush1.msra.mxu0 0.0
    %1289 = vmatprep.subr.mxu0 0.0
    %1290 = vmatpush1.msra.mxu0 0.0
    %1291 = vmatprep.subr.mxu0 0.0
    %1292 = vmatpush1.msra.mxu0 0.0
    %1293 = vmatprep.subr.mxu0 0.0
    %1294 = vmatpush1.msra.mxu0 0.0
    %1295 = vmatprep.subr.mxu0 0.0
    %1296 = vmatpush1.msra.mxu0 0.0
    %1297 = vmatprep.subr.mxu0 0.0
    %1298 = vmatpush1.msra.mxu0 0.0
    %1299 = vmatprep.subr.mxu0 0.0
    %1300 = vmatpush1.msra.mxu0 0.0
    %1301 = vmatprep.subr.mxu0 0.0
    %1302 = vmatpush1.msra.mxu0 0.0
    %1303 = vmatprep.subr.mxu0 0.0
    %1304 = vmatpush1.msra.mxu0 0.0
    %1305 = vmatprep.subr.mxu0 0.0
    %1306 = vmatpush1.msra.mxu0 0.0
    %1307 = vmatprep.subr.mxu0 0.0
    %1308 = vmatpush1.msra.mxu0 0.0
    %1309 = vmatprep.subr.mxu0 0.0
    %1310 = vmatpush1.msra.mxu0 0.0
    %1311 = vmatprep.subr.mxu0 0.0
    %1312 = vmatpush1.msra.mxu0 0.0
    %1313 = vmatprep.subr.mxu0 0.0
    %1314 = vmatpush1.msra.mxu0 0.0
    %1315 = vmatprep.subr.mxu0 0.0
    %1316 = vmatpush1.msra.mxu0 0.0
    %1317 = vmatprep.subr.mxu0 0.0
    %1318 = vmatpush1.msra.mxu0 0.0
    %1319 = vmatprep.subr.mxu0 0.0
    %1320 = vmatpush1.msra.mxu0 0.0
    %1321 = vmatprep.subr.mxu0 0.0
    %1322 = vmatpush1.msra.mxu0 0.0
    %1323 = vmatprep.subr.mxu0 0.0
    %1324 = vmatpush1.msra.mxu0 0.0
    %1325 = vmatprep.subr.mxu0 0.0
    %1326 = vmatpush1.msra.mxu0 0.0
    %1327 = vmatprep.subr.mxu0 0.0
    %1328 = vmatpush1.msra.mxu0 0.0
    %1329 = vmatprep.subr.mxu0 0.0
    %1330 = vmatpush1.msra.mxu0 0.0
    %1331 = vmatprep.subr.mxu0 0.0
    %1332 = vmatpush1.msra.mxu0 0.0
    %1333 = vmatprep.mubr.f32.mxu0 0.0
    %1334 = vmatmul.mubr.f32.gmra.mrb[0].mxu0 %v1246
    %v1335 = vpop.f32.mrb[0].mxu0
    %v1336 = vadd.f32 %v1243, %v1335
    %v1337 = vpop.f32.mrb[0].mxu0
    %1338 = vmatprep.mubr.f32.mxu0 0.0
    %1339 = vmatmul.mubr.f32.gmra.mrb[0].mxu0 %v1249
    %v1340 = vpop.f32.mrb[0].mxu0
    %v1341 = vadd.f32 %v1243, %v1340
    %v1342 = vpop.f32.mrb[0].mxu0
    %1343 = vmatprep.mubr.f32.mxu0 0.0
    %1344 = vmatmul.mubr.f32.gmra.mrb[0].mxu0 %v1252
    %v1345 = vpop.f32.mrb[0].mxu0
    %v1346 = vadd.f32 %v1243, %v1345
    %v1347 = vpop.f32.mrb[0].mxu0
    %1348 = vmatprep.mubr.f32.mxu0 0.0
    %1349 = vmatmul.mubr.f32.gmra.mrb[0].mxu0 %v1255
    %v1350 = vpop.f32.mrb[0].mxu0
    %v1351 = vadd.f32 %v1243, %v1350
    %v1352 = vpop.f32.mrb[0].mxu0
    %1353 = vmatprep.mubr.f32.mxu0 0.0
    %1354 = vmatmul.mubr.f32.gmra.mrb[0].mxu0 %v1258
    %v1355 = vpop.f32.mrb[0].mxu0
    %v1356 = vadd.f32 %v1243, %v1355
    %v1357 = vpop.f32.mrb[0].mxu0
    %1358 = vmatprep.mubr.f32.mxu0 0.0
    %1359 = vmatmul.mubr.f32.gmra.mrb[0].mxu0 %v1261
    %v1360 = vpop.f32.mrb[0].mxu0
    %v1361 = vadd.f32 %v1243, %v1360
    %v1362 = vpop.f32.mrb[0].mxu0
    %1363 = vmatprep.mubr.f32.mxu0 0.0
    %1364 = vmatmul.mubr.f32.gmra.mrb[0].mxu0 %v1264
    %v1365 = vpop.f32.mrb[0].mxu0
    %v1366 = vadd.f32 %v1243, %v1365
    %v1367 = vpop.f32.mrb[0].mxu0
    %1368 = vmatprep.mubr.f32.mxu0 0.0
    %1369 = vmatmul.mubr.f32.gmra.mrb[0].mxu0 %v1267
    %v1370 = vpop.f32.mrb[0].mxu0
    %v1371 = vadd.f32 %v1243, %v1370
    %v1372 = vpop.f32.mrb[0].mxu0
    %1373 = vdwg.mxu0
    %1374 = vst.msk [vmem:[#allocation2] sm:$0xff] %vm324, %v1336
    %1375 = vst.msk [vmem:[#allocation2 + $0x8] sm:$0xff] %vm324, %v1341
    %1376 = vst.msk [vmem:[#allocation2 + $0x10] sm:$0xff] %vm324, %v1346
    %1377 = vst.msk [vmem:[#allocation2 + $0x18] sm:$0xff] %vm324, %v1351
    %1378 = vst.msk [vmem:[#allocation2 + $0x20] sm:$0xff] %vm324, %v1356
    %1379 = vst.msk [vmem:[#allocation2 + $0x28] sm:$0xff] %vm324, %v1361
    %1380 = vst.msk [vmem:[#allocation2 + $0x30] sm:$0xff] %vm324, %v1366
    %1381 = vst.msk [vmem:[#allocation2 + $0x38] sm:$0xff] %vm324, %v1371
    %v1382 = vld [vmem:[#allocation9] sm:$0xff]
    %v1383 = vld [vmem:[#allocation9 + $0x8] sm:$0xff]
    %v1384 = vld [vmem:[#allocation9 + $0x10] sm:$0xff]
    %v1385 = vld [vmem:[#allocation9 + $0x18] sm:$0xff]
    %v1386 = vld [vmem:[#allocation12] sm:$0x1]
    %v1388 = vlaneseq
    %v1389 = vshrl.u32 %v1388, 7
    %v1390 = vsub.s32 0, %v1389
    %v1391 = vrot.slane %v1386, %v1390
    %v1392 = vld [vmem:[#allocation2] sm:$0xff]
    %1393 = vmatprep.subr.mxu0 0.0
    %1394 = vmatpush1.msra.mxu0 %v1382
    %1395 = vmatprep.subr.mxu0 0.0
    %1396 = vmatpush1.msra.mxu0 %v1383
    %1397 = vmatprep.subr.mxu0 0.0
    %1398 = vmatpush1.msra.mxu0 %v1384
    %1399 = vmatprep.subr.mxu0 0.0
    %1400 = vmatpush1.msra.mxu0 %v1385
    %1401 = vmatprep.subr.mxu0 0.0
    %1402 = vmatpush1.msra.mxu0 0.0
    %1403 = vmatprep.subr.mxu0 0.0
    %1404 = vmatpush1.msra.mxu0 0.0
    %1405 = vmatprep.subr.mxu0 0.0
    %1406 = vmatpush1.msra.mxu0 0.0
    %1407 = vmatprep.subr.mxu0 0.0
    %1408 = vmatpush1.msra.mxu0 0.0
    %1409 = vmatprep.subr.mxu0 0.0
    %1410 = vmatpush1.msra.mxu0 0.0
    %1411 = vmatprep.subr.mxu0 0.0
    %1412 = vmatpush1.msra.mxu0 0.0
    %1413 = vmatprep.subr.mxu0 0.0
    %1414 = vmatpush1.msra.mxu0 0.0
    %1415 = vmatprep.subr.mxu0 0.0
    %1416 = vmatpush1.msra.mxu0 0.0
    %1417 = vmatprep.subr.mxu0 0.0
    %1418 = vmatpush1.msra.mxu0 0.0
    %1419 = vmatprep.subr.mxu0 0.0
    %1420 = vmatpush1.msra.mxu0 0.0
    %1421 = vmatprep.subr.mxu0 0.0
    %1422 = vmatpush1.msra.mxu0 0.0
    %1423 = vmatprep.subr.mxu0 0.0
    %1424 = vmatpush1.msra.mxu0 0.0
    %1425 = vmatprep.subr.mxu0 0.0
    %1426 = vmatpush1.msra.mxu0 0.0
    %1427 = vmatprep.subr.mxu0 0.0
    %1428 = vmatpush1.msra.mxu0 0.0
    %1429 = vmatprep.subr.mxu0 0.0
    %1430 = vmatpush1.msra.mxu0 0.0
    %1431 = vmatprep.subr.mxu0 0.0
    %1432 = vmatpush1.msra.mxu0 0.0
    %1433 = vmatprep.subr.mxu0 0.0
    %1434 = vmatpush1.msra.mxu0 0.0
    %1435 = vmatprep.subr.mxu0 0.0
    %1436 = vmatpush1.msra.mxu0 0.0
    %1437 = vmatprep.subr.mxu0 0.0
    %1438 = vmatpush1.msra.mxu0 0.0
    %1439 = vmatprep.subr.mxu0 0.0
    %1440 = vmatpush1.msra.mxu0 0.0
    %1441 = vmatprep.subr.mxu0 0.0
    %1442 = vmatpush1.msra.mxu0 0.0
    %1443 = vmatprep.subr.mxu0 0.0
    %1444 = vmatpush1.msra.mxu0 0.0
    %1445 = vmatprep.subr.mxu0 0.0
    %1446 = vmatpush1.msra.mxu0 0.0
    %1447 = vmatprep.subr.mxu0 0.0
    %1448 = vmatpush1.msra.mxu0 0.0
    %1449 = vmatprep.subr.mxu0 0.0
    %1450 = vmatpush1.msra.mxu0 0.0
    %1451 = vmatprep.subr.mxu0 0.0
    %1452 = vmatpush1.msra.mxu0 0.0
    %1453 = vmatprep.subr.mxu0 0.0
    %1454 = vmatpush1.msra.mxu0 0.0
    %1455 = vmatprep.subr.mxu0 0.0
    %1456 = vmatpush1.msra.mxu0 0.0
    %1457 = vmatprep.mubr.f32.mxu0 0.0
    %1458 = vmatmul.mubr.f32.gmra.mrb[0].mxu0 %v346
    %v1459 = vpop.f32.mrb[0].mxu0
    %v1460 = vadd.f32 0.0, %v1459
    %v1461 = vpop.f32.mrb[0].mxu0
    %1462 = vdwg.mxu0
    %v1463 = vadd.f32 %v1392, %v1460
    %v1464 = vxor.u32 %v1463, 2147483648
    %v1465 = vmul.f32 %v1464, 1.442695
    %v1466 = vpow.pop %v1465
    %v1467 = vadd.f32 %v1466, 1.0
    %v1468 = vrcp.pop %v1467
    %v1469 = vmul.f32 1.0, %v1468
    %1470 = vrot.lane.b32.xlu0 %v1391, 64
    %v1471 = vpop.permute.xlu0 %1470
    %v1473 = vadd.f32 %v1460, %v1471
    %1475 = vrot.lane.b32.xlu0 %v1473, 64
    %v1476 = vpop.permute.xlu0 %1475
    %v1478 = vmul.f32 %v1469, %v1476
    %1480 = vrot.lane.b32.xlu0 %v1478, 64
    %v1481 = vpop.permute.xlu0 %1480
    %v1483 = vadd.f32 %v1392, %v1481
    %v1484 = vtanh.pop %v1483
    %v1485 = vsub.f32 0.0, %v1484
    %1487 = vrot.lane.b32.xlu0 %v1485, 96
    %v1488 = vpop.permute.xlu0 %1487
    %v1490 = vmul.f32 %v1469, %v1488
    %1492 = vrot.lane.b32.xlu0 %v1490, 32
    %v1493 = vpop.permute.xlu0 %1492
    %v1495 = vadd.f32 %v1484, %v1493
    %1497 = vrot.lane.b32.xlu0 %v1495, 64
    %v1498 = vpop.permute.xlu0 %1497
    %1500 = vst.msk [vmem:[#allocation3] sm:$0xff] %vm344, %v1498
    %v1501 = vld [vmem:[%s456] sm:$0xff]
    %v1502 = vsel %vm344, %v1498, 0
    %1504 = vmatprep.subr.mxu0 0.0
    %1505 = vmatpush1.msra.mxu0 %v1382
    %1506 = vmatprep.subr.mxu0 0.0
    %1507 = vmatpush1.msra.mxu0 %v1383
    %1508 = vmatprep.subr.mxu0 0.0
    %1509 = vmatpush1.msra.mxu0 %v1384
    %1510 = vmatprep.subr.mxu0 0.0
    %1511 = vmatpush1.msra.mxu0 %v1385
    %1512 = vmatprep.subr.mxu0 0.0
    %1513 = vmatpush1.msra.mxu0 0.0
    %1514 = vmatprep.subr.mxu0 0.0
    %1515 = vmatpush1.msra.mxu0 0.0
    %1516 = vmatprep.subr.mxu0 0.0
    %1517 = vmatpush1.msra.mxu0 0.0
    %1518 = vmatprep.subr.mxu0 0.0
    %1519 = vmatpush1.msra.mxu0 0.0
    %1520 = vmatprep.subr.mxu0 0.0
    %1521 = vmatpush1.msra.mxu0 0.0
    %1522 = vmatprep.subr.mxu0 0.0
    %1523 = vmatpush1.msra.mxu0 0.0
    %1524 = vmatprep.subr.mxu0 0.0
    %1525 = vmatpush1.msra.mxu0 0.0
    %1526 = vmatprep.subr.mxu0 0.0
    %1527 = vmatpush1.msra.mxu0 0.0
    %1528 = vmatprep.subr.mxu0 0.0
    %1529 = vmatpush1.msra.mxu0 0.0
    %1530 = vmatprep.subr.mxu0 0.0
    %1531 = vmatpush1.msra.mxu0 0.0
    %1532 = vmatprep.subr.mxu0 0.0
    %1533 = vmatpush1.msra.mxu0 0.0
    %1534 = vmatprep.subr.mxu0 0.0
    %1535 = vmatpush1.msra.mxu0 0.0
    %1536 = vmatprep.subr.mxu0 0.0
    %1537 = vmatpush1.msra.mxu0 0.0
    %1538 = vmatprep.subr.mxu0 0.0
    %1539 = vmatpush1.msra.mxu0 0.0
    %1540 = vmatprep.subr.mxu0 0.0
    %1541 = vmatpush1.msra.mxu0 0.0
    %1542 = vmatprep.subr.mxu0 0.0
    %1543 = vmatpush1.msra.mxu0 0.0
    %1544 = vmatprep.subr.mxu0 0.0
    %1545 = vmatpush1.msra.mxu0 0.0
    %1546 = vmatprep.subr.mxu0 0.0
    %1547 = vmatpush1.msra.mxu0 0.0
    %1548 = vmatprep.subr.mxu0 0.0
    %1549 = vmatpush1.msra.mxu0 0.0
    %1550 = vmatprep.subr.mxu0 0.0
    %1551 = vmatpush1.msra.mxu0 0.0
    %1552 = vmatprep.subr.mxu0 0.0
    %1553 = vmatpush1.msra.mxu0 0.0
    %1554 = vmatprep.subr.mxu0 0.0
    %1555 = vmatpush1.msra.mxu0 0.0
    %1556 = vmatprep.subr.mxu0 0.0
    %1557 = vmatpush1.msra.mxu0 0.0
    %1558 = vmatprep.subr.mxu0 0.0
    %1559 = vmatpush1.msra.mxu0 0.0
    %1560 = vmatprep.subr.mxu0 0.0
    %1561 = vmatpush1.msra.mxu0 0.0
    %1562 = vmatprep.subr.mxu0 0.0
    %1563 = vmatpush1.msra.mxu0 0.0
    %1564 = vmatprep.subr.mxu0 0.0
    %1565 = vmatpush1.msra.mxu0 0.0
    %1566 = vmatprep.subr.mxu0 0.0
    %1567 = vmatpush1.msra.mxu0 0.0
    %1568 = vmatprep.mubr.f32.mxu0 0.0
    %1569 = vmatmul.mubr.f32.gmra.mrb[0].mxu0 %v1502
    %v1570 = vpop.f32.mrb[0].mxu0
    %v1571 = vadd.f32 0.0, %v1570
    %v1572 = vpop.f32.mrb[0].mxu0
    %1573 = vdwg.mxu0
    %v1574 = vadd.f32 %v1501, %v1571
    %v1575 = vxor.u32 %v1574, 2147483648
    %v1576 = vmul.f32 %v1575, 1.442695
    %v1577 = vpow.pop %v1576
    %v1578 = vadd.f32 %v1577, 1.0
    %v1579 = vrcp.pop %v1578
    %v1580 = vmul.f32 1.0, %v1579
    %v1581 = vadd.f32 %v1571, %v1471
    %1583 = vrot.lane.b32.xlu0 %v1581, 64
    %v1584 = vpop.permute.xlu0 %1583
    %v1586 = vmul.f32 %v1580, %v1584
    %1588 = vrot.lane.b32.xlu0 %v1586, 64
    %v1589 = vpop.permute.xlu0 %1588
    %v1591 = vadd.f32 %v1501, %v1589
    %v1592 = vtanh.pop %v1591
    %v1593 = vsub.f32 %v1495, %v1592
    %1595 = vrot.lane.b32.xlu0 %v1593, 96
    %v1596 = vpop.permute.xlu0 %1595
    %v1598 = vmul.f32 %v1580, %v1596
    %1600 = vrot.lane.b32.xlu0 %v1598, 32
    %v1601 = vpop.permute.xlu0 %1600
    %v1603 = vadd.f32 %v1592, %v1601
    %1605 = vrot.lane.b32.xlu0 %v1603, 64
    %v1606 = vpop.permute.xlu0 %1605
    %1608 = vst.msk [vmem:[%s564] sm:$0xff] %vm344, %v1606
    %v1609 = vld [vmem:[%s566] sm:$0xff]
    %v1610 = vsel %vm344, %v1606, 0
    %1612 = vmatprep.subr.mxu0 0.0
    %1613 = vmatpush1.msra.mxu0 %v1382
    %1614 = vmatprep.subr.mxu0 0.0
    %1615 = vmatpush1.msra.mxu0 %v1383
    %1616 = vmatprep.subr.mxu0 0.0
    %1617 = vmatpush1.msra.mxu0 %v1384
    %1618 = vmatprep.subr.mxu0 0.0
    %1619 = vmatpush1.msra.mxu0 %v1385
    %1620 = vmatprep.subr.mxu0 0.0
    %1621 = vmatpush1.msra.mxu0 0.0
    %1622 = vmatprep.subr.mxu0 0.0
    %1623 = vmatpush1.msra.mxu0 0.0
    %1624 = vmatprep.subr.mxu0 0.0
    %1625 = vmatpush1.msra.mxu0 0.0
    %1626 = vmatprep.subr.mxu0 0.0
    %1627 = vmatpush1.msra.mxu0 0.0
    %1628 = vmatprep.subr.mxu0 0.0
    %1629 = vmatpush1.msra.mxu0 0.0
    %1630 = vmatprep.subr.mxu0 0.0
    %1631 = vmatpush1.msra.mxu0 0.0
    %1632 = vmatprep.subr.mxu0 0.0
    %1633 = vmatpush1.msra.mxu0 0.0
    %1634 = vmatprep.subr.mxu0 0.0
    %1635 = vmatpush1.msra.mxu0 0.0
    %1636 = vmatprep.subr.mxu0 0.0
    %1637 = vmatpush1.msra.mxu0 0.0
    %1638 = vmatprep.subr.mxu0 0.0
    %1639 = vmatpush1.msra.mxu0 0.0
    %1640 = vmatprep.subr.mxu0 0.0
    %1641 = vmatpush1.msra.mxu0 0.0
    %1642 = vmatprep.subr.mxu0 0.0
    %1643 = vmatpush1.msra.mxu0 0.0
    %1644 = vmatprep.subr.mxu0 0.0
    %1645 = vmatpush1.msra.mxu0 0.0
    %1646 = vmatprep.subr.mxu0 0.0
    %1647 = vmatpush1.msra.mxu0 0.0
    %1648 = vmatprep.subr.mxu0 0.0
    %1649 = vmatpush1.msra.mxu0 0.0
    %1650 = vmatprep.subr.mxu0 0.0
    %1651 = vmatpush1.msra.mxu0 0.0
    %1652 = vmatprep.subr.mxu0 0.0
    %1653 = vmatpush1.msra.mxu0 0.0
    %1654 = vmatprep.subr.mxu0 0.0
    %1655 = vmatpush1.msra.mxu0 0.0
    %1656 = vmatprep.subr.mxu0 0.0
    %1657 = vmatpush1.msra.mxu0 0.0
    %1658 = vmatprep.subr.mxu0 0.0
    %1659 = vmatpush1.msra.mxu0 0.0
    %1660 = vmatprep.subr.mxu0 0.0
    %1661 = vmatpush1.msra.mxu0 0.0
    %1662 = vmatprep.subr.mxu0 0.0
    %1663 = vmatpush1.msra.mxu0 0.0
    %1664 = vmatprep.subr.mxu0 0.0
    %1665 = vmatpush1.msra.mxu0 0.0
    %1666 = vmatprep.subr.mxu0 0.0
    %1667 = vmatpush1.msra.mxu0 0.0
    %1668 = vmatprep.subr.mxu0 0.0
    %1669 = vmatpush1.msra.mxu0 0.0
    %1670 = vmatprep.subr.mxu0 0.0
    %1671 = vmatpush1.msra.mxu0 0.0
    %1672 = vmatprep.subr.mxu0 0.0
    %1673 = vmatpush1.msra.mxu0 0.0
    %1674 = vmatprep.subr.mxu0 0.0
    %1675 = vmatpush1.msra.mxu0 0.0
    %1676 = vmatprep.mubr.f32.mxu0 0.0
    %1677 = vmatmul.mubr.f32.gmra.mrb[0].mxu0 %v1610
    %v1678 = vpop.f32.mrb[0].mxu0
    %v1679 = vadd.f32 0.0, %v1678
    %v1680 = vpop.f32.mrb[0].mxu0
    %1681 = vdwg.mxu0
    %v1682 = vadd.f32 %v1609, %v1679
    %v1683 = vxor.u32 %v1682, 2147483648
    %v1684 = vmul.f32 %v1683, 1.442695
    %v1685 = vpow.pop %v1684
    %v1686 = vadd.f32 %v1685, 1.0
    %v1687 = vrcp.pop %v1686
    %v1688 = vmul.f32 1.0, %v1687
    %v1689 = vadd.f32 %v1679, %v1471
    %1691 = vrot.lane.b32.xlu0 %v1689, 64
    %v1692 = vpop.permute.xlu0 %1691
    %v1694 = vmul.f32 %v1688, %v1692
    %1696 = vrot.lane.b32.xlu0 %v1694, 64
    %v1697 = vpop.permute.xlu0 %1696
    %v1699 = vadd.f32 %v1609, %v1697
    %v1700 = vtanh.pop %v1699
    %v1701 = vsub.f32 %v1603, %v1700
    %1703 = vrot.lane.b32.xlu0 %v1701, 96
    %v1704 = vpop.permute.xlu0 %1703
    %v1706 = vmul.f32 %v1688, %v1704
    %1708 = vrot.lane.b32.xlu0 %v1706, 32
    %v1709 = vpop.permute.xlu0 %1708
    %v1711 = vadd.f32 %v1700, %v1709
    %1713 = vrot.lane.b32.xlu0 %v1711, 64
    %v1714 = vpop.permute.xlu0 %1713
    %1716 = vst.msk [vmem:[%s674] sm:$0xff] %vm344, %v1714
    %v1717 = vld [vmem:[%s676] sm:$0xff]
    %v1718 = vsel %vm344, %v1714, 0
    %1720 = vmatprep.subr.mxu0 0.0
    %1721 = vmatpush1.msra.mxu0 %v1382
    %1722 = vmatprep.subr.mxu0 0.0
    %1723 = vmatpush1.msra.mxu0 %v1383
    %1724 = vmatprep.subr.mxu0 0.0
    %1725 = vmatpush1.msra.mxu0 %v1384
    %1726 = vmatprep.subr.mxu0 0.0
    %1727 = vmatpush1.msra.mxu0 %v1385
    %1728 = vmatprep.subr.mxu0 0.0
    %1729 = vmatpush1.msra.mxu0 0.0
    %1730 = vmatprep.subr.mxu0 0.0
    %1731 = vmatpush1.msra.mxu0 0.0
    %1732 = vmatprep.subr.mxu0 0.0
    %1733 = vmatpush1.msra.mxu0 0.0
    %1734 = vmatprep.subr.mxu0 0.0
    %1735 = vmatpush1.msra.mxu0 0.0
    %1736 = vmatprep.subr.mxu0 0.0
    %1737 = vmatpush1.msra.mxu0 0.0
    %1738 = vmatprep.subr.mxu0 0.0
    %1739 = vmatpush1.msra.mxu0 0.0
    %1740 = vmatprep.subr.mxu0 0.0
    %1741 = vmatpush1.msra.mxu0 0.0
    %1742 = vmatprep.subr.mxu0 0.0
    %1743 = vmatpush1.msra.mxu0 0.0
    %1744 = vmatprep.subr.mxu0 0.0
    %1745 = vmatpush1.msra.mxu0 0.0
    %1746 = vmatprep.subr.mxu0 0.0
    %1747 = vmatpush1.msra.mxu0 0.0
    %1748 = vmatprep.subr.mxu0 0.0
    %1749 = vmatpush1.msra.mxu0 0.0
    %1750 = vmatprep.subr.mxu0 0.0
    %1751 = vmatpush1.msra.mxu0 0.0
    %1752 = vmatprep.subr.mxu0 0.0
    %1753 = vmatpush1.msra.mxu0 0.0
    %1754 = vmatprep.subr.mxu0 0.0
    %1755 = vmatpush1.msra.mxu0 0.0
    %1756 = vmatprep.subr.mxu0 0.0
    %1757 = vmatpush1.msra.mxu0 0.0
    %1758 = vmatprep.subr.mxu0 0.0
    %1759 = vmatpush1.msra.mxu0 0.0
    %1760 = vmatprep.subr.mxu0 0.0
    %1761 = vmatpush1.msra.mxu0 0.0
    %1762 = vmatprep.subr.mxu0 0.0
    %1763 = vmatpush1.msra.mxu0 0.0
    %1764 = vmatprep.subr.mxu0 0.0
    %1765 = vmatpush1.msra.mxu0 0.0
    %1766 = vmatprep.subr.mxu0 0.0
    %1767 = vmatpush1.msra.mxu0 0.0
    %1768 = vmatprep.subr.mxu0 0.0
    %1769 = vmatpush1.msra.mxu0 0.0
    %1770 = vmatprep.subr.mxu0 0.0
    %1771 = vmatpush1.msra.mxu0 0.0
    %1772 = vmatprep.subr.mxu0 0.0
    %1773 = vmatpush1.msra.mxu0 0.0
    %1774 = vmatprep.subr.mxu0 0.0
    %1775 = vmatpush1.msra.mxu0 0.0
    %1776 = vmatprep.subr.mxu0 0.0
    %1777 = vmatpush1.msra.mxu0 0.0
    %1778 = vmatprep.subr.mxu0 0.0
    %1779 = vmatpush1.msra.mxu0 0.0
    %1780 = vmatprep.subr.mxu0 0.0
    %1781 = vmatpush1.msra.mxu0 0.0
    %1782 = vmatprep.subr.mxu0 0.0
    %1783 = vmatpush1.msra.mxu0 0.0
    %1784 = vmatprep.mubr.f32.mxu0 0.0
    %1785 = vmatmul.mubr.f32.gmra.mrb[0].mxu0 %v1718
    %v1786 = vpop.f32.mrb[0].mxu0
    %v1787 = vadd.f32 0.0, %v1786
    %v1788 = vpop.f32.mrb[0].mxu0
    %1789 = vdwg.mxu0
    %v1790 = vadd.f32 %v1717, %v1787
    %v1791 = vxor.u32 %v1790, 2147483648
    %v1792 = vmul.f32 %v1791, 1.442695
    %v1793 = vpow.pop %v1792
    %v1794 = vadd.f32 %v1793, 1.0
    %v1795 = vrcp.pop %v1794
    %v1796 = vmul.f32 1.0, %v1795
    %v1797 = vadd.f32 %v1787, %v1471
    %1799 = vrot.lane.b32.xlu0 %v1797, 64
    %v1800 = vpop.permute.xlu0 %1799
    %v1802 = vmul.f32 %v1796, %v1800
    %1804 = vrot.lane.b32.xlu0 %v1802, 64
    %v1805 = vpop.permute.xlu0 %1804
    %v1807 = vadd.f32 %v1717, %v1805
    %v1808 = vtanh.pop %v1807
    %v1809 = vsub.f32 %v1711, %v1808
    %1811 = vrot.lane.b32.xlu0 %v1809, 96
    %v1812 = vpop.permute.xlu0 %1811
    %v1814 = vmul.f32 %v1796, %v1812
    %1816 = vrot.lane.b32.xlu0 %v1814, 32
    %v1817 = vpop.permute.xlu0 %1816
    %v1819 = vadd.f32 %v1808, %v1817
    %1821 = vrot.lane.b32.xlu0 %v1819, 64
    %v1822 = vpop.permute.xlu0 %1821
    %1824 = vst.msk [vmem:[%s784] sm:$0xff] %vm344, %v1822
    %v1825 = vld [vmem:[%s786] sm:$0xff]
    %v1826 = vsel %vm344, %v1822, 0
    %1828 = vmatprep.subr.mxu0 0.0
    %1829 = vmatpush1.msra.mxu0 %v1382
    %1830 = vmatprep.subr.mxu0 0.0
    %1831 = vmatpush1.msra.mxu0 %v1383
    %1832 = vmatprep.subr.mxu0 0.0
    %1833 = vmatpush1.msra.mxu0 %v1384
    %1834 = vmatprep.subr.mxu0 0.0
    %1835 = vmatpush1.msra.mxu0 %v1385
    %1836 = vmatprep.subr.mxu0 0.0
    %1837 = vmatpush1.msra.mxu0 0.0
    %1838 = vmatprep.subr.mxu0 0.0
    %1839 = vmatpush1.msra.mxu0 0.0
    %1840 = vmatprep.subr.mxu0 0.0
    %1841 = vmatpush1.msra.mxu0 0.0
    %1842 = vmatprep.subr.mxu0 0.0
    %1843 = vmatpush1.msra.mxu0 0.0
    %1844 = vmatprep.subr.mxu0 0.0
    %1845 = vmatpush1.msra.mxu0 0.0
    %1846 = vmatprep.subr.mxu0 0.0
    %1847 = vmatpush1.msra.mxu0 0.0
    %1848 = vmatprep.subr.mxu0 0.0
    %1849 = vmatpush1.msra.mxu0 0.0
    %1850 = vmatprep.subr.mxu0 0.0
    %1851 = vmatpush1.msra.mxu0 0.0
    %1852 = vmatprep.subr.mxu0 0.0
    %1853 = vmatpush1.msra.mxu0 0.0
    %1854 = vmatprep.subr.mxu0 0.0
    %1855 = vmatpush1.msra.mxu0 0.0
    %1856 = vmatprep.subr.mxu0 0.0
    %1857 = vmatpush1.msra.mxu0 0.0
    %1858 = vmatprep.subr.mxu0 0.0
    %1859 = vmatpush1.msra.mxu0 0.0
    %1860 = vmatprep.subr.mxu0 0.0
    %1861 = vmatpush1.msra.mxu0 0.0
    %1862 = vmatprep.subr.mxu0 0.0
    %1863 = vmatpush1.msra.mxu0 0.0
    %1864 = vmatprep.subr.mxu0 0.0
    %1865 = vmatpush1.msra.mxu0 0.0
    %1866 = vmatprep.subr.mxu0 0.0
    %1867 = vmatpush1.msra.mxu0 0.0
    %1868 = vmatprep.subr.mxu0 0.0
    %1869 = vmatpush1.msra.mxu0 0.0
    %1870 = vmatprep.subr.mxu0 0.0
    %1871 = vmatpush1.msra.mxu0 0.0
    %1872 = vmatprep.subr.mxu0 0.0
    %1873 = vmatpush1.msra.mxu0 0.0
    %1874 = vmatprep.subr.mxu0 0.0
    %1875 = vmatpush1.msra.mxu0 0.0
    %1876 = vmatprep.subr.mxu0 0.0
    %1877 = vmatpush1.msra.mxu0 0.0
    %1878 = vmatprep.subr.mxu0 0.0
    %1879 = vmatpush1.msra.mxu0 0.0
    %1880 = vmatprep.subr.mxu0 0.0
    %1881 = vmatpush1.msra.mxu0 0.0
    %1882 = vmatprep.subr.mxu0 0.0
    %1883 = vmatpush1.msra.mxu0 0.0
    %1884 = vmatprep.subr.mxu0 0.0
    %1885 = vmatpush1.msra.mxu0 0.0
    %1886 = vmatprep.subr.mxu0 0.0
    %1887 = vmatpush1.msra.mxu0 0.0
    %1888 = vmatprep.subr.mxu0 0.0
    %1889 = vmatpush1.msra.mxu0 0.0
    %1890 = vmatprep.subr.mxu0 0.0
    %1891 = vmatpush1.msra.mxu0 0.0
    %1892 = vmatprep.mubr.f32.mxu0 0.0
    %1893 = vmatmul.mubr.f32.gmra.mrb[0].mxu0 %v1826
    %v1894 = vpop.f32.mrb[0].mxu0
    %v1895 = vadd.f32 0.0, %v1894
    %v1896 = vpop.f32.mrb[0].mxu0
    %1897 = vdwg.mxu0
    %v1898 = vadd.f32 %v1825, %v1895
    %v1899 = vxor.u32 %v1898, 2147483648
    %v1900 = vmul.f32 %v1899, 1.442695
    %v1901 = vpow.pop %v1900
    %v1902 = vadd.f32 %v1901, 1.0
    %v1903 = vrcp.pop %v1902
    %v1904 = vmul.f32 1.0, %v1903
    %v1905 = vadd.f32 %v1895, %v1471
    %1907 = vrot.lane.b32.xlu0 %v1905, 64
    %v1908 = vpop.permute.xlu0 %1907
    %v1910 = vmul.f32 %v1904, %v1908
    %1912 = vrot.lane.b32.xlu0 %v1910, 64
    %v1913 = vpop.permute.xlu0 %1912
    %v1915 = vadd.f32 %v1825, %v1913
    %v1916 = vtanh.pop %v1915
    %v1917 = vsub.f32 %v1819, %v1916
    %1919 = vrot.lane.b32.xlu0 %v1917, 96
    %v1920 = vpop.permute.xlu0 %1919
    %v1922 = vmul.f32 %v1904, %v1920
    %1924 = vrot.lane.b32.xlu0 %v1922, 32
    %v1925 = vpop.permute.xlu0 %1924
    %v1927 = vadd.f32 %v1916, %v1925
    %1929 = vrot.lane.b32.xlu0 %v1927, 64
    %v1930 = vpop.permute.xlu0 %1929
    %1932 = vst.msk [vmem:[%s894] sm:$0xff] %vm344, %v1930
    %v1933 = vld [vmem:[%s896] sm:$0xff]
    %v1934 = vsel %vm344, %v1930, 0
    %1936 = vmatprep.subr.mxu0 0.0
    %1937 = vmatpush1.msra.mxu0 %v1382
    %1938 = vmatprep.subr.mxu0 0.0
    %1939 = vmatpush1.msra.mxu0 %v1383
    %1940 = vmatprep.subr.mxu0 0.0
    %1941 = vmatpush1.msra.mxu0 %v1384
    %1942 = vmatprep.subr.mxu0 0.0
    %1943 = vmatpush1.msra.mxu0 %v1385
    %1944 = vmatprep.subr.mxu0 0.0
    %1945 = vmatpush1.msra.mxu0 0.0
    %1946 = vmatprep.subr.mxu0 0.0
    %1947 = vmatpush1.msra.mxu0 0.0
    %1948 = vmatprep.subr.mxu0 0.0
    %1949 = vmatpush1.msra.mxu0 0.0
    %1950 = vmatprep.subr.mxu0 0.0
    %1951 = vmatpush1.msra.mxu0 0.0
    %1952 = vmatprep.subr.mxu0 0.0
    %1953 = vmatpush1.msra.mxu0 0.0
    %1954 = vmatprep.subr.mxu0 0.0
    %1955 = vmatpush1.msra.mxu0 0.0
    %1956 = vmatprep.subr.mxu0 0.0
    %1957 = vmatpush1.msra.mxu0 0.0
    %1958 = vmatprep.subr.mxu0 0.0
    %1959 = vmatpush1.msra.mxu0 0.0
    %1960 = vmatprep.subr.mxu0 0.0
    %1961 = vmatpush1.msra.mxu0 0.0
    %1962 = vmatprep.subr.mxu0 0.0
    %1963 = vmatpush1.msra.mxu0 0.0
    %1964 = vmatprep.subr.mxu0 0.0
    %1965 = vmatpush1.msra.mxu0 0.0
    %1966 = vmatprep.subr.mxu0 0.0
    %1967 = vmatpush1.msra.mxu0 0.0
    %1968 = vmatprep.subr.mxu0 0.0
    %1969 = vmatpush1.msra.mxu0 0.0
    %1970 = vmatprep.subr.mxu0 0.0
    %1971 = vmatpush1.msra.mxu0 0.0
    %1972 = vmatprep.subr.mxu0 0.0
    %1973 = vmatpush1.msra.mxu0 0.0
    %1974 = vmatprep.subr.mxu0 0.0
    %1975 = vmatpush1.msra.mxu0 0.0
    %1976 = vmatprep.subr.mxu0 0.0
    %1977 = vmatpush1.msra.mxu0 0.0
    %1978 = vmatprep.subr.mxu0 0.0
    %1979 = vmatpush1.msra.mxu0 0.0
    %1980 = vmatprep.subr.mxu0 0.0
    %1981 = vmatpush1.msra.mxu0 0.0
    %1982 = vmatprep.subr.mxu0 0.0
    %1983 = vmatpush1.msra.mxu0 0.0
    %1984 = vmatprep.subr.mxu0 0.0
    %1985 = vmatpush1.msra.mxu0 0.0
    %1986 = vmatprep.subr.mxu0 0.0
    %1987 = vmatpush1.msra.mxu0 0.0
    %1988 = vmatprep.subr.mxu0 0.0
    %1989 = vmatpush1.msra.mxu0 0.0
    %1990 = vmatprep.subr.mxu0 0.0
    %1991 = vmatpush1.msra.mxu0 0.0
    %1992 = vmatprep.subr.mxu0 0.0
    %1993 = vmatpush1.msra.mxu0 0.0
    %1994 = vmatprep.subr.mxu0 0.0
    %1995 = vmatpush1.msra.mxu0 0.0
    %1996 = vmatprep.subr.mxu0 0.0
    %1997 = vmatpush1.msra.mxu0 0.0
    %1998 = vmatprep.subr.mxu0 0.0
    %1999 = vmatpush1.msra.mxu0 0.0
    %2000 = vmatprep.mubr.f32.mxu0 0.0
    %2001 = vmatmul.mubr.f32.gmra.mrb[0].mxu0 %v1934
    %v2002 = vpop.f32.mrb[0].mxu0
    %v2003 = vadd.f32 0.0, %v2002
    %v2004 = vpop.f32.mrb[0].mxu0
    %2005 = vdwg.mxu0
    %v2006 = vadd.f32 %v1933, %v2003
    %v2007 = vxor.u32 %v2006, 2147483648
    %v2008 = vmul.f32 %v2007, 1.442695
    %v2009 = vpow.pop %v2008
    %v2010 = vadd.f32 %v2009, 1.0
    %v2011 = vrcp.pop %v2010
    %v2012 = vmul.f32 1.0, %v2011
    %v2013 = vadd.f32 %v2003, %v1471
    %2015 = vrot.lane.b32.xlu0 %v2013, 64
    %v2016 = vpop.permute.xlu0 %2015
    %v2018 = vmul.f32 %v2012, %v2016
    %2020 = vrot.lane.b32.xlu0 %v2018, 64
    %v2021 = vpop.permute.xlu0 %2020
    %v2023 = vadd.f32 %v1933, %v2021
    %v2024 = vtanh.pop %v2023
    %v2025 = vsub.f32 %v1927, %v2024
    %2027 = vrot.lane.b32.xlu0 %v2025, 96
    %v2028 = vpop.permute.xlu0 %2027
    %v2030 = vmul.f32 %v2012, %v2028
    %2032 = vrot.lane.b32.xlu0 %v2030, 32
    %v2033 = vpop.permute.xlu0 %2032
    %v2035 = vadd.f32 %v2024, %v2033
    %2037 = vrot.lane.b32.xlu0 %v2035, 64
    %v2038 = vpop.permute.xlu0 %2037
    %2040 = vst.msk [vmem:[%s1004] sm:$0xff] %vm344, %v2038
    %v2041 = vld [vmem:[%s1006] sm:$0xff]
    %v2042 = vsel %vm344, %v2038, 0
    %2044 = vmatprep.subr.mxu0 0.0
    %2045 = vmatpush1.msra.mxu0 %v1382
    %2046 = vmatprep.subr.mxu0 0.0
    %2047 = vmatpush1.msra.mxu0 %v1383
    %2048 = vmatprep.subr.mxu0 0.0
    %2049 = vmatpush1.msra.mxu0 %v1384
    %2050 = vmatprep.subr.mxu0 0.0
    %2051 = vmatpush1.msra.mxu0 %v1385
    %2052 = vmatprep.subr.mxu0 0.0
    %2053 = vmatpush1.msra.mxu0 0.0
    %2054 = vmatprep.subr.mxu0 0.0
    %2055 = vmatpush1.msra.mxu0 0.0
    %2056 = vmatprep.subr.mxu0 0.0
    %2057 = vmatpush1.msra.mxu0 0.0
    %2058 = vmatprep.subr.mxu0 0.0
    %2059 = vmatpush1.msra.mxu0 0.0
    %2060 = vmatprep.subr.mxu0 0.0
    %2061 = vmatpush1.msra.mxu0 0.0
    %2062 = vmatprep.subr.mxu0 0.0
    %2063 = vmatpush1.msra.mxu0 0.0
    %2064 = vmatprep.subr.mxu0 0.0
    %2065 = vmatpush1.msra.mxu0 0.0
    %2066 = vmatprep.subr.mxu0 0.0
    %2067 = vmatpush1.msra.mxu0 0.0
    %2068 = vmatprep.subr.mxu0 0.0
    %2069 = vmatpush1.msra.mxu0 0.0
    %2070 = vmatprep.subr.mxu0 0.0
    %2071 = vmatpush1.msra.mxu0 0.0
    %2072 = vmatprep.subr.mxu0 0.0
    %2073 = vmatpush1.msra.mxu0 0.0
    %2074 = vmatprep.subr.mxu0 0.0
    %2075 = vmatpush1.msra.mxu0 0.0
    %2076 = vmatprep.subr.mxu0 0.0
    %2077 = vmatpush1.msra.mxu0 0.0
    %2078 = vmatprep.subr.mxu0 0.0
    %2079 = vmatpush1.msra.mxu0 0.0
    %2080 = vmatprep.subr.mxu0 0.0
    %2081 = vmatpush1.msra.mxu0 0.0
    %2082 = vmatprep.subr.mxu0 0.0
    %2083 = vmatpush1.msra.mxu0 0.0
    %2084 = vmatprep.subr.mxu0 0.0
    %2085 = vmatpush1.msra.mxu0 0.0
    %2086 = vmatprep.subr.mxu0 0.0
    %2087 = vmatpush1.msra.mxu0 0.0
    %2088 = vmatprep.subr.mxu0 0.0
    %2089 = vmatpush1.msra.mxu0 0.0
    %2090 = vmatprep.subr.mxu0 0.0
    %2091 = vmatpush1.msra.mxu0 0.0
    %2092 = vmatprep.subr.mxu0 0.0
    %2093 = vmatpush1.msra.mxu0 0.0
    %2094 = vmatprep.subr.mxu0 0.0
    %2095 = vmatpush1.msra.mxu0 0.0
    %2096 = vmatprep.subr.mxu0 0.0
    %2097 = vmatpush1.msra.mxu0 0.0
    %2098 = vmatprep.subr.mxu0 0.0
    %2099 = vmatpush1.msra.mxu0 0.0
    %2100 = vmatprep.subr.mxu0 0.0
    %2101 = vmatpush1.msra.mxu0 0.0
    %2102 = vmatprep.subr.mxu0 0.0
    %2103 = vmatpush1.msra.mxu0 0.0
    %2104 = vmatprep.subr.mxu0 0.0
    %2105 = vmatpush1.msra.mxu0 0.0
    %2106 = vmatprep.subr.mxu0 0.0
    %2107 = vmatpush1.msra.mxu0 0.0
    %2108 = vmatprep.mubr.f32.mxu0 0.0
    %2109 = vmatmul.mubr.f32.gmra.mrb[0].mxu0 %v2042
    %v2110 = vpop.f32.mrb[0].mxu0
    %v2111 = vadd.f32 0.0, %v2110
    %v2112 = vpop.f32.mrb[0].mxu0
    %2113 = vdwg.mxu0
    %v2114 = vadd.f32 %v2041, %v2111
    %v2115 = vxor.u32 %v2114, 2147483648
    %v2116 = vmul.f32 %v2115, 1.442695
    %v2117 = vpow.pop %v2116
    %v2118 = vadd.f32 %v2117, 1.0
    %v2119 = vrcp.pop %v2118
    %v2120 = vmul.f32 1.0, %v2119
    %v2121 = vadd.f32 %v2111, %v1471
    %2123 = vrot.lane.b32.xlu0 %v2121, 64
    %v2124 = vpop.permute.xlu0 %2123
    %v2126 = vmul.f32 %v2120, %v2124
    %2128 = vrot.lane.b32.xlu0 %v2126, 64
    %v2129 = vpop.permute.xlu0 %2128
    %v2131 = vadd.f32 %v2041, %v2129
    %v2132 = vtanh.pop %v2131
    %v2133 = vsub.f32 %v2035, %v2132
    %2135 = vrot.lane.b32.xlu0 %v2133, 96
    %v2136 = vpop.permute.xlu0 %2135
    %v2138 = vmul.f32 %v2120, %v2136
    %2140 = vrot.lane.b32.xlu0 %v2138, 32
    %v2141 = vpop.permute.xlu0 %2140
    %v2143 = vadd.f32 %v2132, %v2141
    %2145 = vrot.lane.b32.xlu0 %v2143, 64
    %v2146 = vpop.permute.xlu0 %2145
    %2148 = vst.msk [vmem:[%s1114] sm:$0xff] %vm344, %v2146
    %v2149 = vld [vmem:[%s1116] sm:$0xff]
    %v2150 = vsel %vm344, %v2146, 0
    %2152 = vmatprep.subr.mxu0 0.0
    %2153 = vmatpush1.msra.mxu0 %v1382
    %2154 = vmatprep.subr.mxu0 0.0
    %2155 = vmatpush1.msra.mxu0 %v1383
    %2156 = vmatprep.subr.mxu0 0.0
    %2157 = vmatpush1.msra.mxu0 %v1384
    %2158 = vmatprep.subr.mxu0 0.0
    %2159 = vmatpush1.msra.mxu0 %v1385
    %2160 = vmatprep.subr.mxu0 0.0
    %2161 = vmatpush1.msra.mxu0 0.0
    %2162 = vmatprep.subr.mxu0 0.0
    %2163 = vmatpush1.msra.mxu0 0.0
    %2164 = vmatprep.subr.mxu0 0.0
    %2165 = vmatpush1.msra.mxu0 0.0
    %2166 = vmatprep.subr.mxu0 0.0
    %2167 = vmatpush1.msra.mxu0 0.0
    %2168 = vmatprep.subr.mxu0 0.0
    %2169 = vmatpush1.msra.mxu0 0.0
    %2170 = vmatprep.subr.mxu0 0.0
    %2171 = vmatpush1.msra.mxu0 0.0
    %2172 = vmatprep.subr.mxu0 0.0
    %2173 = vmatpush1.msra.mxu0 0.0
    %2174 = vmatprep.subr.mxu0 0.0
    %2175 = vmatpush1.msra.mxu0 0.0
    %2176 = vmatprep.subr.mxu0 0.0
    %2177 = vmatpush1.msra.mxu0 0.0
    %2178 = vmatprep.subr.mxu0 0.0
    %2179 = vmatpush1.msra.mxu0 0.0
    %2180 = vmatprep.subr.mxu0 0.0
    %2181 = vmatpush1.msra.mxu0 0.0
    %2182 = vmatprep.subr.mxu0 0.0
    %2183 = vmatpush1.msra.mxu0 0.0
    %2184 = vmatprep.subr.mxu0 0.0
    %2185 = vmatpush1.msra.mxu0 0.0
    %2186 = vmatprep.subr.mxu0 0.0
    %2187 = vmatpush1.msra.mxu0 0.0
    %2188 = vmatprep.subr.mxu0 0.0
    %2189 = vmatpush1.msra.mxu0 0.0
    %2190 = vmatprep.subr.mxu0 0.0
    %2191 = vmatpush1.msra.mxu0 0.0
    %2192 = vmatprep.subr.mxu0 0.0
    %2193 = vmatpush1.msra.mxu0 0.0
    %2194 = vmatprep.subr.mxu0 0.0
    %2195 = vmatpush1.msra.mxu0 0.0
    %2196 = vmatprep.subr.mxu0 0.0
    %2197 = vmatpush1.msra.mxu0 0.0
    %2198 = vmatprep.subr.mxu0 0.0
    %2199 = vmatpush1.msra.mxu0 0.0
    %2200 = vmatprep.subr.mxu0 0.0
    %2201 = vmatpush1.msra.mxu0 0.0
    %2202 = vmatprep.subr.mxu0 0.0
    %2203 = vmatpush1.msra.mxu0 0.0
    %2204 = vmatprep.subr.mxu0 0.0
    %2205 = vmatpush1.msra.mxu0 0.0
    %2206 = vmatprep.subr.mxu0 0.0
    %2207 = vmatpush1.msra.mxu0 0.0
    %2208 = vmatprep.subr.mxu0 0.0
    %2209 = vmatpush1.msra.mxu0 0.0
    %2210 = vmatprep.subr.mxu0 0.0
    %2211 = vmatpush1.msra.mxu0 0.0
    %2212 = vmatprep.subr.mxu0 0.0
    %2213 = vmatpush1.msra.mxu0 0.0
    %2214 = vmatprep.subr.mxu0 0.0
    %2215 = vmatpush1.msra.mxu0 0.0
    %2216 = vmatprep.mubr.f32.mxu0 0.0
    %2217 = vmatmul.mubr.f32.gmra.mrb[0].mxu0 %v2150
    %v2218 = vpop.f32.mrb[0].mxu0
    %v2219 = vadd.f32 0.0, %v2218
    %v2220 = vpop.f32.mrb[0].mxu0
    %2221 = vdwg.mxu0
    %v2222 = vadd.f32 %v2149, %v2219
    %v2223 = vxor.u32 %v2222, 2147483648
    %v2224 = vmul.f32 %v2223, 1.442695
    %v2225 = vpow.pop %v2224
    %v2226 = vadd.f32 %v2225, 1.0
    %v2227 = vrcp.pop %v2226
    %v2228 = vmul.f32 1.0, %v2227
    %v2229 = vadd.f32 %v2219, %v1471
    %2231 = vrot.lane.b32.xlu0 %v2229, 64
    %v2232 = vpop.permute.xlu0 %2231
    %v2234 = vmul.f32 %v2228, %v2232
    %2236 = vrot.lane.b32.xlu0 %v2234, 64
    %v2237 = vpop.permute.xlu0 %2236
    %v2239 = vadd.f32 %v2149, %v2237
    %v2240 = vtanh.pop %v2239
    %v2241 = vsub.f32 %v2143, %v2240
    %2243 = vrot.lane.b32.xlu0 %v2241, 96
    %v2244 = vpop.permute.xlu0 %2243
    %v2246 = vmul.f32 %v2228, %v2244
    %2248 = vrot.lane.b32.xlu0 %v2246, 32
    %v2249 = vpop.permute.xlu0 %2248
    %v2251 = vadd.f32 %v2240, %v2249
    %2253 = vrot.lane.b32.xlu0 %v2251, 64
    %v2254 = vpop.permute.xlu0 %2253
    %2256 = vst.msk [vmem:[%s1224] sm:$0xff] %vm344, %v2254
    %v2257 = vld [vmem:[%s9] sm:$0xff]
    %v2258 = vld [vmem:[%s9 + $0x8] sm:$0xff]
    %v2259 = vld [vmem:[%s9 + $0x10] sm:$0xff]
    %v2260 = vld [vmem:[%s9 + $0x18] sm:$0xff]
    %v2261 = vld [vmem:[%s14] sm:$0x1]
    %v2263 = vlaneseq
    %v2264 = vshrl.u32 %v2263, 7
    %v2265 = vsub.s32 0, %v2264
    %v2266 = vrot.slane %v2261, %v2265
    %v2268 = vsel %vm344, %v2254, 0
    %2270 = vmatprep.subr.mxu0 0.0
    %2271 = vmatpush1.msra.mxu0 %v2257
    %2272 = vmatprep.subr.mxu0 0.0
    %2273 = vmatpush1.msra.mxu0 %v2258
    %2274 = vmatprep.subr.mxu0 0.0
    %2275 = vmatpush1.msra.mxu0 %v2259
    %2276 = vmatprep.subr.mxu0 0.0
    %2277 = vmatpush1.msra.mxu0 %v2260
    %2278 = vmatprep.subr.mxu0 0.0
    %2279 = vmatpush1.msra.mxu0 0.0
    %2280 = vmatprep.subr.mxu0 0.0
    %2281 = vmatpush1.msra.mxu0 0.0
    %2282 = vmatprep.subr.mxu0 0.0
    %2283 = vmatpush1.msra.mxu0 0.0
    %2284 = vmatprep.subr.mxu0 0.0
    %2285 = vmatpush1.msra.mxu0 0.0
    %2286 = vmatprep.subr.mxu0 0.0
    %2287 = vmatpush1.msra.mxu0 0.0
    %2288 = vmatprep.subr.mxu0 0.0
    %2289 = vmatpush1.msra.mxu0 0.0
    %2290 = vmatprep.subr.mxu0 0.0
    %2291 = vmatpush1.msra.mxu0 0.0
    %2292 = vmatprep.subr.mxu0 0.0
    %2293 = vmatpush1.msra.mxu0 0.0
    %2294 = vmatprep.subr.mxu0 0.0
    %2295 = vmatpush1.msra.mxu0 0.0
    %2296 = vmatprep.subr.mxu0 0.0
    %2297 = vmatpush1.msra.mxu0 0.0
    %2298 = vmatprep.subr.mxu0 0.0
    %2299 = vmatpush1.msra.mxu0 0.0
    %2300 = vmatprep.subr.mxu0 0.0
    %2301 = vmatpush1.msra.mxu0 0.0
    %2302 = vmatprep.subr.mxu0 0.0
    %2303 = vmatpush1.msra.mxu0 0.0
    %2304 = vmatprep.subr.mxu0 0.0
    %2305 = vmatpush1.msra.mxu0 0.0
    %2306 = vmatprep.subr.mxu0 0.0
    %2307 = vmatpush1.msra.mxu0 0.0
    %2308 = vmatprep.subr.mxu0 0.0
    %2309 = vmatpush1.msra.mxu0 0.0
    %2310 = vmatprep.subr.mxu0 0.0
    %2311 = vmatpush1.msra.mxu0 0.0
    %2312 = vmatprep.subr.mxu0 0.0
    %2313 = vmatpush1.msra.mxu0 0.0
    %2314 = vmatprep.subr.mxu0 0.0
    %2315 = vmatpush1.msra.mxu0 0.0
    %2316 = vmatprep.subr.mxu0 0.0
    %2317 = vmatpush1.msra.mxu0 0.0
    %2318 = vmatprep.subr.mxu0 0.0
    %2319 = vmatpush1.msra.mxu0 0.0
    %2320 = vmatprep.subr.mxu0 0.0
    %2321 = vmatpush1.msra.mxu0 0.0
    %2322 = vmatprep.subr.mxu0 0.0
    %2323 = vmatpush1.msra.mxu0 0.0
    %2324 = vmatprep.subr.mxu0 0.0
    %2325 = vmatpush1.msra.mxu0 0.0
    %2326 = vmatprep.subr.mxu0 0.0
    %2327 = vmatpush1.msra.mxu0 0.0
    %2328 = vmatprep.subr.mxu0 0.0
    %2329 = vmatpush1.msra.mxu0 0.0
    %2330 = vmatprep.subr.mxu0 0.0
    %2331 = vmatpush1.msra.mxu0 0.0
    %2332 = vmatprep.subr.mxu0 0.0
    %2333 = vmatpush1.msra.mxu0 0.0
    %2334 = vmatprep.mubr.f32.mxu0 0.0
    %2335 = vmatmul.mubr.f32.gmra.mrb[0].mxu0 %v2268
    %v2336 = vpop.f32.mrb[0].mxu0
    %v2337 = vadd.f32 %v2266, %v2336
    %v2338 = vpop.f32.mrb[0].mxu0
    %2339 = vdwg.mxu0
    %v2340 = vld [vmem:[#allocation14] sm:$0xff]
    %v2341 = vld [vmem:[#allocation14 + $0x8] sm:$0xff]
    %v2342 = vld [vmem:[#allocation14 + $0x10] sm:$0xff]
    %v2343 = vld [vmem:[#allocation14 + $0x18] sm:$0xff]
    %v2345 = vsel %vm344, %v2337, 0
    %2347 = vmatprep.subr.mxu0 0.0
    %2348 = vmatpush1.msra.mxu0 %v2340
    %2349 = vmatprep.subr.mxu0 0.0
    %2350 = vmatpush1.msra.mxu0 %v2341
    %2351 = vmatprep.subr.mxu0 0.0
    %2352 = vmatpush1.msra.mxu0 %v2342
    %2353 = vmatprep.subr.mxu0 0.0
    %2354 = vmatpush1.msra.mxu0 %v2343
    %2355 = vmatprep.subr.mxu0 0.0
    %2356 = vmatpush1.msra.mxu0 0.0
    %2357 = vmatprep.subr.mxu0 0.0
    %2358 = vmatpush1.msra.mxu0 0.0
    %2359 = vmatprep.subr.mxu0 0.0
    %2360 = vmatpush1.msra.mxu0 0.0
    %2361 = vmatprep.subr.mxu0 0.0
    %2362 = vmatpush1.msra.mxu0 0.0
    %2363 = vmatprep.subr.mxu0 0.0
    %2364 = vmatpush1.msra.mxu0 0.0
    %2365 = vmatprep.subr.mxu0 0.0
    %2366 = vmatpush1.msra.mxu0 0.0
    %2367 = vmatprep.subr.mxu0 0.0
    %2368 = vmatpush1.msra.mxu0 0.0
    %2369 = vmatprep.subr.mxu0 0.0
    %2370 = vmatpush1.msra.mxu0 0.0
    %2371 = vmatprep.subr.mxu0 0.0
    %2372 = vmatpush1.msra.mxu0 0.0
    %2373 = vmatprep.subr.mxu0 0.0
    %2374 = vmatpush1.msra.mxu0 0.0
    %2375 = vmatprep.subr.mxu0 0.0
    %2376 = vmatpush1.msra.mxu0 0.0
    %2377 = vmatprep.subr.mxu0 0.0
    %2378 = vmatpush1.msra.mxu0 0.0
    %2379 = vmatprep.subr.mxu0 0.0
    %2380 = vmatpush1.msra.mxu0 0.0
    %2381 = vmatprep.subr.mxu0 0.0
    %2382 = vmatpush1.msra.mxu0 0.0
    %2383 = vmatprep.subr.mxu0 0.0
    %2384 = vmatpush1.msra.mxu0 0.0
    %2385 = vmatprep.subr.mxu0 0.0
    %2386 = vmatpush1.msra.mxu0 0.0
    %2387 = vmatprep.subr.mxu0 0.0
    %2388 = vmatpush1.msra.mxu0 0.0
    %2389 = vmatprep.subr.mxu0 0.0
    %2390 = vmatpush1.msra.mxu0 0.0
    %2391 = vmatprep.subr.mxu0 0.0
    %2392 = vmatpush1.msra.mxu0 0.0
    %2393 = vmatprep.subr.mxu0 0.0
    %2394 = vmatpush1.msra.mxu0 0.0
    %2395 = vmatprep.subr.mxu0 0.0
    %2396 = vmatpush1.msra.mxu0 0.0
    %2397 = vmatprep.subr.mxu0 0.0
    %2398 = vmatpush1.msra.mxu0 0.0
    %2399 = vmatprep.subr.mxu0 0.0
    %2400 = vmatpush1.msra.mxu0 0.0
    %2401 = vmatprep.subr.mxu0 0.0
    %2402 = vmatpush1.msra.mxu0 0.0
    %2403 = vmatprep.subr.mxu0 0.0
    %2404 = vmatpush1.msra.mxu0 0.0
    %2405 = vmatprep.subr.mxu0 0.0
    %2406 = vmatpush1.msra.mxu0 0.0
    %2407 = vmatprep.subr.mxu0 0.0
    %2408 = vmatpush1.msra.mxu0 0.0
    %2409 = vmatprep.subr.mxu0 0.0
    %2410 = vmatpush1.msra.mxu0 0.0
    %2411 = vmatprep.mubr.f32.mxu0 0.0
    %2412 = vmatmul.mubr.f32.gmra.mrb[0].mxu0 %v2345
    %v2413 = vpop.f32.mrb[0].mxu0
    %v2414 = vadd.f32 0.0, %v2413
    %v2415 = vpop.f32.mrb[0].mxu0
    %2416 = vdwg.mxu0
    %v2417 = vmul.f32 %v2414, 0.17677669
    %v2418 = vld [vmem:[#allocation3] sm:$0xff]
    %v2419 = vld [vmem:[#allocation3 + $0x8] sm:$0xff]
    %v2420 = vld [vmem:[#allocation3 + $0x10] sm:$0xff]
    %v2421 = vld [vmem:[#allocation3 + $0x18] sm:$0xff]
    %v2422 = vld [vmem:[#allocation3 + $0x20] sm:$0xff]
    %v2423 = vld [vmem:[#allocation3 + $0x28] sm:$0xff]
    %v2424 = vld [vmem:[#allocation3 + $0x30] sm:$0xff]
    %v2425 = vld [vmem:[#allocation3 + $0x38] sm:$0xff]
    %v2426 = vmul.f32 %v2418, %v2417
    %v2427 = vmul.f32 %v2419, %v2417
    %v2428 = vmul.f32 %v2420, %v2417
    %v2429 = vmul.f32 %v2421, %v2417
    %v2430 = vmul.f32 %v2422, %v2417
    %v2431 = vmul.f32 %v2423, %v2417
    %v2432 = vmul.f32 %v2424, %v2417
    %v2433 = vmul.f32 %v2425, %v2417
    %v2434 = vsel %vm344, %v2426, 0.0
    %2435 = vadd.xlane.f32.xlu0 %v2434
    %v2436 = vpop.xlane.xlu0 %2435
    %v2437 = vsel %vm344, %v2427, 0.0
    %2438 = vadd.xlane.f32.xlu0 %v2437
    %v2439 = vpop.xlane.xlu0 %2438
    %v2440 = vsel %vm344, %v2428, 0.0
    %2441 = vadd.xlane.f32.xlu0 %v2440
    %v2442 = vpop.xlane.xlu0 %2441
    %v2443 = vsel %vm344, %v2429, 0.0
    %2444 = vadd.xlane.f32.xlu0 %v2443
    %v2445 = vpop.xlane.xlu0 %2444
    %v2446 = vsel %vm344, %v2430, 0.0
    %2447 = vadd.xlane.f32.xlu0 %v2446
    %v2448 = vpop.xlane.xlu0 %2447
    %v2449 = vsel %vm344, %v2431, 0.0
    %2450 = vadd.xlane.f32.xlu0 %v2449
    %v2451 = vpop.xlane.xlu0 %2450
    %v2452 = vsel %vm344, %v2432, 0.0
    %2453 = vadd.xlane.f32.xlu0 %v2452
    %v2454 = vpop.xlane.xlu0 %2453
    %v2455 = vsel %vm344, %v2433, 0.0
    %2456 = vadd.xlane.f32.xlu0 %v2455
    %v2457 = vpop.xlane.xlu0 %2456
    %v2458 = vmax.f32 %v2436, %v2448
    %v2459 = vmax.f32 %v2439, %v2451
    %v2460 = vmax.f32 %v2442, %v2454
    %v2461 = vmax.f32 %v2445, %v2457
    %v2462 = vmax.f32 %v2458, %v2459
    %v2463 = vmax.f32 %v2460, %v2461
    %v2464 = vmax.f32 %v2462, %v2463
    %v2465 = vsub.f32 %v2436, %v2464
    %v2466 = vsub.f32 %v2439, %v2464
    %v2467 = vsub.f32 %v2442, %v2464
    %v2468 = vsub.f32 %v2445, %v2464
    %v2469 = vsub.f32 %v2448, %v2464
    %v2470 = vsub.f32 %v2451, %v2464
    %v2471 = vsub.f32 %v2454, %v2464
    %v2472 = vsub.f32 %v2457, %v2464
    %v2473 = vmul.f32 %v2465, 1.442695
    %v2474 = vpow.pop %v2473
    %v2475 = vmul.f32 %v2466, 1.442695
    %v2476 = vpow.pop %v2475
    %v2477 = vmul.f32 %v2467, 1.442695
    %v2478 = vpow.pop %v2477
    %v2479 = vmul.f32 %v2468, 1.442695
    %v2480 = vpow.pop %v2479
    %v2481 = vmul.f32 %v2469, 1.442695
    %v2482 = vpow.pop %v2481
    %v2483 = vmul.f32 %v2470, 1.442695
    %v2484 = vpow.pop %v2483
    %v2485 = vmul.f32 %v2471, 1.442695
    %v2486 = vpow.pop %v2485
    %v2487 = vmul.f32 %v2472, 1.442695
    %v2488 = vpow.pop %v2487
    %v2489 = vadd.f32 %v2474, %v2476
    %v2490 = vadd.f32 %v2489, %v2478
    %v2491 = vadd.f32 %v2490, %v2480
    %v2492 = vadd.f32 %v2491, %v2482
    %v2493 = vadd.f32 %v2492, %v2484
    %v2494 = vadd.f32 %v2493, %v2486
    %v2495 = vadd.f32 %v2494, %v2488
    %v2496 = vrcp.pop %v2495
    %v2497 = vmul.f32 %v2474, %v2496
    %v2498 = vmul.f32 %v2476, %v2496
    %v2499 = vmul.f32 %v2478, %v2496
    %v2500 = vmul.f32 %v2480, %v2496
    %v2501 = vmul.f32 %v2482, %v2496
    %v2502 = vmul.f32 %v2484, %v2496
    %v2503 = vmul.f32 %v2486, %v2496
    %v2504 = vmul.f32 %v2488, %v2496
    %v2505 = vmul.f32 %v2497, %v2418
    %v2506 = vmul.f32 %v2498, %v2419
    %v2507 = vmul.f32 %v2499, %v2420
    %v2508 = vmul.f32 %v2500, %v2421
    %v2509 = vmul.f32 %v2501, %v2422
    %v2510 = vmul.f32 %v2502, %v2423
    %v2511 = vmul.f32 %v2503, %v2424
    %v2512 = vmul.f32 %v2504, %v2425
    %v2513 = vsel %vm344, %v2505, 0.0
    %v2514 = vsel %vm344, %v2506, 0.0
    %v2515 = vadd.f32 %v2513, %v2514
    %v2516 = vsel %vm344, %v2507, 0.0
    %v2517 = vadd.f32 %v2515, %v2516
    %v2518 = vsel %vm344, %v2508, 0.0
    %v2519 = vadd.f32 %v2517, %v2518
    %v2520 = vsel %vm344, %v2509, 0.0
    %v2521 = vadd.f32 %v2519, %v2520
    %v2522 = vsel %vm344, %v2510, 0.0
    %v2523 = vadd.f32 %v2521, %v2522
    %v2524 = vsel %vm344, %v2511, 0.0
    %v2525 = vadd.f32 %v2523, %v2524
    %v2526 = vsel %vm344, %v2512, 0.0
    %v2527 = vadd.f32 %v2525, %v2526
    %v2528 = vld [vmem:[#allocation15] sm:$0xff]
    %v2529 = vld [vmem:[#allocation15 + $0x8] sm:$0xff]
    %v2530 = vld [vmem:[#allocation15 + $0x10] sm:$0xff]
    %v2531 = vld [vmem:[#allocation15 + $0x18] sm:$0xff]
    %v2532 = vld [vmem:[%s15] sm:$0x1]
    %v2534 = vlaneseq
    %v2535 = vshrl.u32 %v2534, 7
    %v2536 = vsub.s32 0, %v2535
    %v2537 = vrot.slane %v2532, %v2536
    %v2540 = vsel %vm344, %v2527, 0
    %2542 = vmatprep.subr.mxu0 0.0
    %2543 = vmatpush1.msra.mxu0 %v2528
    %2544 = vmatprep.subr.mxu0 0.0
    %2545 = vmatpush1.msra.mxu0 %v2529
    %2546 = vmatprep.subr.mxu0 0.0
    %2547 = vmatpush1.msra.mxu0 %v2530
    %2548 = vmatprep.subr.mxu0 0.0
    %2549 = vmatpush1.msra.mxu0 %v2531
    %2550 = vmatprep.subr.mxu0 0.0
    %2551 = vmatpush1.msra.mxu0 0.0
    %2552 = vmatprep.subr.mxu0 0.0
    %2553 = vmatpush1.msra.mxu0 0.0
    %2554 = vmatprep.subr.mxu0 0.0
    %2555 = vmatpush1.msra.mxu0 0.0
    %2556 = vmatprep.subr.mxu0 0.0
    %2557 = vmatpush1.msra.mxu0 0.0
    %2558 = vmatprep.subr.mxu0 0.0
    %2559 = vmatpush1.msra.mxu0 0.0
    %2560 = vmatprep.subr.mxu0 0.0
    %2561 = vmatpush1.msra.mxu0 0.0
    %2562 = vmatprep.subr.mxu0 0.0
    %2563 = vmatpush1.msra.mxu0 0.0
    %2564 = vmatprep.subr.mxu0 0.0
    %2565 = vmatpush1.msra.mxu0 0.0
    %2566 = vmatprep.subr.mxu0 0.0
    %2567 = vmatpush1.msra.mxu0 0.0
    %2568 = vmatprep.subr.mxu0 0.0
    %2569 = vmatpush1.msra.mxu0 0.0
    %2570 = vmatprep.subr.mxu0 0.0
    %2571 = vmatpush1.msra.mxu0 0.0
    %2572 = vmatprep.subr.mxu0 0.0
    %2573 = vmatpush1.msra.mxu0 0.0
    %2574 = vmatprep.subr.mxu0 0.0
    %2575 = vmatpush1.msra.mxu0 0.0
    %2576 = vmatprep.subr.mxu0 0.0
    %2577 = vmatpush1.msra.mxu0 0.0
    %2578 = vmatprep.subr.mxu0 0.0
    %2579 = vmatpush1.msra.mxu0 0.0
    %2580 = vmatprep.subr.mxu0 0.0
    %2581 = vmatpush1.msra.mxu0 0.0
    %2582 = vmatprep.subr.mxu0 0.0
    %2583 = vmatpush1.msra.mxu0 0.0
    %2584 = vmatprep.subr.mxu0 0.0
    %2585 = vmatpush1.msra.mxu0 0.0
    %2586 = vmatprep.subr.mxu0 0.0
    %2587 = vmatpush1.msra.mxu0 0.0
    %2588 = vmatprep.subr.mxu0 0.0
    %2589 = vmatpush1.msra.mxu0 0.0
    %2590 = vmatprep.subr.mxu0 0.0
    %2591 = vmatpush1.msra.mxu0 0.0
    %2592 = vmatprep.subr.mxu0 0.0
    %2593 = vmatpush1.msra.mxu0 0.0
    %2594 = vmatprep.subr.mxu0 0.0
    %2595 = vmatpush1.msra.mxu0 0.0
    %2596 = vmatprep.subr.mxu0 0.0
    %2597 = vmatpush1.msra.mxu0 0.0
    %2598 = vmatprep.subr.mxu0 0.0
    %2599 = vmatpush1.msra.mxu0 0.0
    %2600 = vmatprep.subr.mxu0 0.0
    %2601 = vmatpush1.msra.mxu0 0.0
    %2602 = vmatprep.subr.mxu0 0.0
    %2603 = vmatpush1.msra.mxu0 0.0
    %2604 = vmatprep.subr.mxu0 0.0
    %2605 = vmatpush1.msra.mxu0 0.0
    %2606 = vmatprep.mubr.f32.mxu0 0.0
    %2607 = vmatmul.mubr.f32.gmra.mrb[0].mxu0 %v2540
    %v2608 = vpop.f32.mrb[0].mxu0
    %v2609 = vadd.f32 %v2537, %v2608
    %v2610 = vpop.f32.mrb[0].mxu0
    %2611 = vdwg.mxu0
    %v2612 = vld [vmem:[#allocation17] sm:$0xff]
    %v2613 = vld [vmem:[#allocation17 + $0x8] sm:$0xff]
    %v2614 = vld [vmem:[#allocation17 + $0x10] sm:$0xff]
    %v2615 = vld [vmem:[#allocation17 + $0x18] sm:$0xff]
    %v2616 = vld [vmem:[%s16] sm:$0x1]
    %v2618 = vlaneseq
    %v2619 = vshrl.u32 %v2618, 7
    %v2620 = vsub.s32 0, %v2619
    %v2621 = vrot.slane %v2616, %v2620
    %v2624 = vsel %vm344, %v2609, 0
    %2626 = vmatprep.subr.mxu0 0.0
    %2627 = vmatpush1.msra.mxu0 %v2612
    %2628 = vmatprep.subr.mxu0 0.0
    %2629 = vmatpush1.msra.mxu0 %v2613
    %2630 = vmatprep.subr.mxu0 0.0
    %2631 = vmatpush1.msra.mxu0 %v2614
    %2632 = vmatprep.subr.mxu0 0.0
    %2633 = vmatpush1.msra.mxu0 %v2615
    %2634 = vmatprep.subr.mxu0 0.0
    %2635 = vmatpush1.msra.mxu0 0.0
    %2636 = vmatprep.subr.mxu0 0.0
    %2637 = vmatpush1.msra.mxu0 0.0
    %2638 = vmatprep.subr.mxu0 0.0
    %2639 = vmatpush1.msra.mxu0 0.0
    %2640 = vmatprep.subr.mxu0 0.0
    %2641 = vmatpush1.msra.mxu0 0.0
    %2642 = vmatprep.subr.mxu0 0.0
    %2643 = vmatpush1.msra.mxu0 0.0
    %2644 = vmatprep.subr.mxu0 0.0
    %2645 = vmatpush1.msra.mxu0 0.0
    %2646 = vmatprep.subr.mxu0 0.0
    %2647 = vmatpush1.msra.mxu0 0.0
    %2648 = vmatprep.subr.mxu0 0.0
    %2649 = vmatpush1.msra.mxu0 0.0
    %2650 = vmatprep.subr.mxu0 0.0
    %2651 = vmatpush1.msra.mxu0 0.0
    %2652 = vmatprep.subr.mxu0 0.0
    %2653 = vmatpush1.msra.mxu0 0.0
    %2654 = vmatprep.subr.mxu0 0.0
    %2655 = vmatpush1.msra.mxu0 0.0
    %2656 = vmatprep.subr.mxu0 0.0
    %2657 = vmatpush1.msra.mxu0 0.0
    %2658 = vmatprep.subr.mxu0 0.0
    %2659 = vmatpush1.msra.mxu0 0.0
    %2660 = vmatprep.subr.mxu0 0.0
    %2661 = vmatpush1.msra.mxu0 0.0
    %2662 = vmatprep.subr.mxu0 0.0
    %2663 = vmatpush1.msra.mxu0 0.0
    %2664 = vmatprep.subr.mxu0 0.0
    %2665 = vmatpush1.msra.mxu0 0.0
    %2666 = vmatprep.subr.mxu0 0.0
    %2667 = vmatpush1.msra.mxu0 0.0
    %2668 = vmatprep.subr.mxu0 0.0
    %2669 = vmatpush1.msra.mxu0 0.0
    %2670 = vmatprep.subr.mxu0 0.0
    %2671 = vmatpush1.msra.mxu0 0.0
    %2672 = vmatprep.subr.mxu0 0.0
    %2673 = vmatpush1.msra.mxu0 0.0
    %2674 = vmatprep.subr.mxu0 0.0
    %2675 = vmatpush1.msra.mxu0 0.0
    %2676 = vmatprep.subr.mxu0 0.0
    %2677 = vmatpush1.msra.mxu0 0.0
    %2678 = vmatprep.subr.mxu0 0.0
    %2679 = vmatpush1.msra.mxu0 0.0
    %2680 = vmatprep.subr.mxu0 0.0
    %2681 = vmatpush1.msra.mxu0 0.0
    %2682 = vmatprep.subr.mxu0 0.0
    %2683 = vmatpush1.msra.mxu0 0.0
    %2684 = vmatprep.subr.mxu0 0.0
    %2685 = vmatpush1.msra.mxu0 0.0
    %2686 = vmatprep.subr.mxu0 0.0
    %2687 = vmatpush1.msra.mxu0 0.0
    %2688 = vmatprep.subr.mxu0 0.0
    %2689 = vmatpush1.msra.mxu0 0.0
    %2690 = vmatprep.mubr.f32.mxu0 0.0
    %2691 = vmatmul.mubr.f32.gmra.mrb[0].mxu0 %v2624
    %v2692 = vpop.f32.mrb[0].mxu0
    %v2693 = vadd.f32 %v2621, %v2692
    %v2694 = vpop.f32.mrb[0].mxu0
    %2695 = vdwg.mxu0
    %v2696 = vld [vmem:[%s13] sm:$0xff]
    %v2697 = vld [vmem:[%s13 + $0x8] sm:$0xff]
    %v2698 = vld [vmem:[%s13 + $0x10] sm:$0xff]
    %v2699 = vld [vmem:[%s13 + $0x18] sm:$0xff]
    %v2700 = vld [vmem:[%s17] sm:$0x1]
    %v2702 = vlaneseq
    %v2703 = vshrl.u32 %v2702, 7
    %v2704 = vsub.s32 0, %v2703
    %v2705 = vrot.slane %v2700, %v2704
    %v2708 = vsel %vm344, %v2693, 0
    %2710 = vmatprep.subr.mxu0 0.0
    %2711 = vmatpush1.msra.mxu0 %v2696
    %2712 = vmatprep.subr.mxu0 0.0
    %2713 = vmatpush1.msra.mxu0 %v2697
    %2714 = vmatprep.subr.mxu0 0.0
    %2715 = vmatpush1.msra.mxu0 %v2698
    %2716 = vmatprep.subr.mxu0 0.0
    %2717 = vmatpush1.msra.mxu0 %v2699
    %2718 = vmatprep.subr.mxu0 0.0
    %2719 = vmatpush1.msra.mxu0 0.0
    %2720 = vmatprep.subr.mxu0 0.0
    %2721 = vmatpush1.msra.mxu0 0.0
    %2722 = vmatprep.subr.mxu0 0.0
    %2723 = vmatpush1.msra.mxu0 0.0
    %2724 = vmatprep.subr.mxu0 0.0
    %2725 = vmatpush1.msra.mxu0 0.0
    %2726 = vmatprep.subr.mxu0 0.0
    %2727 = vmatpush1.msra.mxu0 0.0
    %2728 = vmatprep.subr.mxu0 0.0
    %2729 = vmatpush1.msra.mxu0 0.0
    %2730 = vmatprep.subr.mxu0 0.0
    %2731 = vmatpush1.msra.mxu0 0.0
    %2732 = vmatprep.subr.mxu0 0.0
    %2733 = vmatpush1.msra.mxu0 0.0
    %2734 = vmatprep.subr.mxu0 0.0
    %2735 = vmatpush1.msra.mxu0 0.0
    %2736 = vmatprep.subr.mxu0 0.0
    %2737 = vmatpush1.msra.mxu0 0.0
    %2738 = vmatprep.subr.mxu0 0.0
    %2739 = vmatpush1.msra.mxu0 0.0
    %2740 = vmatprep.subr.mxu0 0.0
    %2741 = vmatpush1.msra.mxu0 0.0
    %2742 = vmatprep.subr.mxu0 0.0
    %2743 = vmatpush1.msra.mxu0 0.0
    %2744 = vmatprep.subr.mxu0 0.0
    %2745 = vmatpush1.msra.mxu0 0.0
    %2746 = vmatprep.subr.mxu0 0.0
    %2747 = vmatpush1.msra.mxu0 0.0
    %2748 = vmatprep.subr.mxu0 0.0
    %2749 = vmatpush1.msra.mxu0 0.0
    %2750 = vmatprep.subr.mxu0 0.0
    %2751 = vmatpush1.msra.mxu0 0.0
    %2752 = vmatprep.subr.mxu0 0.0
    %2753 = vmatpush1.msra.mxu0 0.0
    %2754 = vmatprep.subr.mxu0 0.0
    %2755 = vmatpush1.msra.mxu0 0.0
    %2756 = vmatprep.subr.mxu0 0.0
    %2757 = vmatpush1.msra.mxu0 0.0
    %2758 = vmatprep.subr.mxu0 0.0
    %2759 = vmatpush1.msra.mxu0 0.0
    %2760 = vmatprep.subr.mxu0 0.0
    %2761 = vmatpush1.msra.mxu0 0.0
    %2762 = vmatprep.subr.mxu0 0.0
    %2763 = vmatpush1.msra.mxu0 0.0
    %2764 = vmatprep.subr.mxu0 0.0
    %2765 = vmatpush1.msra.mxu0 0.0
    %2766 = vmatprep.subr.mxu0 0.0
    %2767 = vmatpush1.msra.mxu0 0.0
    %2768 = vmatprep.subr.mxu0 0.0
    %2769 = vmatpush1.msra.mxu0 0.0
    %2770 = vmatprep.subr.mxu0 0.0
    %2771 = vmatpush1.msra.mxu0 0.0
    %2772 = vmatprep.subr.mxu0 0.0
    %2773 = vmatpush1.msra.mxu0 0.0
    %2774 = vmatprep.mubr.f32.mxu0 0.0
    %2775 = vmatmul.mubr.f32.gmra.mrb[0].mxu0 %v2708
    %v2776 = vpop.f32.mrb[0].mxu0
    %v2777 = vadd.f32 %v2705, %v2776
    %v2778 = vpop.f32.mrb[0].mxu0
    %2779 = vdwg.mxu0
    %vm2780 = vcmask 31744
    %2781 = vst.msk [vmem:[%s18] sm:$0xff] %vm2780, %v2777
    // Predicated region
    $region110: #{tpu_custom_call.1} parent=1 // pred_check
      _
    $region111: #{tpu_custom_call.1} parent=1 // pred_check_branch
      %2783 = sbr.rel (0) target = $region113
    $region112: #{tpu_custom_call.1} parent=1 // pred_region
      _
    $region113: #{tpu_custom_call.1} parent=1 // pred_fallthru
      _
    // Predicated region
    $region114: #{tpu_custom_call.1} parent=1 // pred_check
      _
    $region115: #{tpu_custom_call.1} parent=1 // pred_check_branch
      %2785 = sbr.rel (0) target = $region117
    $region116: #{tpu_custom_call.1} parent=1 // pred_region
      _
    $region117: #{tpu_custom_call.1} parent=1 // pred_fallthru
      _
    %2786 = vsyncpa [#allocation5], 1
    %2787 = vsyncpa [#allocation7], 1
    %2788 = vsyncpa [#allocation10], 1
    %2789 = vsyncpa [#allocation13], 1
    %2790 = vsyncpa [#allocation16], 1

</llo_original>
